<compile_context>
chip_gen: v5e
topology: v5e:2x2
jax: 0.10.0
libtpu: 0.0.40
codegen_flags: <defaults>
</compile_context>

<pallas_src>
import functools
import math

import jax
import jax.numpy as jnp
from jax.experimental import pallas as pl
from jax.experimental.pallas import tpu as pltpu

CFG = dict(
    vocab_size=64,
    context_length=16,
    emb_dim=32,
    n_heads=4,
    n_layers=2,
    drop_rate=0.0,
    qkv_bias=False,
)

LANE = 128  # TPU lane width; activations / logits padded to multiples of this.


def _gelu_tanh(x):
    c = math.sqrt(2.0 / math.pi)
    return 0.5 * x * (1.0 + jnp.tanh(c * (x + 0.044715 * x ** 3)))


# ---------------------------------------------------------------------------
# fused Pallas kernel: embedding + all transformer blocks + final LN + LM head
# ---------------------------------------------------------------------------
def gpt_fused_kernel(idx_ref, emb_ref,
                     ln1s_ref, ln1b_ref, wq_ref, wk_ref, wv_ref, wo_ref, bo_ref,
                     ln2s_ref, ln2b_ref, w1_ref, b1_ref, w2_ref, b2_ref,
                     lnfs_ref, lnfb_ref, wout_ref,
                     o_ref, *, num_heads, num_layers, batch, seq, emb_dim, vocab):
    f32, bf16 = jnp.float32, jnp.bfloat16
    H, B, T, E = num_heads, batch, seq, emb_dim
    Ep = emb_ref.shape[-1]          # lane-padded embedding width (128)
    KE = emb_ref.shape[0]           # lane-padded combined (tok|pos) table height
    hd = E // H
    N = B * T
    HB = H * B
    inv_scale = 1.0 / math.sqrt(hd)

    # Lane mask over the real E lanes (residual pad lanes are kept exactly 0,
    # so only the variance term needs masking).
    lane = jax.lax.broadcasted_iota(jnp.int32, (N, Ep), 1)
    lane_mask = (lane < E).astype(f32)

    def layernorm(x, scale, shift):
        mean = jnp.sum(x, axis=-1, keepdims=True) * (1.0 / E)
        diff = (x - mean) * lane_mask
        var = jnp.sum(diff * diff, axis=-1, keepdims=True) * (1.0 / E)
        norm = diff * jax.lax.rsqrt(var + 1e-5)
        return scale * norm + shift            # pad lanes -> 0 (params zero-padded)

    # ---- token gather + positional add as ONE one-hot MXU matmul -----------
    col = jax.lax.broadcasted_iota(jnp.int32, (N, KE), 1)
    tok_oh = (col == idx_ref[...]).astype(f32)                 # idx: (N, 1) int32
    pos_t = jax.lax.broadcasted_iota(jnp.int32, (T, KE), 0)    # value t per row
    pos_t = jnp.concatenate([pos_t] * B, axis=0)               # (N, KE)
    pos_oh = (col == (pos_t + vocab)).astype(f32)              # pos rows live at offset V
    onehot = (tok_oh + pos_oh).astype(bf16)                    # two 1s per row
    x = jnp.dot(onehot, emb_ref[...], preferred_element_type=f32)   # (N, Ep)
    # drop_emb: identity (eval / drop_rate = 0)

    # Causal additive mask built once at (T, T); broadcasts over the merged
    # (head, batch) dim inside the single batched score add.
    row_i = jax.lax.broadcasted_iota(jnp.int32, (T, T), 0)
    col_i = jax.lax.broadcasted_iota(jnp.int32, (T, T), 1)
    neg_mask = jnp.where(col_i > row_i, f32(-1e30), f32(0.0))

    for li in range(num_layers):                 # static unroll (L=2)
        # ---- attention sub-block -------------------------------------------
        h = layernorm(x, ln1s_ref[li], ln1b_ref[li])               # (N, Ep)
        hb = jnp.broadcast_to(h.astype(bf16)[None], (H, N, Ep))    # head-batched view
        q = jnp.einsum('hne,hed->hnd', hb, wq_ref[li], preferred_element_type=f32)
        k = jnp.einsum('hne,hed->hnd', hb, wk_ref[li], preferred_element_type=f32)
        v = jnp.einsum('hne,hed->hnd', hb, wv_ref[li], preferred_element_type=f32)
        # (H, B*T, hd) -> (H*B, T, hd): tile-aligned reshape, no lane shuffles
        q = q.reshape(HB, T, hd).astype(bf16)
        k = k.reshape(HB, T, hd).astype(bf16)
        v = v.reshape(HB, T, hd).astype(bf16)

        s = jnp.einsum('nqd,nkd->nqk', q, k, preferred_element_type=f32)  # (HB,T,T)
        s = s * inv_scale + neg_mask               # scale in f32, additive causal mask
        m = jnp.max(s, axis=-1, keepdims=True)
        e = jnp.exp(s - m)
        denom = jnp.sum(e, axis=-1, keepdims=True)
        p = (e * pl.reciprocal(denom, approx=True)).astype(bf16)   # one softmax stream
        ctx = jnp.einsum('nqk,nkd->nqd', p, v, preferred_element_type=f32)  # (HB,T,hd)

        # head merge + output projection: per-head slab matmul, summed over heads
        ctx = ctx.reshape(H, N, hd).astype(bf16)
        attn = jnp.einsum('hnd,hde->hne', ctx, wo_ref[li],
                          preferred_element_type=f32)              # (H, N, Ep)
        attn = jnp.sum(attn, axis=0) + bo_ref[li]                  # (N, Ep)
        x = x + attn                                # residual (dropout = identity)

        # ---- feed-forward sub-block ----------------------------------------
        h = layernorm(x, ln2s_ref[li], ln2b_ref[li])
        h1 = jnp.dot(h.astype(bf16), w1_ref[li], preferred_element_type=f32) + b1_ref[li]
        g = _gelu_tanh(h1)                          # (N, 4E=128), lane-dense f32
        h2 = jnp.dot(g.astype(bf16), w2_ref[li], preferred_element_type=f32) + b2_ref[li]
        x = x + h2                                  # residual (dropout = identity)

    # ---- final LayerNorm + LM head: lane-dense (N, Vpad=128) output --------
    hf = layernorm(x, lnfs_ref[...], lnfb_ref[...])
    o_ref[...] = jnp.dot(hf.astype(bf16), wout_ref[...], preferred_element_type=f32)


# ---------------------------------------------------------------------------
# host-side weight preparation (stack layers, pad to lane-dense, cast MXU bf16)
# ---------------------------------------------------------------------------
_VMEM = pl.BlockSpec(memory_space=pltpu.MemorySpace.VMEM)


def _round_up(x, m):
    return ((x + m - 1) // m) * m


def _prepare_fused_weights(params, cfg):
    E, V, C, H = cfg['emb_dim'], cfg['vocab_size'], cfg['context_length'], cfg['n_heads']
    hd = E // H
    L = cfg['n_layers']
    Ep = _round_up(E, LANE)
    Vp = _round_up(V, LANE)
    KE = _round_up(V + C, LANE)
    f32, bf16 = jnp.float32, jnp.bfloat16
    blocks = params['blocks']

    def stack(name):
        return jnp.stack([b[name] for b in blocks], axis=0)

    def pad_axis(a, axis, to):
        pads = [(0, 0)] * a.ndim
        pads[axis] = (0, to - a.shape[axis])
        return jnp.pad(a, pads)

    # combined (token | position) embedding table, zero-padded to (KE, Ep)
    emb = jnp.zeros((KE, Ep), f32)
    emb = emb.at[:V, :E].set(params['tok_emb'])
    emb = emb.at[V:V + C, :E].set(params['pos_emb'])

    def heads_cols(w):          # (L,E,E): output columns grouped by head -> (L,H,Ep,hd)
        w = w.reshape(L, E, H, hd).transpose(0, 2, 1, 3)
        return pad_axis(w, 2, Ep)

    wo = pad_axis(stack('wo').reshape(L, H, hd, E), 3, Ep)      # (L,H,hd,Ep)

    return dict(
        emb=emb.astype(bf16),
        ln1_s=pad_axis(stack('ln1_s'), 2, Ep), ln1_b=pad_axis(stack('ln1_b'), 2, Ep),
        wq=heads_cols(stack('wq')).astype(bf16),
        wk=heads_cols(stack('wk')).astype(bf16),
        wv=heads_cols(stack('wv')).astype(bf16),
        wo=wo.astype(bf16),
        bo=pad_axis(stack('bo'), 2, Ep),
        ln2_s=pad_axis(stack('ln2_s'), 2, Ep), ln2_b=pad_axis(stack('ln2_b'), 2, Ep),
        w1=pad_axis(stack('w1'), 1, Ep).astype(bf16),           # (L,Ep,4E=128)
        b1=stack('b1'),
        w2=pad_axis(stack('w2'), 2, Ep).astype(bf16),           # (L,4E,Ep)
        b2=pad_axis(stack('b2'), 2, Ep),
        lnf_s=pad_axis(params['lnf_s'], 1, Ep), lnf_b=pad_axis(params['lnf_b'], 1, Ep),
        wout=pad_axis(pad_axis(params['wout'], 0, Ep), 1, Vp).astype(bf16),
    )


def gpt_forward(params, in_idx, cfg):
    B, T = in_idx.shape
    E, V, H, L = cfg['emb_dim'], cfg['vocab_size'], cfg['n_heads'], cfg['n_layers']
    hd = E // H
    F = 4 * E
    N = B * T
    w = _prepare_fused_weights(params, cfg)
    Ep, KE, Vp = w['emb'].shape[-1], w['emb'].shape[0], w['wout'].shape[-1]

    idx = in_idx.reshape(N, 1).astype(jnp.int32)
    inputs = (idx, w['emb'],
              w['ln1_s'], w['ln1_b'], w['wq'], w['wk'], w['wv'], w['wo'], w['bo'],
              w['ln2_s'], w['ln2_b'], w['w1'], w['b1'], w['w2'], w['b2'],
              w['lnf_s'], w['lnf_b'], w['wout'])

    # advisory cost hint for XLA scheduling around the custom call
    flops = 2 * N * KE * Ep + 2 * N * Ep * Vp
    flops += L * (3 * 2 * H * N * Ep * hd + 2 * 2 * H * B * T * T * hd
                  + 2 * H * N * hd * Ep + 2 * 2 * N * Ep * F)
    transcendentals = L * (H * B * T * T + N * F + 2 * N) + N
    bytes_accessed = sum(int(a.size) * a.dtype.itemsize for a in inputs) + N * Vp * 4

    logits_pad = pl.pallas_call(
        functools.partial(gpt_fused_kernel, num_heads=H, num_layers=L,
                          batch=B, seq=T, emb_dim=E, vocab=V),
        out_shape=jax.ShapeDtypeStruct((N, Vp), jnp.float32),
        in_specs=[_VMEM] * len(inputs),
        out_specs=_VMEM,
        cost_estimate=pl.CostEstimate(flops=flops, transcendentals=transcendentals,
                                      bytes_accessed=bytes_accessed),
    )(*inputs)
    # kernel output is lane-dense (N, Vpad); slice the real vocab outside
    return logits_pad.reshape(B, T, Vp)[:, :, :V]


# ---------------------------------------------------------------------------
# parameters
# ---------------------------------------------------------------------------
def init_params(key, cfg):
    E, V, C = cfg['emb_dim'], cfg['vocab_size'], cfg['context_length']

    def nrm(k, shape):
        return (0.02 * jax.random.normal(k, shape)).astype(jnp.float32)

    keys = jax.random.split(key, 3 + cfg['n_layers'])
    params = dict(
        tok_emb=nrm(keys[0], (V, E)),
        pos_emb=nrm(keys[1], (C, E)),
        lnf_s=jnp.ones((1, E), jnp.float32),
        lnf_b=jnp.zeros((1, E), jnp.float32),
        wout=nrm(keys[2], (E, V)),          # out_head (no bias), pre-transposed
        blocks=[],
    )
    for li in range(cfg['n_layers']):
        bk = jax.random.split(keys[3 + li], 6)
        params['blocks'].append(dict(
            ln1_s=jnp.ones((1, E), jnp.float32),
            ln1_b=jnp.zeros((1, E), jnp.float32),
            wq=nrm(bk[0], (E, E)),          # qkv_bias=False
            wk=nrm(bk[1], (E, E)),
            wv=nrm(bk[2], (E, E)),
            wo=nrm(bk[3], (E, E)),
            bo=jnp.zeros((1, E), jnp.float32),
            ln2_s=jnp.ones((1, E), jnp.float32),
            ln2_b=jnp.zeros((1, E), jnp.float32),
            w1=nrm(bk[4], (E, 4 * E)),
            b1=jnp.zeros((1, 4 * E), jnp.float32),
            w2=nrm(bk[5], (4 * E, E)),
            b2=jnp.zeros((1, E), jnp.float32),
        ))
    return params


# ---------------------------------------------------------------------------
# pure-JAX f32 reference (same math, no Pallas) for a correctness check
# ---------------------------------------------------------------------------
def _layernorm_ref(x, scale, shift, eps=1e-5):
    mean = jnp.mean(x, axis=-1, keepdims=True)
    var = jnp.mean((x - mean) ** 2, axis=-1, keepdims=True)
    return scale * ((x - mean) / jnp.sqrt(var + eps)) + shift


def gpt_forward_ref(params, in_idx, cfg):
    B, T = in_idx.shape
    E = cfg['emb_dim']
    H = cfg['n_heads']
    hd = E // H
    x = params['tok_emb'][in_idx] + params['pos_emb'][:T][None, :, :]
    row = jnp.arange(T)[:, None]
    col = jnp.arange(T)[None, :]
    mask = col > row
    for p in params['blocks']:
        h = _layernorm_ref(x, p['ln1_s'], p['ln1_b'])
        q = h @ p['wq']; k = h @ p['wk']; v = h @ p['wv']
        q = q.reshape(B, T, H, hd).transpose(0, 2, 1, 3)
        k = k.reshape(B, T, H, hd).transpose(0, 2, 1, 3)
        v = v.reshape(B, T, H, hd).transpose(0, 2, 1, 3)
        s = jnp.einsum('bhqd,bhkd->bhqk', q, k)
        s = jnp.where(mask[None, None], -jnp.inf, s) / math.sqrt(hd)
        w = jax.nn.softmax(s, axis=-1)
        ctx = jnp.einsum('bhqk,bhkd->bhqd', w, v).transpose(0, 2, 1, 3).reshape(B, T, E)
        x = x + (ctx @ p['wo'] + p['bo'])
        h = _layernorm_ref(x, p['ln2_s'], p['ln2_b'])
        h = _gelu_tanh(h @ p['w1'] + p['b1']) @ p['w2'] + p['b2']
        x = x + h
    x = _layernorm_ref(x, params['lnf_s'], params['lnf_b'])
    return x @ params['wout']


# ---------------------------------------------------------------------------
if __name__ == "__main__":
    key = jax.random.PRNGKey(0)
    k_params, k_idx = jax.random.split(key)

    params = init_params(k_params, CFG)
    in_idx = jax.random.randint(k_idx, (2, 8), 0, CFG['vocab_size'], dtype=jnp.int32)

    fwd = jax.jit(functools.partial(gpt_forward, cfg=CFG))
    logits = fwd(params, in_idx)
    logits = jax.block_until_ready(logits)

    ref = gpt_forward_ref(params, in_idx, CFG)
    assert logits.shape == (2, 8, CFG['vocab_size'])
    assert bool(jnp.all(jnp.isfinite(logits)))
    assert jnp.allclose(logits, ref, atol=1e-2, rtol=1e-2)

    print("KERNEL_OK")
</pallas_src>

<mosaic_0001>
module attributes {stable_mosaic.version = 11 : i64} {
  func.func @gpt_fused_kernel(%arg0: memref<16x1xi32, #tpu.memory_space<vmem>>, %arg1: memref<128x128xbf16, #tpu.memory_space<vmem>>, %arg2: memref<2x1x128xf32, #tpu.memory_space<vmem>>, %arg3: memref<2x1x128xf32, #tpu.memory_space<vmem>>, %arg4: memref<2x4x128x8xbf16, #tpu.memory_space<vmem>>, %arg5: memref<2x4x128x8xbf16, #tpu.memory_space<vmem>>, %arg6: memref<2x4x128x8xbf16, #tpu.memory_space<vmem>>, %arg7: memref<2x4x8x128xbf16, #tpu.memory_space<vmem>>, %arg8: memref<2x1x128xf32, #tpu.memory_space<vmem>>, %arg9: memref<2x1x128xf32, #tpu.memory_space<vmem>>, %arg10: memref<2x1x128xf32, #tpu.memory_space<vmem>>, %arg11: memref<2x128x128xbf16, #tpu.memory_space<vmem>>, %arg12: memref<2x1x128xf32, #tpu.memory_space<vmem>>, %arg13: memref<2x128x128xbf16, #tpu.memory_space<vmem>>, %arg14: memref<2x1x128xf32, #tpu.memory_space<vmem>>, %arg15: memref<1x128xf32, #tpu.memory_space<vmem>>, %arg16: memref<1x128xf32, #tpu.memory_space<vmem>>, %arg17: memref<128x128xbf16, #tpu.memory_space<vmem>>, %arg18: memref<16x128xf32, #tpu.memory_space<vmem>>) attributes {dimension_semantics = [], scalar_prefetch = 0 : i64, scratch_operands = 0 : i64, tpu.core_type = #tpu.core_type<tc>} {
    %0 = tpu.iota {dimensions = array<i32: 1>} : vector<16x128xi32>
    %c32_i32 = arith.constant 32 : i32
    %1 = vector.broadcast %c32_i32 : i32 to vector<16x128xi32>
    %2 = arith.cmpi slt, %0, %1 : vector<16x128xi32>
    %3 = arith.extui %2 : vector<16x128xi1> to vector<16x128xi32>
    %4 = arith.sitofp %3 : vector<16x128xi32> to vector<16x128xf32>
    %5 = tpu.iota {dimensions = array<i32: 1>} : vector<16x128xi32>
    %c0 = arith.constant 0 : index
    %c0_0 = arith.constant 0 : index
    %6 = vector.load %arg0[%c0, %c0_0] : memref<16x1xi32, #tpu.memory_space<vmem>>, vector<16x1xi32>
    %7 = vector.broadcast %6 : vector<16x1xi32> to vector<16x128xi32>
    %8 = arith.cmpi eq, %5, %7 : vector<16x128xi32>
    %9 = arith.extui %8 : vector<16x128xi1> to vector<16x128xi32>
    %10 = arith.sitofp %9 : vector<16x128xi32> to vector<16x128xf32>
    %11 = tpu.iota {dimensions = array<i32: 0>} : vector<8x128xi32>
    %12 = tpu.concatenate %11, %11 in 0 : vector<8x128xi32>, vector<8x128xi32> -> vector<16x128xi32>
    %c64_i32 = arith.constant 64 : i32
    %13 = vector.broadcast %c64_i32 : i32 to vector<16x128xi32>
    %14 = arith.addi %12, %13 : vector<16x128xi32>
    %15 = arith.cmpi eq, %5, %14 : vector<16x128xi32>
    %16 = arith.extui %15 : vector<16x128xi1> to vector<16x128xi32>
    %17 = arith.sitofp %16 : vector<16x128xi32> to vector<16x128xf32>
    %18 = arith.addf %10, %17 : vector<16x128xf32>
    %19 = arith.truncf %18 : vector<16x128xf32> to vector<16x128xbf16>
    %c0_1 = arith.constant 0 : index
    %c0_2 = arith.constant 0 : index
    %20 = vector.load %arg1[%c0_1, %c0_2] : memref<128x128xbf16, #tpu.memory_space<vmem>>, vector<128x128xbf16>
    %cst = arith.constant dense<0.000000e+00> : vector<16x128xf32>
    %21 = tpu.matmul %19, %20, %cst {dimension_numbers = #tpu.dot_dimension_numbers<[1], [0], [0], [1], [0, 0, 1, 1], [], []>} : vector<16x128xbf16>, vector<128x128xbf16>, vector<16x128xf32> -> vector<16x128xf32>
    %22 = tpu.iota {dimensions = array<i32: 0>} : vector<8x8xi32>
    %23 = tpu.iota {dimensions = array<i32: 1>} : vector<8x8xi32>
    %24 = arith.cmpi sgt, %23, %22 : vector<8x8xi32>
    %cst_3 = arith.constant -1.000000e+30 : f32
    %cst_4 = arith.constant 0.000000e+00 : f32
    %25 = vector.broadcast %cst_3 : f32 to vector<8x8xf32>
    %26 = vector.broadcast %cst_4 : f32 to vector<8x8xf32>
    %27 = arith.select %24, %25, %26 : vector<8x8xi1>, vector<8x8xf32>
    %c0_5 = arith.constant 0 : index
    %c0_6 = arith.constant 0 : index
    %c0_7 = arith.constant 0 : index
    %28 = vector.load %arg2[%c0_5, %c0_6, %c0_7] : memref<2x1x128xf32, #tpu.memory_space<vmem>>, vector<1x1x128xf32>
    %29 = vector.shape_cast %28 : vector<1x1x128xf32> to vector<1x128xf32>
    %c0_8 = arith.constant 0 : index
    %c0_9 = arith.constant 0 : index
    %c0_10 = arith.constant 0 : index
    %30 = vector.load %arg3[%c0_8, %c0_9, %c0_10] : memref<2x1x128xf32, #tpu.memory_space<vmem>>, vector<1x1x128xf32>
    %31 = vector.shape_cast %30 : vector<1x1x128xf32> to vector<1x128xf32>
    %cst_11 = arith.constant dense<0.000000e+00> : vector<16xf32>
    %32 = vector.multi_reduction <add>, %21, %cst_11 [1] : vector<16x128xf32> to vector<16xf32>
    %33 = vector.shape_cast %32 : vector<16xf32> to vector<16x1xf32>
    %cst_12 = arith.constant 3.125000e-02 : f32
    %34 = vector.broadcast %cst_12 : f32 to vector<16x1xf32>
    %35 = arith.mulf %33, %34 : vector<16x1xf32>
    %36 = vector.broadcast %35 : vector<16x1xf32> to vector<16x128xf32>
    %37 = arith.subf %21, %36 : vector<16x128xf32>
    %38 = arith.mulf %37, %4 : vector<16x128xf32>
    %39 = arith.mulf %38, %38 : vector<16x128xf32>
    %cst_13 = arith.constant dense<0.000000e+00> : vector<16xf32>
    %40 = vector.multi_reduction <add>, %39, %cst_13 [1] : vector<16x128xf32> to vector<16xf32>
    %41 = vector.shape_cast %40 : vector<16xf32> to vector<16x1xf32>
    %cst_14 = arith.constant 3.125000e-02 : f32
    %42 = vector.broadcast %cst_14 : f32 to vector<16x1xf32>
    %43 = arith.mulf %41, %42 : vector<16x1xf32>
    %cst_15 = arith.constant 9.99999974E-6 : f32
    %44 = vector.broadcast %cst_15 : f32 to vector<16x1xf32>
    %45 = arith.addf %43, %44 : vector<16x1xf32>
    %46 = math.rsqrt %45 : vector<16x1xf32>
    %47 = vector.broadcast %46 : vector<16x1xf32> to vector<16x128xf32>
    %48 = arith.mulf %38, %47 : vector<16x128xf32>
    %49 = vector.broadcast %29 : vector<1x128xf32> to vector<16x128xf32>
    %50 = arith.mulf %49, %48 : vector<16x128xf32>
    %51 = vector.broadcast %31 : vector<1x128xf32> to vector<16x128xf32>
    %52 = arith.addf %50, %51 : vector<16x128xf32>
    %53 = arith.truncf %52 : vector<16x128xf32> to vector<16x128xbf16>
    %54 = vector.shape_cast %53 : vector<16x128xbf16> to vector<1x16x128xbf16>
    %55 = vector.shape_cast %54 : vector<1x16x128xbf16> to vector<1x16x128xbf16>
    %56 = vector.broadcast %55 : vector<1x16x128xbf16> to vector<4x16x128xbf16>
    %c0_16 = arith.constant 0 : index
    %c0_17 = arith.constant 0 : index
    %c0_18 = arith.constant 0 : index
    %c0_19 = arith.constant 0 : index
    %57 = vector.load %arg4[%c0_16, %c0_17, %c0_18, %c0_19] : memref<2x4x128x8xbf16, #tpu.memory_space<vmem>>, vector<1x4x128x8xbf16>
    %58 = vector.shape_cast %57 : vector<1x4x128x8xbf16> to vector<4x128x8xbf16>
    "tpu.trace_start"() <{level = 10 : i32, message = "hne,hed->hnd"}> : () -> ()
    %cst_20 = arith.constant dense<0.000000e+00> : vector<4x16x8xf32>
    %59 = tpu.matmul %56, %58, %cst_20 {dimension_numbers = #tpu.dot_dimension_numbers<[2], [1], [1], [2], [0, 0, 0, 1, 1, 2], [0], [0]>} : vector<4x16x128xbf16>, vector<4x128x8xbf16>, vector<4x16x8xf32> -> vector<4x16x8xf32>
    "tpu.trace_stop"() : () -> ()
    %c0_21 = arith.constant 0 : index
    %c0_22 = arith.constant 0 : index
    %c0_23 = arith.constant 0 : index
    %c0_24 = arith.constant 0 : index
    %60 = vector.load %arg5[%c0_21, %c0_22, %c0_23, %c0_24] : memref<2x4x128x8xbf16, #tpu.memory_space<vmem>>, vector<1x4x128x8xbf16>
    %61 = vector.shape_cast %60 : vector<1x4x128x8xbf16> to vector<4x128x8xbf16>
    "tpu.trace_start"() <{level = 10 : i32, message = "hne,hed->hnd"}> : () -> ()
    %cst_25 = arith.constant dense<0.000000e+00> : vector<4x16x8xf32>
    %62 = tpu.matmul %56, %61, %cst_25 {dimension_numbers = #tpu.dot_dimension_numbers<[2], [1], [1], [2], [0, 0, 0, 1, 1, 2], [0], [0]>} : vector<4x16x128xbf16>, vector<4x128x8xbf16>, vector<4x16x8xf32> -> vector<4x16x8xf32>
    "tpu.trace_stop"() : () -> ()
    %c0_26 = arith.constant 0 : index
    %c0_27 = arith.constant 0 : index
    %c0_28 = arith.constant 0 : index
    %c0_29 = arith.constant 0 : index
    %63 = vector.load %arg6[%c0_26, %c0_27, %c0_28, %c0_29] : memref<2x4x128x8xbf16, #tpu.memory_space<vmem>>, vector<1x4x128x8xbf16>
    %64 = vector.shape_cast %63 : vector<1x4x128x8xbf16> to vector<4x128x8xbf16>
    "tpu.trace_start"() <{level = 10 : i32, message = "hne,hed->hnd"}> : () -> ()
    %cst_30 = arith.constant dense<0.000000e+00> : vector<4x16x8xf32>
    %65 = tpu.matmul %56, %64, %cst_30 {dimension_numbers = #tpu.dot_dimension_numbers<[2], [1], [1], [2], [0, 0, 0, 1, 1, 2], [0], [0]>} : vector<4x16x128xbf16>, vector<4x128x8xbf16>, vector<4x16x8xf32> -> vector<4x16x8xf32>
    "tpu.trace_stop"() : () -> ()
    %66 = vector.shape_cast %59 : vector<4x16x8xf32> to vector<8x8x8xf32>
    %67 = arith.truncf %66 : vector<8x8x8xf32> to vector<8x8x8xbf16>
    %68 = vector.shape_cast %62 : vector<4x16x8xf32> to vector<8x8x8xf32>
    %69 = arith.truncf %68 : vector<8x8x8xf32> to vector<8x8x8xbf16>
    %70 = vector.shape_cast %65 : vector<4x16x8xf32> to vector<8x8x8xf32>
    %71 = arith.truncf %70 : vector<8x8x8xf32> to vector<8x8x8xbf16>
    "tpu.trace_start"() <{level = 10 : i32, message = "nqd,nkd->nqk"}> : () -> ()
    %cst_31 = arith.constant dense<0.000000e+00> : vector<8x8x8xf32>
    %72 = tpu.matmul %67, %69, %cst_31 {dimension_numbers = #tpu.dot_dimension_numbers<[2], [2], [1], [1], [0, 0, 0, 1, 1, 1], [0], [0]>} : vector<8x8x8xbf16>, vector<8x8x8xbf16>, vector<8x8x8xf32> -> vector<8x8x8xf32>
    "tpu.trace_stop"() : () -> ()
    %cst_32 = arith.constant 0.353553385 : f32
    %73 = vector.broadcast %cst_32 : f32 to vector<8x8x8xf32>
    %74 = arith.mulf %72, %73 : vector<8x8x8xf32>
    %75 = vector.shape_cast %27 : vector<8x8xf32> to vector<1x8x8xf32>
    %76 = vector.broadcast %75 : vector<1x8x8xf32> to vector<8x8x8xf32>
    %77 = arith.addf %74, %76 : vector<8x8x8xf32>
    %cst_33 = arith.constant dense<0xFF800000> : vector<8x8xf32>
    %78 = vector.multi_reduction <maximumf>, %77, %cst_33 [2] : vector<8x8x8xf32> to vector<8x8xf32>
    %79 = vector.shape_cast %78 : vector<8x8xf32> to vector<8x8x1xf32>
    %80 = vector.broadcast %79 : vector<8x8x1xf32> to vector<8x8x8xf32>
    %81 = arith.subf %77, %80 : vector<8x8x8xf32>
    %82 = math.exp %81 : vector<8x8x8xf32>
    %cst_34 = arith.constant dense<0.000000e+00> : vector<8x8xf32>
    %83 = vector.multi_reduction <add>, %82, %cst_34 [2] : vector<8x8x8xf32> to vector<8x8xf32>
    %84 = vector.shape_cast %83 : vector<8x8xf32> to vector<8x8x1xf32>
    %85 = tpu.reciprocal %84 {approx = true} : vector<8x8x1xf32> -> vector<8x8x1xf32>
    %86 = vector.broadcast %85 : vector<8x8x1xf32> to vector<8x8x8xf32>
    %87 = arith.mulf %82, %86 : vector<8x8x8xf32>
    %88 = arith.truncf %87 : vector<8x8x8xf32> to vector<8x8x8xbf16>
    "tpu.trace_start"() <{level = 10 : i32, message = "nqk,nkd->nqd"}> : () -> ()
    %cst_35 = arith.constant dense<0.000000e+00> : vector<8x8x8xf32>
    %89 = tpu.matmul %88, %71, %cst_35 {dimension_numbers = #tpu.dot_dimension_numbers<[2], [1], [1], [2], [0, 0, 0, 1, 1, 2], [0], [0]>} : vector<8x8x8xbf16>, vector<8x8x8xbf16>, vector<8x8x8xf32> -> vector<8x8x8xf32>
    "tpu.trace_stop"() : () -> ()
    %90 = vector.shape_cast %89 : vector<8x8x8xf32> to vector<4x16x8xf32>
    %91 = arith.truncf %90 : vector<4x16x8xf32> to vector<4x16x8xbf16>
    %c0_36 = arith.constant 0 : index
    %c0_37 = arith.constant 0 : index
    %c0_38 = arith.constant 0 : index
    %c0_39 = arith.constant 0 : index
    %92 = vector.load %arg7[%c0_36, %c0_37, %c0_38, %c0_39] : memref<2x4x8x128xbf16, #tpu.memory_space<vmem>>, vector<1x4x8x128xbf16>
    %93 = vector.shape_cast %92 : vector<1x4x8x128xbf16> to vector<4x8x128xbf16>
    "tpu.trace_start"() <{level = 10 : i32, message = "hnd,hde->hne"}> : () -> ()
    %cst_40 = arith.constant dense<0.000000e+00> : vector<4x16x128xf32>
    %94 = tpu.matmul %91, %93, %cst_40 {dimension_numbers = #tpu.dot_dimension_numbers<[2], [1], [1], [2], [0, 0, 0, 1, 1, 2], [0], [0]>} : vector<4x16x8xbf16>, vector<4x8x128xbf16>, vector<4x16x128xf32> -> vector<4x16x128xf32>
    "tpu.trace_stop"() : () -> ()
    %cst_41 = arith.constant dense<0.000000e+00> : vector<16x128xf32>
    %95 = vector.multi_reduction <add>, %94, %cst_41 [0] : vector<4x16x128xf32> to vector<16x128xf32>
    %c0_42 = arith.constant 0 : index
    %c0_43 = arith.constant 0 : index
    %c0_44 = arith.constant 0 : index
    %96 = vector.load %arg8[%c0_42, %c0_43, %c0_44] : memref<2x1x128xf32, #tpu.memory_space<vmem>>, vector<1x1x128xf32>
    %97 = vector.shape_cast %96 : vector<1x1x128xf32> to vector<1x128xf32>
    %98 = vector.broadcast %97 : vector<1x128xf32> to vector<16x128xf32>
    %99 = arith.addf %95, %98 : vector<16x128xf32>
    %100 = arith.addf %21, %99 : vector<16x128xf32>
    %c0_45 = arith.constant 0 : index
    %c0_46 = arith.constant 0 : index
    %c0_47 = arith.constant 0 : index
    %101 = vector.load %arg9[%c0_45, %c0_46, %c0_47] : memref<2x1x128xf32, #tpu.memory_space<vmem>>, vector<1x1x128xf32>
    %102 = vector.shape_cast %101 : vector<1x1x128xf32> to vector<1x128xf32>
    %c0_48 = arith.constant 0 : index
    %c0_49 = arith.constant 0 : index
    %c0_50 = arith.constant 0 : index
    %103 = vector.load %arg10[%c0_48, %c0_49, %c0_50] : memref<2x1x128xf32, #tpu.memory_space<vmem>>, vector<1x1x128xf32>
    %104 = vector.shape_cast %103 : vector<1x1x128xf32> to vector<1x128xf32>
    %cst_51 = arith.constant dense<0.000000e+00> : vector<16xf32>
    %105 = vector.multi_reduction <add>, %100, %cst_51 [1] : vector<16x128xf32> to vector<16xf32>
    %106 = vector.shape_cast %105 : vector<16xf32> to vector<16x1xf32>
    %cst_52 = arith.constant 3.125000e-02 : f32
    %107 = vector.broadcast %cst_52 : f32 to vector<16x1xf32>
    %108 = arith.mulf %106, %107 : vector<16x1xf32>
    %109 = vector.broadcast %108 : vector<16x1xf32> to vector<16x128xf32>
    %110 = arith.subf %100, %109 : vector<16x128xf32>
    %111 = arith.mulf %110, %4 : vector<16x128xf32>
    %112 = arith.mulf %111, %111 : vector<16x128xf32>
    %cst_53 = arith.constant dense<0.000000e+00> : vector<16xf32>
    %113 = vector.multi_reduction <add>, %112, %cst_53 [1] : vector<16x128xf32> to vector<16xf32>
    %114 = vector.shape_cast %113 : vector<16xf32> to vector<16x1xf32>
    %cst_54 = arith.constant 3.125000e-02 : f32
    %115 = vector.broadcast %cst_54 : f32 to vector<16x1xf32>
    %116 = arith.mulf %114, %115 : vector<16x1xf32>
    %cst_55 = arith.constant 9.99999974E-6 : f32
    %117 = vector.broadcast %cst_55 : f32 to vector<16x1xf32>
    %118 = arith.addf %116, %117 : vector<16x1xf32>
    %119 = math.rsqrt %118 : vector<16x1xf32>
    %120 = vector.broadcast %119 : vector<16x1xf32> to vector<16x128xf32>
    %121 = arith.mulf %111, %120 : vector<16x128xf32>
    %122 = vector.broadcast %102 : vector<1x128xf32> to vector<16x128xf32>
    %123 = arith.mulf %122, %121 : vector<16x128xf32>
    %124 = vector.broadcast %104 : vector<1x128xf32> to vector<16x128xf32>
    %125 = arith.addf %123, %124 : vector<16x128xf32>
    %126 = arith.truncf %125 : vector<16x128xf32> to vector<16x128xbf16>
    %c0_56 = arith.constant 0 : index
    %c0_57 = arith.constant 0 : index
    %c0_58 = arith.constant 0 : index
    %127 = vector.load %arg11[%c0_56, %c0_57, %c0_58] : memref<2x128x128xbf16, #tpu.memory_space<vmem>>, vector<1x128x128xbf16>
    %128 = vector.shape_cast %127 : vector<1x128x128xbf16> to vector<128x128xbf16>
    %cst_59 = arith.constant dense<0.000000e+00> : vector<16x128xf32>
    %129 = tpu.matmul %126, %128, %cst_59 {dimension_numbers = #tpu.dot_dimension_numbers<[1], [0], [0], [1], [0, 0, 1, 1], [], []>} : vector<16x128xbf16>, vector<128x128xbf16>, vector<16x128xf32> -> vector<16x128xf32>
    %c0_60 = arith.constant 0 : index
    %c0_61 = arith.constant 0 : index
    %c0_62 = arith.constant 0 : index
    %130 = vector.load %arg12[%c0_60, %c0_61, %c0_62] : memref<2x1x128xf32, #tpu.memory_space<vmem>>, vector<1x1x128xf32>
    %131 = vector.shape_cast %130 : vector<1x1x128xf32> to vector<1x128xf32>
    %132 = vector.broadcast %131 : vector<1x128xf32> to vector<16x128xf32>
    %133 = arith.addf %129, %132 : vector<16x128xf32>
    %cst_63 = arith.constant 5.000000e-01 : f32
    %134 = vector.broadcast %cst_63 : f32 to vector<16x128xf32>
    %135 = arith.mulf %134, %133 : vector<16x128xf32>
    %136 = arith.mulf %133, %133 : vector<16x128xf32>
    %137 = arith.mulf %133, %136 : vector<16x128xf32>
    %cst_64 = arith.constant 4.471500e-02 : f32
    %138 = vector.broadcast %cst_64 : f32 to vector<16x128xf32>
    %139 = arith.mulf %138, %137 : vector<16x128xf32>
    %140 = arith.addf %133, %139 : vector<16x128xf32>
    %cst_65 = arith.constant 0.797884583 : f32
    %141 = vector.broadcast %cst_65 : f32 to vector<16x128xf32>
    %142 = arith.mulf %141, %140 : vector<16x128xf32>
    %143 = math.tanh %142 : vector<16x128xf32>
    %cst_66 = arith.constant 1.000000e+00 : f32
    %144 = vector.broadcast %cst_66 : f32 to vector<16x128xf32>
    %145 = arith.addf %144, %143 : vector<16x128xf32>
    %146 = arith.mulf %135, %145 : vector<16x128xf32>
    %147 = arith.truncf %146 : vector<16x128xf32> to vector<16x128xbf16>
    %c0_67 = arith.constant 0 : index
    %c0_68 = arith.constant 0 : index
    %c0_69 = arith.constant 0 : index
    %148 = vector.load %arg13[%c0_67, %c0_68, %c0_69] : memref<2x128x128xbf16, #tpu.memory_space<vmem>>, vector<1x128x128xbf16>
    %149 = vector.shape_cast %148 : vector<1x128x128xbf16> to vector<128x128xbf16>
    %cst_70 = arith.constant dense<0.000000e+00> : vector<16x128xf32>
    %150 = tpu.matmul %147, %149, %cst_70 {dimension_numbers = #tpu.dot_dimension_numbers<[1], [0], [0], [1], [0, 0, 1, 1], [], []>} : vector<16x128xbf16>, vector<128x128xbf16>, vector<16x128xf32> -> vector<16x128xf32>
    %c0_71 = arith.constant 0 : index
    %c0_72 = arith.constant 0 : index
    %c0_73 = arith.constant 0 : index
    %151 = vector.load %arg14[%c0_71, %c0_72, %c0_73] : memref<2x1x128xf32, #tpu.memory_space<vmem>>, vector<1x1x128xf32>
    %152 = vector.shape_cast %151 : vector<1x1x128xf32> to vector<1x128xf32>
    %153 = vector.broadcast %152 : vector<1x128xf32> to vector<16x128xf32>
    %154 = arith.addf %150, %153 : vector<16x128xf32>
    %155 = arith.addf %100, %154 : vector<16x128xf32>
    %c1 = arith.constant 1 : index
    %c0_74 = arith.constant 0 : index
    %c0_75 = arith.constant 0 : index
    %156 = vector.load %arg2[%c1, %c0_74, %c0_75] : memref<2x1x128xf32, #tpu.memory_space<vmem>>, vector<1x1x128xf32>
    %157 = vector.shape_cast %156 : vector<1x1x128xf32> to vector<1x128xf32>
    %c1_76 = arith.constant 1 : index
    %c0_77 = arith.constant 0 : index
    %c0_78 = arith.constant 0 : index
    %158 = vector.load %arg3[%c1_76, %c0_77, %c0_78] : memref<2x1x128xf32, #tpu.memory_space<vmem>>, vector<1x1x128xf32>
    %159 = vector.shape_cast %158 : vector<1x1x128xf32> to vector<1x128xf32>
    %cst_79 = arith.constant dense<0.000000e+00> : vector<16xf32>
    %160 = vector.multi_reduction <add>, %155, %cst_79 [1] : vector<16x128xf32> to vector<16xf32>
    %161 = vector.shape_cast %160 : vector<16xf32> to vector<16x1xf32>
    %cst_80 = arith.constant 3.125000e-02 : f32
    %162 = vector.broadcast %cst_80 : f32 to vector<16x1xf32>
    %163 = arith.mulf %161, %162 : vector<16x1xf32>
    %164 = vector.broadcast %163 : vector<16x1xf32> to vector<16x128xf32>
    %165 = arith.subf %155, %164 : vector<16x128xf32>
    %166 = arith.mulf %165, %4 : vector<16x128xf32>
    %167 = arith.mulf %166, %166 : vector<16x128xf32>
    %cst_81 = arith.constant dense<0.000000e+00> : vector<16xf32>
    %168 = vector.multi_reduction <add>, %167, %cst_81 [1] : vector<16x128xf32> to vector<16xf32>
    %169 = vector.shape_cast %168 : vector<16xf32> to vector<16x1xf32>
    %cst_82 = arith.constant 3.125000e-02 : f32
    %170 = vector.broadcast %cst_82 : f32 to vector<16x1xf32>
    %171 = arith.mulf %169, %170 : vector<16x1xf32>
    %cst_83 = arith.constant 9.99999974E-6 : f32
    %172 = vector.broadcast %cst_83 : f32 to vector<16x1xf32>
    %173 = arith.addf %171, %172 : vector<16x1xf32>
    %174 = math.rsqrt %173 : vector<16x1xf32>
    %175 = vector.broadcast %174 : vector<16x1xf32> to vector<16x128xf32>
    %176 = arith.mulf %166, %175 : vector<16x128xf32>
    %177 = vector.broadcast %157 : vector<1x128xf32> to vector<16x128xf32>
    %178 = arith.mulf %177, %176 : vector<16x128xf32>
    %179 = vector.broadcast %159 : vector<1x128xf32> to vector<16x128xf32>
    %180 = arith.addf %178, %179 : vector<16x128xf32>
    %181 = arith.truncf %180 : vector<16x128xf32> to vector<16x128xbf16>
    %182 = vector.shape_cast %181 : vector<16x128xbf16> to vector<1x16x128xbf16>
    %183 = vector.shape_cast %182 : vector<1x16x128xbf16> to vector<1x16x128xbf16>
    %184 = vector.broadcast %183 : vector<1x16x128xbf16> to vector<4x16x128xbf16>
    %c1_84 = arith.constant 1 : index
    %c0_85 = arith.constant 0 : index
    %c0_86 = arith.constant 0 : index
    %c0_87 = arith.constant 0 : index
    %185 = vector.load %arg4[%c1_84, %c0_85, %c0_86, %c0_87] : memref<2x4x128x8xbf16, #tpu.memory_space<vmem>>, vector<1x4x128x8xbf16>
    %186 = vector.shape_cast %185 : vector<1x4x128x8xbf16> to vector<4x128x8xbf16>
    "tpu.trace_start"() <{level = 10 : i32, message = "hne,hed->hnd"}> : () -> ()
    %cst_88 = arith.constant dense<0.000000e+00> : vector<4x16x8xf32>
    %187 = tpu.matmul %184, %186, %cst_88 {dimension_numbers = #tpu.dot_dimension_numbers<[2], [1], [1], [2], [0, 0, 0, 1, 1, 2], [0], [0]>} : vector<4x16x128xbf16>, vector<4x128x8xbf16>, vector<4x16x8xf32> -> vector<4x16x8xf32>
    "tpu.trace_stop"() : () -> ()
    %c1_89 = arith.constant 1 : index
    %c0_90 = arith.constant 0 : index
    %c0_91 = arith.constant 0 : index
    %c0_92 = arith.constant 0 : index
    %188 = vector.load %arg5[%c1_89, %c0_90, %c0_91, %c0_92] : memref<2x4x128x8xbf16, #tpu.memory_space<vmem>>, vector<1x4x128x8xbf16>
    %189 = vector.shape_cast %188 : vector<1x4x128x8xbf16> to vector<4x128x8xbf16>
    "tpu.trace_start"() <{level = 10 : i32, message = "hne,hed->hnd"}> : () -> ()
    %cst_93 = arith.constant dense<0.000000e+00> : vector<4x16x8xf32>
    %190 = tpu.matmul %184, %189, %cst_93 {dimension_numbers = #tpu.dot_dimension_numbers<[2], [1], [1], [2], [0, 0, 0, 1, 1, 2], [0], [0]>} : vector<4x16x128xbf16>, vector<4x128x8xbf16>, vector<4x16x8xf32> -> vector<4x16x8xf32>
    "tpu.trace_stop"() : () -> ()
    %c1_94 = arith.constant 1 : index
    %c0_95 = arith.constant 0 : index
    %c0_96 = arith.constant 0 : index
    %c0_97 = arith.constant 0 : index
    %191 = vector.load %arg6[%c1_94, %c0_95, %c0_96, %c0_97] : memref<2x4x128x8xbf16, #tpu.memory_space<vmem>>, vector<1x4x128x8xbf16>
    %192 = vector.shape_cast %191 : vector<1x4x128x8xbf16> to vector<4x128x8xbf16>
    "tpu.trace_start"() <{level = 10 : i32, message = "hne,hed->hnd"}> : () -> ()
    %cst_98 = arith.constant dense<0.000000e+00> : vector<4x16x8xf32>
    %193 = tpu.matmul %184, %192, %cst_98 {dimension_numbers = #tpu.dot_dimension_numbers<[2], [1], [1], [2], [0, 0, 0, 1, 1, 2], [0], [0]>} : vector<4x16x128xbf16>, vector<4x128x8xbf16>, vector<4x16x8xf32> -> vector<4x16x8xf32>
    "tpu.trace_stop"() : () -> ()
    %194 = vector.shape_cast %187 : vector<4x16x8xf32> to vector<8x8x8xf32>
    %195 = arith.truncf %194 : vector<8x8x8xf32> to vector<8x8x8xbf16>
    %196 = vector.shape_cast %190 : vector<4x16x8xf32> to vector<8x8x8xf32>
    %197 = arith.truncf %196 : vector<8x8x8xf32> to vector<8x8x8xbf16>
    %198 = vector.shape_cast %193 : vector<4x16x8xf32> to vector<8x8x8xf32>
    %199 = arith.truncf %198 : vector<8x8x8xf32> to vector<8x8x8xbf16>
    "tpu.trace_start"() <{level = 10 : i32, message = "nqd,nkd->nqk"}> : () -> ()
    %cst_99 = arith.constant dense<0.000000e+00> : vector<8x8x8xf32>
    %200 = tpu.matmul %195, %197, %cst_99 {dimension_numbers = #tpu.dot_dimension_numbers<[2], [2], [1], [1], [0, 0, 0, 1, 1, 1], [0], [0]>} : vector<8x8x8xbf16>, vector<8x8x8xbf16>, vector<8x8x8xf32> -> vector<8x8x8xf32>
    "tpu.trace_stop"() : () -> ()
    %cst_100 = arith.constant 0.353553385 : f32
    %201 = vector.broadcast %cst_100 : f32 to vector<8x8x8xf32>
    %202 = arith.mulf %200, %201 : vector<8x8x8xf32>
    %203 = vector.shape_cast %27 : vector<8x8xf32> to vector<1x8x8xf32>
    %204 = vector.broadcast %203 : vector<1x8x8xf32> to vector<8x8x8xf32>
    %205 = arith.addf %202, %204 : vector<8x8x8xf32>
    %cst_101 = arith.constant dense<0xFF800000> : vector<8x8xf32>
    %206 = vector.multi_reduction <maximumf>, %205, %cst_101 [2] : vector<8x8x8xf32> to vector<8x8xf32>
    %207 = vector.shape_cast %206 : vector<8x8xf32> to vector<8x8x1xf32>
    %208 = vector.broadcast %207 : vector<8x8x1xf32> to vector<8x8x8xf32>
    %209 = arith.subf %205, %208 : vector<8x8x8xf32>
    %210 = math.exp %209 : vector<8x8x8xf32>
    %cst_102 = arith.constant dense<0.000000e+00> : vector<8x8xf32>
    %211 = vector.multi_reduction <add>, %210, %cst_102 [2] : vector<8x8x8xf32> to vector<8x8xf32>
    %212 = vector.shape_cast %211 : vector<8x8xf32> to vector<8x8x1xf32>
    %213 = tpu.reciprocal %212 {approx = true} : vector<8x8x1xf32> -> vector<8x8x1xf32>
    %214 = vector.broadcast %213 : vector<8x8x1xf32> to vector<8x8x8xf32>
    %215 = arith.mulf %210, %214 : vector<8x8x8xf32>
    %216 = arith.truncf %215 : vector<8x8x8xf32> to vector<8x8x8xbf16>
    "tpu.trace_start"() <{level = 10 : i32, message = "nqk,nkd->nqd"}> : () -> ()
    %cst_103 = arith.constant dense<0.000000e+00> : vector<8x8x8xf32>
    %217 = tpu.matmul %216, %199, %cst_103 {dimension_numbers = #tpu.dot_dimension_numbers<[2], [1], [1], [2], [0, 0, 0, 1, 1, 2], [0], [0]>} : vector<8x8x8xbf16>, vector<8x8x8xbf16>, vector<8x8x8xf32> -> vector<8x8x8xf32>
    "tpu.trace_stop"() : () -> ()
    %218 = vector.shape_cast %217 : vector<8x8x8xf32> to vector<4x16x8xf32>
    %219 = arith.truncf %218 : vector<4x16x8xf32> to vector<4x16x8xbf16>
    %c1_104 = arith.constant 1 : index
    %c0_105 = arith.constant 0 : index
    %c0_106 = arith.constant 0 : index
    %c0_107 = arith.constant 0 : index
    %220 = vector.load %arg7[%c1_104, %c0_105, %c0_106, %c0_107] : memref<2x4x8x128xbf16, #tpu.memory_space<vmem>>, vector<1x4x8x128xbf16>
    %221 = vector.shape_cast %220 : vector<1x4x8x128xbf16> to vector<4x8x128xbf16>
    "tpu.trace_start"() <{level = 10 : i32, message = "hnd,hde->hne"}> : () -> ()
    %cst_108 = arith.constant dense<0.000000e+00> : vector<4x16x128xf32>
    %222 = tpu.matmul %219, %221, %cst_108 {dimension_numbers = #tpu.dot_dimension_numbers<[2], [1], [1], [2], [0, 0, 0, 1, 1, 2], [0], [0]>} : vector<4x16x8xbf16>, vector<4x8x128xbf16>, vector<4x16x128xf32> -> vector<4x16x128xf32>
    "tpu.trace_stop"() : () -> ()
    %cst_109 = arith.constant dense<0.000000e+00> : vector<16x128xf32>
    %223 = vector.multi_reduction <add>, %222, %cst_109 [0] : vector<4x16x128xf32> to vector<16x128xf32>
    %c1_110 = arith.constant 1 : index
    %c0_111 = arith.constant 0 : index
    %c0_112 = arith.constant 0 : index
    %224 = vector.load %arg8[%c1_110, %c0_111, %c0_112] : memref<2x1x128xf32, #tpu.memory_space<vmem>>, vector<1x1x128xf32>
    %225 = vector.shape_cast %224 : vector<1x1x128xf32> to vector<1x128xf32>
    %226 = vector.broadcast %225 : vector<1x128xf32> to vector<16x128xf32>
    %227 = arith.addf %223, %226 : vector<16x128xf32>
    %228 = arith.addf %155, %227 : vector<16x128xf32>
    %c1_113 = arith.constant 1 : index
    %c0_114 = arith.constant 0 : index
    %c0_115 = arith.constant 0 : index
    %229 = vector.load %arg9[%c1_113, %c0_114, %c0_115] : memref<2x1x128xf32, #tpu.memory_space<vmem>>, vector<1x1x128xf32>
    %230 = vector.shape_cast %229 : vector<1x1x128xf32> to vector<1x128xf32>
    %c1_116 = arith.constant 1 : index
    %c0_117 = arith.constant 0 : index
    %c0_118 = arith.constant 0 : index
    %231 = vector.load %arg10[%c1_116, %c0_117, %c0_118] : memref<2x1x128xf32, #tpu.memory_space<vmem>>, vector<1x1x128xf32>
    %232 = vector.shape_cast %231 : vector<1x1x128xf32> to vector<1x128xf32>
    %cst_119 = arith.constant dense<0.000000e+00> : vector<16xf32>
    %233 = vector.multi_reduction <add>, %228, %cst_119 [1] : vector<16x128xf32> to vector<16xf32>
    %234 = vector.shape_cast %233 : vector<16xf32> to vector<16x1xf32>
    %cst_120 = arith.constant 3.125000e-02 : f32
    %235 = vector.broadcast %cst_120 : f32 to vector<16x1xf32>
    %236 = arith.mulf %234, %235 : vector<16x1xf32>
    %237 = vector.broadcast %236 : vector<16x1xf32> to vector<16x128xf32>
    %238 = arith.subf %228, %237 : vector<16x128xf32>
    %239 = arith.mulf %238, %4 : vector<16x128xf32>
    %240 = arith.mulf %239, %239 : vector<16x128xf32>
    %cst_121 = arith.constant dense<0.000000e+00> : vector<16xf32>
    %241 = vector.multi_reduction <add>, %240, %cst_121 [1] : vector<16x128xf32> to vector<16xf32>
    %242 = vector.shape_cast %241 : vector<16xf32> to vector<16x1xf32>
    %cst_122 = arith.constant 3.125000e-02 : f32
    %243 = vector.broadcast %cst_122 : f32 to vector<16x1xf32>
    %244 = arith.mulf %242, %243 : vector<16x1xf32>
    %cst_123 = arith.constant 9.99999974E-6 : f32
    %245 = vector.broadcast %cst_123 : f32 to vector<16x1xf32>
    %246 = arith.addf %244, %245 : vector<16x1xf32>
    %247 = math.rsqrt %246 : vector<16x1xf32>
    %248 = vector.broadcast %247 : vector<16x1xf32> to vector<16x128xf32>
    %249 = arith.mulf %239, %248 : vector<16x128xf32>
    %250 = vector.broadcast %230 : vector<1x128xf32> to vector<16x128xf32>
    %251 = arith.mulf %250, %249 : vector<16x128xf32>
    %252 = vector.broadcast %232 : vector<1x128xf32> to vector<16x128xf32>
    %253 = arith.addf %251, %252 : vector<16x128xf32>
    %254 = arith.truncf %253 : vector<16x128xf32> to vector<16x128xbf16>
    %c1_124 = arith.constant 1 : index
    %c0_125 = arith.constant 0 : index
    %c0_126 = arith.constant 0 : index
    %255 = vector.load %arg11[%c1_124, %c0_125, %c0_126] : memref<2x128x128xbf16, #tpu.memory_space<vmem>>, vector<1x128x128xbf16>
    %256 = vector.shape_cast %255 : vector<1x128x128xbf16> to vector<128x128xbf16>
    %cst_127 = arith.constant dense<0.000000e+00> : vector<16x128xf32>
    %257 = tpu.matmul %254, %256, %cst_127 {dimension_numbers = #tpu.dot_dimension_numbers<[1], [0], [0], [1], [0, 0, 1, 1], [], []>} : vector<16x128xbf16>, vector<128x128xbf16>, vector<16x128xf32> -> vector<16x128xf32>
    %c1_128 = arith.constant 1 : index
    %c0_129 = arith.constant 0 : index
    %c0_130 = arith.constant 0 : index
    %258 = vector.load %arg12[%c1_128, %c0_129, %c0_130] : memref<2x1x128xf32, #tpu.memory_space<vmem>>, vector<1x1x128xf32>
    %259 = vector.shape_cast %258 : vector<1x1x128xf32> to vector<1x128xf32>
    %260 = vector.broadcast %259 : vector<1x128xf32> to vector<16x128xf32>
    %261 = arith.addf %257, %260 : vector<16x128xf32>
    %cst_131 = arith.constant 5.000000e-01 : f32
    %262 = vector.broadcast %cst_131 : f32 to vector<16x128xf32>
    %263 = arith.mulf %262, %261 : vector<16x128xf32>
    %264 = arith.mulf %261, %261 : vector<16x128xf32>
    %265 = arith.mulf %261, %264 : vector<16x128xf32>
    %cst_132 = arith.constant 4.471500e-02 : f32
    %266 = vector.broadcast %cst_132 : f32 to vector<16x128xf32>
    %267 = arith.mulf %266, %265 : vector<16x128xf32>
    %268 = arith.addf %261, %267 : vector<16x128xf32>
    %cst_133 = arith.constant 0.797884583 : f32
    %269 = vector.broadcast %cst_133 : f32 to vector<16x128xf32>
    %270 = arith.mulf %269, %268 : vector<16x128xf32>
    %271 = math.tanh %270 : vector<16x128xf32>
    %cst_134 = arith.constant 1.000000e+00 : f32
    %272 = vector.broadcast %cst_134 : f32 to vector<16x128xf32>
    %273 = arith.addf %272, %271 : vector<16x128xf32>
    %274 = arith.mulf %263, %273 : vector<16x128xf32>
    %275 = arith.truncf %274 : vector<16x128xf32> to vector<16x128xbf16>
    %c1_135 = arith.constant 1 : index
    %c0_136 = arith.constant 0 : index
    %c0_137 = arith.constant 0 : index
    %276 = vector.load %arg13[%c1_135, %c0_136, %c0_137] : memref<2x128x128xbf16, #tpu.memory_space<vmem>>, vector<1x128x128xbf16>
    %277 = vector.shape_cast %276 : vector<1x128x128xbf16> to vector<128x128xbf16>
    %cst_138 = arith.constant dense<0.000000e+00> : vector<16x128xf32>
    %278 = tpu.matmul %275, %277, %cst_138 {dimension_numbers = #tpu.dot_dimension_numbers<[1], [0], [0], [1], [0, 0, 1, 1], [], []>} : vector<16x128xbf16>, vector<128x128xbf16>, vector<16x128xf32> -> vector<16x128xf32>
    %c1_139 = arith.constant 1 : index
    %c0_140 = arith.constant 0 : index
    %c0_141 = arith.constant 0 : index
    %279 = vector.load %arg14[%c1_139, %c0_140, %c0_141] : memref<2x1x128xf32, #tpu.memory_space<vmem>>, vector<1x1x128xf32>
    %280 = vector.shape_cast %279 : vector<1x1x128xf32> to vector<1x128xf32>
    %281 = vector.broadcast %280 : vector<1x128xf32> to vector<16x128xf32>
    %282 = arith.addf %278, %281 : vector<16x128xf32>
    %283 = arith.addf %228, %282 : vector<16x128xf32>
    %c0_142 = arith.constant 0 : index
    %c0_143 = arith.constant 0 : index
    %284 = vector.load %arg15[%c0_142, %c0_143] : memref<1x128xf32, #tpu.memory_space<vmem>>, vector<1x128xf32>
    %c0_144 = arith.constant 0 : index
    %c0_145 = arith.constant 0 : index
    %285 = vector.load %arg16[%c0_144, %c0_145] : memref<1x128xf32, #tpu.memory_space<vmem>>, vector<1x128xf32>
    %cst_146 = arith.constant dense<0.000000e+00> : vector<16xf32>
    %286 = vector.multi_reduction <add>, %283, %cst_146 [1] : vector<16x128xf32> to vector<16xf32>
    %287 = vector.shape_cast %286 : vector<16xf32> to vector<16x1xf32>
    %cst_147 = arith.constant 3.125000e-02 : f32
    %288 = vector.broadcast %cst_147 : f32 to vector<16x1xf32>
    %289 = arith.mulf %287, %288 : vector<16x1xf32>
    %290 = vector.broadcast %289 : vector<16x1xf32> to vector<16x128xf32>
    %291 = arith.subf %283, %290 : vector<16x128xf32>
    %292 = arith.mulf %291, %4 : vector<16x128xf32>
    %293 = arith.mulf %292, %292 : vector<16x128xf32>
    %cst_148 = arith.constant dense<0.000000e+00> : vector<16xf32>
    %294 = vector.multi_reduction <add>, %293, %cst_148 [1] : vector<16x128xf32> to vector<16xf32>
    %295 = vector.shape_cast %294 : vector<16xf32> to vector<16x1xf32>
    %cst_149 = arith.constant 3.125000e-02 : f32
    %296 = vector.broadcast %cst_149 : f32 to vector<16x1xf32>
    %297 = arith.mulf %295, %296 : vector<16x1xf32>
    %cst_150 = arith.constant 9.99999974E-6 : f32
    %298 = vector.broadcast %cst_150 : f32 to vector<16x1xf32>
    %299 = arith.addf %297, %298 : vector<16x1xf32>
    %300 = math.rsqrt %299 : vector<16x1xf32>
    %301 = vector.broadcast %300 : vector<16x1xf32> to vector<16x128xf32>
    %302 = arith.mulf %292, %301 : vector<16x128xf32>
    %303 = vector.broadcast %284 : vector<1x128xf32> to vector<16x128xf32>
    %304 = arith.mulf %303, %302 : vector<16x128xf32>
    %305 = vector.broadcast %285 : vector<1x128xf32> to vector<16x128xf32>
    %306 = arith.addf %304, %305 : vector<16x128xf32>
    %307 = arith.truncf %306 : vector<16x128xf32> to vector<16x128xbf16>
    %c0_151 = arith.constant 0 : index
    %c0_152 = arith.constant 0 : index
    %308 = vector.load %arg17[%c0_151, %c0_152] : memref<128x128xbf16, #tpu.memory_space<vmem>>, vector<128x128xbf16>
    %cst_153 = arith.constant dense<0.000000e+00> : vector<16x128xf32>
    %309 = tpu.matmul %307, %308, %cst_153 {dimension_numbers = #tpu.dot_dimension_numbers<[1], [0], [0], [1], [0, 0, 1, 1], [], []>} : vector<16x128xbf16>, vector<128x128xbf16>, vector<16x128xf32> -> vector<16x128xf32>
    %c0_154 = arith.constant 0 : index
    %c0_155 = arith.constant 0 : index
    %310 = vector.load %arg18[%c0_154, %c0_155] : memref<16x128xf32, #tpu.memory_space<vmem>>, vector<16x128xf32>
    tpu.vector_store %arg18[%c0_154, %c0_155], %309 {strides = array<i32>} : memref<16x128xf32, #tpu.memory_space<vmem>>, vector<16x128xf32>,
    return
  }
}

</mosaic_0001>

<llo_original>
// kernel: gpt_forward.1
$region0: #{gpt_forward.1}
  #allocation0 [shape = 'u32[]', space=smem, size = 0x4, offset = 0x4, fixed_abs, tag = 'smem constant byte address 0x4 - core index']
  #allocation1 [shape = 'u32[72,128]{1,0:T(1,128)}', space=vmem, size = 0x9000, scoped, tag = 'internal scratch']
  %s0 = inlined_call_operand.vmem [shape: s32[16,1], index: 0, kind: input, shape index: {}]
  %s1 = inlined_call_operand.vmem [shape: bf16[128,128], index: 1, kind: input, shape index: {}]
  %s2 = inlined_call_operand.vmem [shape: f32[2,1,128], index: 2, kind: input, shape index: {}]
  %s3 = inlined_call_operand.vmem [shape: f32[2,1,128], index: 3, kind: input, shape index: {}]
  %s4 = inlined_call_operand.vmem [shape: bf16[2,4,128,8], index: 4, kind: input, shape index: {}]
  %s5 = inlined_call_operand.vmem [shape: bf16[2,4,128,8], index: 5, kind: input, shape index: {}]
  %s6 = inlined_call_operand.vmem [shape: bf16[2,4,128,8], index: 6, kind: input, shape index: {}]
  %s7 = inlined_call_operand.vmem [shape: bf16[2,4,8,128], index: 7, kind: input, shape index: {}]
  %s8 = inlined_call_operand.vmem [shape: f32[2,1,128], index: 8, kind: input, shape index: {}]
  %s9 = inlined_call_operand.vmem [shape: f32[2,1,128], index: 9, kind: input, shape index: {}]
  %s10 = inlined_call_operand.vmem [shape: f32[2,1,128], index: 10, kind: input, shape index: {}]
  %s11 = inlined_call_operand.vmem [shape: bf16[2,128,128], index: 11, kind: input, shape index: {}]
  %s12 = inlined_call_operand.vmem [shape: f32[2,1,128], index: 12, kind: input, shape index: {}]
  %s13 = inlined_call_operand.vmem [shape: bf16[2,128,128], index: 13, kind: input, shape index: {}]
  %s14 = inlined_call_operand.vmem [shape: f32[2,1,128], index: 14, kind: input, shape index: {}]
  %s15 = inlined_call_operand.vmem [shape: f32[1,128], index: 15, kind: input, shape index: {}]
  %s16 = inlined_call_operand.vmem [shape: f32[1,128], index: 16, kind: input, shape index: {}]
  %s17 = inlined_call_operand.vmem [shape: bf16[128,128], index: 17, kind: input, shape index: {}]
  %s18 = inlined_call_operand.hbm [shape: f32[16,128], index: 18, kind: output, shape index: {}]
  %s19 = sld [smem:[#allocation0]]
  $region82: #{gpt_forward.1} parent=0
    _
  %s21 = ssub.s32 1, %s19
  %s22 = scalar_select 0, %s21, %s19
  $region1: #{gpt_forward.1} parent=0
    #allocation2 [shape = 'u8[8192]{0}', space=vmem, size = 0x2000, scoped, tag = 'output window, operand 0, single buffered']
    #allocation3 [shape = 's32[1]{0}', space=sflag, size = 0x4, scoped, tag = 'scoped memory for gpt_forward.1']
    %23 = vsyncpa [#allocation3], 0
    // Predicated region
    $region2: #{gpt_forward.1} parent=1 // pred_check
      _
    $region3: #{gpt_forward.1} parent=1 // pred_check_branch
      %25 = sbr.rel (0) target = $region5
    $region4: #{gpt_forward.1} parent=1 // pred_region
      _
    $region5: #{gpt_forward.1} parent=1 // pred_fallthru
      _
    // Predicated region
    $region6: #{gpt_forward.1} parent=1 // pred_check
      _
    $region7: #{gpt_forward.1} parent=1 // pred_check_branch
      %27 = sbr.rel (0) target = $region9
    $region8: #{gpt_forward.1} parent=1 // pred_region
      _
    $region9: #{gpt_forward.1} parent=1 // pred_fallthru
      _
    // Predicated region
    $region10: #{gpt_forward.1} parent=1 // pred_check
      _
    $region11: #{gpt_forward.1} parent=1 // pred_check_branch
      %29 = sbr.rel (0) target = $region13
    $region12: #{gpt_forward.1} parent=1 // pred_region
      _
    $region13: #{gpt_forward.1} parent=1 // pred_fallthru
      _
    // Predicated region
    $region14: #{gpt_forward.1} parent=1 // pred_check
      _
    $region15: #{gpt_forward.1} parent=1 // pred_check_branch
      %31 = sbr.rel (0) target = $region17
    $region16: #{gpt_forward.1} parent=1 // pred_region
      _
    $region17: #{gpt_forward.1} parent=1 // pred_fallthru
      _
    // Predicated region
    $region18: #{gpt_forward.1} parent=1 // pred_check
      _
    $region19: #{gpt_forward.1} parent=1 // pred_check_branch
      %33 = sbr.rel (0) target = $region21
    $region20: #{gpt_forward.1} parent=1 // pred_region
      _
    $region21: #{gpt_forward.1} parent=1 // pred_fallthru
      _
    // Predicated region
    $region22: #{gpt_forward.1} parent=1 // pred_check
      _
    $region23: #{gpt_forward.1} parent=1 // pred_check_branch
      %35 = sbr.rel (0) target = $region25
    $region24: #{gpt_forward.1} parent=1 // pred_region
      _
    $region25: #{gpt_forward.1} parent=1 // pred_fallthru
      _
    // Predicated region
    $region26: #{gpt_forward.1} parent=1 // pred_check
      _
    $region27: #{gpt_forward.1} parent=1 // pred_check_branch
      %37 = sbr.rel (0) target = $region29
    $region28: #{gpt_forward.1} parent=1 // pred_region
      _
    $region29: #{gpt_forward.1} parent=1 // pred_fallthru
      _
    // Predicated region
    $region30: #{gpt_forward.1} parent=1 // pred_check
      _
    $region31: #{gpt_forward.1} parent=1 // pred_check_branch
      %39 = sbr.rel (0) target = $region33
    $region32: #{gpt_forward.1} parent=1 // pred_region
      _
    $region33: #{gpt_forward.1} parent=1 // pred_fallthru
      _
    // Predicated region
    $region34: #{gpt_forward.1} parent=1 // pred_check
      _
    $region35: #{gpt_forward.1} parent=1 // pred_check_branch
      %41 = sbr.rel (0) target = $region37
    $region36: #{gpt_forward.1} parent=1 // pred_region
      _
    $region37: #{gpt_forward.1} parent=1 // pred_fallthru
      _
    // Predicated region
    $region38: #{gpt_forward.1} parent=1 // pred_check
      _
    $region39: #{gpt_forward.1} parent=1 // pred_check_branch
      %43 = sbr.rel (0) target = $region41
    $region40: #{gpt_forward.1} parent=1 // pred_region
      _
    $region41: #{gpt_forward.1} parent=1 // pred_fallthru
      _
    // Predicated region
    $region42: #{gpt_forward.1} parent=1 // pred_check
      _
    $region43: #{gpt_forward.1} parent=1 // pred_check_branch
      %45 = sbr.rel (0) target = $region45
    $region44: #{gpt_forward.1} parent=1 // pred_region
      _
    $region45: #{gpt_forward.1} parent=1 // pred_fallthru
      _
    // Predicated region
    $region46: #{gpt_forward.1} parent=1 // pred_check
      _
    $region47: #{gpt_forward.1} parent=1 // pred_check_branch
      %47 = sbr.rel (0) target = $region49
    $region48: #{gpt_forward.1} parent=1 // pred_region
      _
    $region49: #{gpt_forward.1} parent=1 // pred_fallthru
      _
    // Predicated region
    $region50: #{gpt_forward.1} parent=1 // pred_check
      _
    $region51: #{gpt_forward.1} parent=1 // pred_check_branch
      %49 = sbr.rel (0) target = $region53
    $region52: #{gpt_forward.1} parent=1 // pred_region
      _
    $region53: #{gpt_forward.1} parent=1 // pred_fallthru
      _
    // Predicated region
    $region54: #{gpt_forward.1} parent=1 // pred_check
      _
    $region55: #{gpt_forward.1} parent=1 // pred_check_branch
      %51 = sbr.rel (0) target = $region57
    $region56: #{gpt_forward.1} parent=1 // pred_region
      _
    $region57: #{gpt_forward.1} parent=1 // pred_fallthru
      _
    // Predicated region
    $region58: #{gpt_forward.1} parent=1 // pred_check
      _
    $region59: #{gpt_forward.1} parent=1 // pred_check_branch
      %53 = sbr.rel (0) target = $region61
    $region60: #{gpt_forward.1} parent=1 // pred_region
      _
    $region61: #{gpt_forward.1} parent=1 // pred_fallthru
      _
    // Predicated region
    $region62: #{gpt_forward.1} parent=1 // pred_check
      _
    $region63: #{gpt_forward.1} parent=1 // pred_check_branch
      %55 = sbr.rel (0) target = $region65
    $region64: #{gpt_forward.1} parent=1 // pred_region
      _
    $region65: #{gpt_forward.1} parent=1 // pred_fallthru
      _
    // Predicated region
    $region66: #{gpt_forward.1} parent=1 // pred_check
      _
    $region67: #{gpt_forward.1} parent=1 // pred_check_branch
      %57 = sbr.rel (0) target = $region69
    $region68: #{gpt_forward.1} parent=1 // pred_region
      _
    $region69: #{gpt_forward.1} parent=1 // pred_fallthru
      _
    // Predicated region
    $region70: #{gpt_forward.1} parent=1 // pred_check
      _
    $region71: #{gpt_forward.1} parent=1 // pred_check_branch
      %59 = sbr.rel (0) target = $region73
    $region72: #{gpt_forward.1} parent=1 // pred_region
      _
    $region73: #{gpt_forward.1} parent=1 // pred_fallthru
      _
    %v61 = vlaneseq
    %v62 = vand.u32 %v61, 127
    %vm63 = vcmp.lt.s32.totalorder %v62, 32
    %v64 = vsel %vm63, 1, 0
    %v65 = vcvt.s32.f32 %v64
    %v66 = vld [vmem:[%s0] sm:$0xff]
    %v67 = vld [vmem:[%s0 + $0x8] sm:$0xff]
    %68 = vset.pattern.permute.xlu0 0
    %69 = vperm.xlu0 %68, %v66
    %v70 = vpop.permute.xlu0 %69
    %71 = vset.pattern.permute.xlu0 0
    %72 = vperm.xlu0 %71, %v67
    %v73 = vpop.permute.xlu0 %72
    %vm74 = vcmp.eq.s32.totalorder %v62, %v70
    %vm75 = vcmp.eq.s32.totalorder %v62, %v73
    %v76 = vsel %vm74, 1, 0
    %v77 = vsel %vm75, 1, 0
    %v78 = vcvt.s32.f32 %v76
    %v79 = vcvt.s32.f32 %v77
    %v80 = vlaneseq
    %v81 = vshrl.u32 %v80, 7
    %v82 = vadd.s32 %v81, 64
    %vm83 = vcmp.eq.s32.totalorder %v62, %v82
    %v84 = vsel %vm83, 1, 0
    %v85 = vcvt.s32.f32 %v84
    %v86 = vadd.f32 %v78, %v85
    %v87 = vadd.f32 %v79, %v85
    %v88 = vpack.c.bf16 %v87, %v86
    %v89 = vld [vmem:[%s1] sm:$0xf]
    %v90 = vld [vmem:[%s1 + $0x4] sm:$0xf]
    %v91 = vld [vmem:[%s1 + $0x8] sm:$0xf]
    %v92 = vld [vmem:[%s1 + $0xc] sm:$0xf]
    %v93 = vld [vmem:[%s1 + $0x10] sm:$0xf]
    %v94 = vld [vmem:[%s1 + $0x14] sm:$0xf]
    %v95 = vld [vmem:[%s1 + $0x18] sm:$0xf]
    %v96 = vld [vmem:[%s1 + $0x1c] sm:$0xf]
    %v97 = vld [vmem:[%s1 + $0x20] sm:$0xf]
    %v98 = vld [vmem:[%s1 + $0x24] sm:$0xf]
    %v99 = vld [vmem:[%s1 + $0x28] sm:$0xf]
    %v100 = vld [vmem:[%s1 + $0x2c] sm:$0xf]
    %v101 = vld [vmem:[%s1 + $0x30] sm:$0xf]
    %v102 = vld [vmem:[%s1 + $0x34] sm:$0xf]
    %v103 = vld [vmem:[%s1 + $0x38] sm:$0xf]
    %v104 = vld [vmem:[%s1 + $0x3c] sm:$0xf]
    %v121 = vunpack.c.l.b16 %v89
    %v122 = vunpack.c.l.b16 %v90
    %v123 = vunpack.c.l.b16 %v91
    %v124 = vunpack.c.l.b16 %v92
    %v125 = vunpack.c.l.b16 %v93
    %v126 = vunpack.c.l.b16 %v94
    %v127 = vunpack.c.l.b16 %v95
    %v128 = vunpack.c.l.b16 %v96
    %v129 = vunpack.c.l.b16 %v97
    %v130 = vunpack.c.l.b16 %v98
    %v131 = vunpack.c.l.b16 %v99
    %v132 = vunpack.c.l.b16 %v100
    %v133 = vunpack.c.l.b16 %v101
    %v134 = vunpack.c.l.b16 %v102
    %v135 = vunpack.c.l.b16 %v103
    %v136 = vunpack.c.l.b16 %v104
    %v137 = vpack.c.b16 %v122, %v121
    %v138 = vpack.c.b16 %v124, %v123
    %v139 = vpack.c.b16 %v126, %v125
    %v140 = vpack.c.b16 %v128, %v127
    %v141 = vpack.c.b16 %v130, %v129
    %v142 = vpack.c.b16 %v132, %v131
    %v143 = vpack.c.b16 %v134, %v133
    %v144 = vpack.c.b16 %v136, %v135
    %153 = vmatpush.bf16.msra.mxu0 %v144
    %154 = vmatpush.bf16.msra.mxu0 %v143
    %155 = vmatpush.bf16.msra.mxu0 %v142
    %156 = vmatpush.bf16.msra.mxu0 %v141
    %157 = vmatpush.bf16.msra.mxu0 %v140
    %158 = vmatpush.bf16.msra.mxu0 %v139
    %159 = vmatpush.bf16.msra.mxu0 %v138
    %160 = vmatpush.bf16.msra.mxu0 %v137
    %161 = vmatmul.bf16.gmra.mxu0 %v88
    %v162 = vpop.f32.mrf.mxu0
    %v163 = vadd.f32 0.0, %v162
    %v164 = vpop.f32.mrf.mxu0
    %v165 = vadd.f32 0.0, %v164
    %166 = vdwg.mxu0
    %vm167 = vcmp.gt.s32.totalorder %v62, %v81
    %v168 = vsel %vm167, -1e+30, 0.0
    %v169 = vld [vmem:[%s2] sm:$0x1]
    %v170 = vld [vmem:[%s3] sm:$0x1]
    %171 = vadd.xlane.f32.xlu0 %v163
    %v172 = vpop.xlane.xlu0 %171
    %173 = vadd.xlane.f32.xlu0 %v165
    %v174 = vpop.xlane.xlu0 %173
    %v175 = vmul.f32 %v172, 0.03125
    %v176 = vmul.f32 %v174, 0.03125
    %v177 = vsub.f32 %v163, %v175
    %v178 = vsub.f32 %v165, %v176
    %v179 = vmul.f32 %v177, %v65
    %v180 = vmul.f32 %v178, %v65
    %v181 = vmul.f32 %v179, %v179
    %v182 = vmul.f32 %v180, %v180
    %183 = vadd.xlane.f32.xlu0 %v181
    %v184 = vpop.xlane.xlu0 %183
    %185 = vadd.xlane.f32.xlu0 %v182
    %v186 = vpop.xlane.xlu0 %185
    %v187 = vmul.f32 %v184, 0.03125
    %v188 = vmul.f32 %v186, 0.03125
    %v189 = vadd.f32 %v187, 1e-05
    %v190 = vadd.f32 %v188, 1e-05
    %v191 = vrsqrt.pop %v189
    %v192 = vmul.f32 %v191, %v189
    %v193 = vmul.f32 %v192, %v191
    %v194 = vmul.f32 0.5, %v193
    %v195 = vsub.f32 1.5, %v194
    %v196 = vmul.f32 %v191, %v195
    %vm197 = vweird.f32 %v189
    %vm198 = vweird.f32 %v191
    %vm199 = vmor %vm197, %vm198
    %v200 = vsel %vm199, %v191, %v196
    %v201 = vrsqrt.pop %v190
    %v202 = vmul.f32 %v201, %v190
    %v203 = vmul.f32 %v202, %v201
    %v204 = vmul.f32 0.5, %v203
    %v205 = vsub.f32 1.5, %v204
    %v206 = vmul.f32 %v201, %v205
    %vm207 = vweird.f32 %v190
    %vm208 = vweird.f32 %v201
    %vm209 = vmor %vm207, %vm208
    %v210 = vsel %vm209, %v201, %v206
    %v211 = vmul.f32 %v179, %v200
    %v212 = vmul.f32 %v180, %v210
    %v214 = vperm.slane %v169, 0
    %v216 = vmul.f32 %v214, %v211
    %v217 = vmul.f32 %v214, %v212
    %v219 = vperm.slane %v170, 0
    %v221 = vadd.f32 %v216, %v219
    %v222 = vadd.f32 %v217, %v219
    %v223 = vpack.c.bf16 %v221, %v221
    %v224 = vpack.c.bf16 %v222, %v222
    %v225 = vld [vmem:[%s4] sm:$0xf]
    %v226 = vld [vmem:[%s4 + $0x4] sm:$0xf]
    %v227 = vld [vmem:[%s4 + $0x8] sm:$0xf]
    %v228 = vld [vmem:[%s4 + $0xc] sm:$0xf]
    %v229 = vld [vmem:[%s4 + $0x10] sm:$0xf]
    %v230 = vld [vmem:[%s4 + $0x14] sm:$0xf]
    %v231 = vld [vmem:[%s4 + $0x18] sm:$0xf]
    %v232 = vld [vmem:[%s4 + $0x1c] sm:$0xf]
    %v233 = vld [vmem:[%s4 + $0x20] sm:$0xf]
    %v234 = vld [vmem:[%s4 + $0x24] sm:$0xf]
    %v235 = vld [vmem:[%s4 + $0x28] sm:$0xf]
    %v236 = vld [vmem:[%s4 + $0x2c] sm:$0xf]
    %v237 = vld [vmem:[%s4 + $0x30] sm:$0xf]
    %v238 = vld [vmem:[%s4 + $0x34] sm:$0xf]
    %v239 = vld [vmem:[%s4 + $0x38] sm:$0xf]
    %v240 = vld [vmem:[%s4 + $0x3c] sm:$0xf]
    %v241 = vld [vmem:[%s4 + $0x40] sm:$0xf]
    %v242 = vld [vmem:[%s4 + $0x44] sm:$0xf]
    %v243 = vld [vmem:[%s4 + $0x48] sm:$0xf]
    %v244 = vld [vmem:[%s4 + $0x4c] sm:$0xf]
    %v245 = vld [vmem:[%s4 + $0x50] sm:$0xf]
    %v246 = vld [vmem:[%s4 + $0x54] sm:$0xf]
    %v247 = vld [vmem:[%s4 + $0x58] sm:$0xf]
    %v248 = vld [vmem:[%s4 + $0x5c] sm:$0xf]
    %v249 = vld [vmem:[%s4 + $0x60] sm:$0xf]
    %v250 = vld [vmem:[%s4 + $0x64] sm:$0xf]
    %v251 = vld [vmem:[%s4 + $0x68] sm:$0xf]
    %v252 = vld [vmem:[%s4 + $0x6c] sm:$0xf]
    %v253 = vld [vmem:[%s4 + $0x70] sm:$0xf]
    %v254 = vld [vmem:[%s4 + $0x74] sm:$0xf]
    %v255 = vld [vmem:[%s4 + $0x78] sm:$0xf]
    %v256 = vld [vmem:[%s4 + $0x7c] sm:$0xf]
    %v257 = vld [vmem:[%s4 + $0x80] sm:$0xf]
    %v258 = vld [vmem:[%s4 + $0x84] sm:$0xf]
    %v259 = vld [vmem:[%s4 + $0x88] sm:$0xf]
    %v260 = vld [vmem:[%s4 + $0x8c] sm:$0xf]
    %v261 = vld [vmem:[%s4 + $0x90] sm:$0xf]
    %v262 = vld [vmem:[%s4 + $0x94] sm:$0xf]
    %v263 = vld [vmem:[%s4 + $0x98] sm:$0xf]
    %v264 = vld [vmem:[%s4 + $0x9c] sm:$0xf]
    %v265 = vld [vmem:[%s4 + $0xa0] sm:$0xf]
    %v266 = vld [vmem:[%s4 + $0xa4] sm:$0xf]
    %v267 = vld [vmem:[%s4 + $0xa8] sm:$0xf]
    %v268 = vld [vmem:[%s4 + $0xac] sm:$0xf]
    %v269 = vld [vmem:[%s4 + $0xb0] sm:$0xf]
    %v270 = vld [vmem:[%s4 + $0xb4] sm:$0xf]
    %v271 = vld [vmem:[%s4 + $0xb8] sm:$0xf]
    %v272 = vld [vmem:[%s4 + $0xbc] sm:$0xf]
    %v273 = vld [vmem:[%s4 + $0xc0] sm:$0xf]
    %v274 = vld [vmem:[%s4 + $0xc4] sm:$0xf]
    %v275 = vld [vmem:[%s4 + $0xc8] sm:$0xf]
    %v276 = vld [vmem:[%s4 + $0xcc] sm:$0xf]
    %v277 = vld [vmem:[%s4 + $0xd0] sm:$0xf]
    %v278 = vld [vmem:[%s4 + $0xd4] sm:$0xf]
    %v279 = vld [vmem:[%s4 + $0xd8] sm:$0xf]
    %v280 = vld [vmem:[%s4 + $0xdc] sm:$0xf]
    %v281 = vld [vmem:[%s4 + $0xe0] sm:$0xf]
    %v282 = vld [vmem:[%s4 + $0xe4] sm:$0xf]
    %v283 = vld [vmem:[%s4 + $0xe8] sm:$0xf]
    %v284 = vld [vmem:[%s4 + $0xec] sm:$0xf]
    %v285 = vld [vmem:[%s4 + $0xf0] sm:$0xf]
    %v286 = vld [vmem:[%s4 + $0xf4] sm:$0xf]
    %v287 = vld [vmem:[%s4 + $0xf8] sm:$0xf]
    %v288 = vld [vmem:[%s4 + $0xfc] sm:$0xf]
    %v291 = vunpack.c.l.b16 %v223
    %v292 = vunpack.c.l.b16 %v224
    %v293 = vpack.c.b16 %v292, %v291
    %v311 = vunpack.c.l.b16 %v225
    %v312 = vunpack.c.l.b16 %v226
    %v313 = vunpack.c.l.b16 %v227
    %v314 = vunpack.c.l.b16 %v228
    %v315 = vunpack.c.l.b16 %v229
    %v316 = vunpack.c.l.b16 %v230
    %v317 = vunpack.c.l.b16 %v231
    %v318 = vunpack.c.l.b16 %v232
    %v319 = vunpack.c.l.b16 %v233
    %v320 = vunpack.c.l.b16 %v234
    %v321 = vunpack.c.l.b16 %v235
    %v322 = vunpack.c.l.b16 %v236
    %v323 = vunpack.c.l.b16 %v237
    %v324 = vunpack.c.l.b16 %v238
    %v325 = vunpack.c.l.b16 %v239
    %v326 = vunpack.c.l.b16 %v240
    %v327 = vpack.c.b16 %v312, %v311
    %v328 = vpack.c.b16 %v314, %v313
    %v329 = vpack.c.b16 %v316, %v315
    %v330 = vpack.c.b16 %v318, %v317
    %v331 = vpack.c.b16 %v320, %v319
    %v332 = vpack.c.b16 %v322, %v321
    %v333 = vpack.c.b16 %v324, %v323
    %v334 = vpack.c.b16 %v326, %v325
    %343 = vmatpush.bf16.msra.mxu0 %v334
    %344 = vmatpush.bf16.msra.mxu0 %v333
    %345 = vmatpush.bf16.msra.mxu0 %v332
    %346 = vmatpush.bf16.msra.mxu0 %v331
    %347 = vmatpush.bf16.msra.mxu0 %v330
    %348 = vmatpush.bf16.msra.mxu0 %v329
    %349 = vmatpush.bf16.msra.mxu0 %v328
    %350 = vmatpush.bf16.msra.mxu0 %v327
    %351 = vmatmul.bf16.gmra.mxu0 %v293
    %v352 = vpop.f32.mrf.mxu0
    %v353 = vadd.f32 0.0, %v352
    %v354 = vpop.f32.mrf.mxu0
    %v355 = vadd.f32 0.0, %v354
    %356 = vdwg.mxu0
    %v373 = vunpack.c.l.b16 %v241
    %v374 = vunpack.c.l.b16 %v242
    %v375 = vunpack.c.l.b16 %v243
    %v376 = vunpack.c.l.b16 %v244
    %v377 = vunpack.c.l.b16 %v245
    %v378 = vunpack.c.l.b16 %v246
    %v379 = vunpack.c.l.b16 %v247
    %v380 = vunpack.c.l.b16 %v248
    %v381 = vunpack.c.l.b16 %v249
    %v382 = vunpack.c.l.b16 %v250
    %v383 = vunpack.c.l.b16 %v251
    %v384 = vunpack.c.l.b16 %v252
    %v385 = vunpack.c.l.b16 %v253
    %v386 = vunpack.c.l.b16 %v254
    %v387 = vunpack.c.l.b16 %v255
    %v388 = vunpack.c.l.b16 %v256
    %v389 = vpack.c.b16 %v374, %v373
    %v390 = vpack.c.b16 %v376, %v375
    %v391 = vpack.c.b16 %v378, %v377
    %v392 = vpack.c.b16 %v380, %v379
    %v393 = vpack.c.b16 %v382, %v381
    %v394 = vpack.c.b16 %v384, %v383
    %v395 = vpack.c.b16 %v386, %v385
    %v396 = vpack.c.b16 %v388, %v387
    %405 = vmatpush.bf16.msra.mxu0 %v396
    %406 = vmatpush.bf16.msra.mxu0 %v395
    %407 = vmatpush.bf16.msra.mxu0 %v394
    %408 = vmatpush.bf16.msra.mxu0 %v393
    %409 = vmatpush.bf16.msra.mxu0 %v392
    %410 = vmatpush.bf16.msra.mxu0 %v391
    %411 = vmatpush.bf16.msra.mxu0 %v390
    %412 = vmatpush.bf16.msra.mxu0 %v389
    %413 = vmatmul.bf16.gmra.mxu0 %v293
    %v414 = vpop.f32.mrf.mxu0
    %v415 = vadd.f32 0.0, %v414
    %v416 = vpop.f32.mrf.mxu0
    %v417 = vadd.f32 0.0, %v416
    %418 = vdwg.mxu0
    %v435 = vunpack.c.l.b16 %v257
    %v436 = vunpack.c.l.b16 %v258
    %v437 = vunpack.c.l.b16 %v259
    %v438 = vunpack.c.l.b16 %v260
    %v439 = vunpack.c.l.b16 %v261
    %v440 = vunpack.c.l.b16 %v262
    %v441 = vunpack.c.l.b16 %v263
    %v442 = vunpack.c.l.b16 %v264
    %v443 = vunpack.c.l.b16 %v265
    %v444 = vunpack.c.l.b16 %v266
    %v445 = vunpack.c.l.b16 %v267
    %v446 = vunpack.c.l.b16 %v268
    %v447 = vunpack.c.l.b16 %v269
    %v448 = vunpack.c.l.b16 %v270
    %v449 = vunpack.c.l.b16 %v271
    %v450 = vunpack.c.l.b16 %v272
    %v451 = vpack.c.b16 %v436, %v435
    %v452 = vpack.c.b16 %v438, %v437
    %v453 = vpack.c.b16 %v440, %v439
    %v454 = vpack.c.b16 %v442, %v441
    %v455 = vpack.c.b16 %v444, %v443
    %v456 = vpack.c.b16 %v446, %v445
    %v457 = vpack.c.b16 %v448, %v447
    %v458 = vpack.c.b16 %v450, %v449
    %467 = vmatpush.bf16.msra.mxu0 %v458
    %468 = vmatpush.bf16.msra.mxu0 %v457
    %469 = vmatpush.bf16.msra.mxu0 %v456
    %470 = vmatpush.bf16.msra.mxu0 %v455
    %471 = vmatpush.bf16.msra.mxu0 %v454
    %472 = vmatpush.bf16.msra.mxu0 %v453
    %473 = vmatpush.bf16.msra.mxu0 %v452
    %474 = vmatpush.bf16.msra.mxu0 %v451
    %475 = vmatmul.bf16.gmra.mxu0 %v293
    %v476 = vpop.f32.mrf.mxu0
    %v477 = vadd.f32 0.0, %v476
    %v478 = vpop.f32.mrf.mxu0
    %v479 = vadd.f32 0.0, %v478
    %480 = vdwg.mxu0
    %v497 = vunpack.c.l.b16 %v273
    %v498 = vunpack.c.l.b16 %v274
    %v499 = vunpack.c.l.b16 %v275
    %v500 = vunpack.c.l.b16 %v276
    %v501 = vunpack.c.l.b16 %v277
    %v502 = vunpack.c.l.b16 %v278
    %v503 = vunpack.c.l.b16 %v279
    %v504 = vunpack.c.l.b16 %v280
    %v505 = vunpack.c.l.b16 %v281
    %v506 = vunpack.c.l.b16 %v282
    %v507 = vunpack.c.l.b16 %v283
    %v508 = vunpack.c.l.b16 %v284
    %v509 = vunpack.c.l.b16 %v285
    %v510 = vunpack.c.l.b16 %v286
    %v511 = vunpack.c.l.b16 %v287
    %v512 = vunpack.c.l.b16 %v288
    %v513 = vpack.c.b16 %v498, %v497
    %v514 = vpack.c.b16 %v500, %v499
    %v515 = vpack.c.b16 %v502, %v501
    %v516 = vpack.c.b16 %v504, %v503
    %v517 = vpack.c.b16 %v506, %v505
    %v518 = vpack.c.b16 %v508, %v507
    %v519 = vpack.c.b16 %v510, %v509
    %v520 = vpack.c.b16 %v512, %v511
    %529 = vmatpush.bf16.msra.mxu0 %v520
    %530 = vmatpush.bf16.msra.mxu0 %v519
    %531 = vmatpush.bf16.msra.mxu0 %v518
    %532 = vmatpush.bf16.msra.mxu0 %v517
    %533 = vmatpush.bf16.msra.mxu0 %v516
    %534 = vmatpush.bf16.msra.mxu0 %v515
    %535 = vmatpush.bf16.msra.mxu0 %v514
    %536 = vmatpush.bf16.msra.mxu0 %v513
    %537 = vmatmul.bf16.gmra.mxu0 %v293
    %v538 = vpop.f32.mrf.mxu0
    %v539 = vadd.f32 0.0, %v538
    %v540 = vpop.f32.mrf.mxu0
    %v541 = vadd.f32 0.0, %v540
    %542 = vdwg.mxu0
    %v543 = vld [vmem:[%s5] sm:$0xf]
    %v544 = vld [vmem:[%s5 + $0x4] sm:$0xf]
    %v545 = vld [vmem:[%s5 + $0x8] sm:$0xf]
    %v546 = vld [vmem:[%s5 + $0xc] sm:$0xf]
    %v547 = vld [vmem:[%s5 + $0x10] sm:$0xf]
    %v548 = vld [vmem:[%s5 + $0x14] sm:$0xf]
    %v549 = vld [vmem:[%s5 + $0x18] sm:$0xf]
    %v550 = vld [vmem:[%s5 + $0x1c] sm:$0xf]
    %v551 = vld [vmem:[%s5 + $0x20] sm:$0xf]
    %v552 = vld [vmem:[%s5 + $0x24] sm:$0xf]
    %v553 = vld [vmem:[%s5 + $0x28] sm:$0xf]
    %v554 = vld [vmem:[%s5 + $0x2c] sm:$0xf]
    %v555 = vld [vmem:[%s5 + $0x30] sm:$0xf]
    %v556 = vld [vmem:[%s5 + $0x34] sm:$0xf]
    %v557 = vld [vmem:[%s5 + $0x38] sm:$0xf]
    %v558 = vld [vmem:[%s5 + $0x3c] sm:$0xf]
    %v559 = vld [vmem:[%s5 + $0x40] sm:$0xf]
    %v560 = vld [vmem:[%s5 + $0x44] sm:$0xf]
    %v561 = vld [vmem:[%s5 + $0x48] sm:$0xf]
    %v562 = vld [vmem:[%s5 + $0x4c] sm:$0xf]
    %v563 = vld [vmem:[%s5 + $0x50] sm:$0xf]
    %v564 = vld [vmem:[%s5 + $0x54] sm:$0xf]
    %v565 = vld [vmem:[%s5 + $0x58] sm:$0xf]
    %v566 = vld [vmem:[%s5 + $0x5c] sm:$0xf]
    %v567 = vld [vmem:[%s5 + $0x60] sm:$0xf]
    %v568 = vld [vmem:[%s5 + $0x64] sm:$0xf]
    %v569 = vld [vmem:[%s5 + $0x68] sm:$0xf]
    %v570 = vld [vmem:[%s5 + $0x6c] sm:$0xf]
    %v571 = vld [vmem:[%s5 + $0x70] sm:$0xf]
    %v572 = vld [vmem:[%s5 + $0x74] sm:$0xf]
    %v573 = vld [vmem:[%s5 + $0x78] sm:$0xf]
    %v574 = vld [vmem:[%s5 + $0x7c] sm:$0xf]
    %v575 = vld [vmem:[%s5 + $0x80] sm:$0xf]
    %v576 = vld [vmem:[%s5 + $0x84] sm:$0xf]
    %v577 = vld [vmem:[%s5 + $0x88] sm:$0xf]
    %v578 = vld [vmem:[%s5 + $0x8c] sm:$0xf]
    %v579 = vld [vmem:[%s5 + $0x90] sm:$0xf]
    %v580 = vld [vmem:[%s5 + $0x94] sm:$0xf]
    %v581 = vld [vmem:[%s5 + $0x98] sm:$0xf]
    %v582 = vld [vmem:[%s5 + $0x9c] sm:$0xf]
    %v583 = vld [vmem:[%s5 + $0xa0] sm:$0xf]
    %v584 = vld [vmem:[%s5 + $0xa4] sm:$0xf]
    %v585 = vld [vmem:[%s5 + $0xa8] sm:$0xf]
    %v586 = vld [vmem:[%s5 + $0xac] sm:$0xf]
    %v587 = vld [vmem:[%s5 + $0xb0] sm:$0xf]
    %v588 = vld [vmem:[%s5 + $0xb4] sm:$0xf]
    %v589 = vld [vmem:[%s5 + $0xb8] sm:$0xf]
    %v590 = vld [vmem:[%s5 + $0xbc] sm:$0xf]
    %v591 = vld [vmem:[%s5 + $0xc0] sm:$0xf]
    %v592 = vld [vmem:[%s5 + $0xc4] sm:$0xf]
    %v593 = vld [vmem:[%s5 + $0xc8] sm:$0xf]
    %v594 = vld [vmem:[%s5 + $0xcc] sm:$0xf]
    %v595 = vld [vmem:[%s5 + $0xd0] sm:$0xf]
    %v596 = vld [vmem:[%s5 + $0xd4] sm:$0xf]
    %v597 = vld [vmem:[%s5 + $0xd8] sm:$0xf]
    %v598 = vld [vmem:[%s5 + $0xdc] sm:$0xf]
    %v599 = vld [vmem:[%s5 + $0xe0] sm:$0xf]
    %v600 = vld [vmem:[%s5 + $0xe4] sm:$0xf]
    %v601 = vld [vmem:[%s5 + $0xe8] sm:$0xf]
    %v602 = vld [vmem:[%s5 + $0xec] sm:$0xf]
    %v603 = vld [vmem:[%s5 + $0xf0] sm:$0xf]
    %v604 = vld [vmem:[%s5 + $0xf4] sm:$0xf]
    %v605 = vld [vmem:[%s5 + $0xf8] sm:$0xf]
    %v606 = vld [vmem:[%s5 + $0xfc] sm:$0xf]
    %v623 = vunpack.c.l.b16 %v543
    %v624 = vunpack.c.l.b16 %v544
    %v625 = vunpack.c.l.b16 %v545
    %v626 = vunpack.c.l.b16 %v546
    %v627 = vunpack.c.l.b16 %v547
    %v628 = vunpack.c.l.b16 %v548
    %v629 = vunpack.c.l.b16 %v549
    %v630 = vunpack.c.l.b16 %v550
    %v631 = vunpack.c.l.b16 %v551
    %v632 = vunpack.c.l.b16 %v552
    %v633 = vunpack.c.l.b16 %v553
    %v634 = vunpack.c.l.b16 %v554
    %v635 = vunpack.c.l.b16 %v555
    %v636 = vunpack.c.l.b16 %v556
    %v637 = vunpack.c.l.b16 %v557
    %v638 = vunpack.c.l.b16 %v558
    %v639 = vpack.c.b16 %v624, %v623
    %v640 = vpack.c.b16 %v626, %v625
    %v641 = vpack.c.b16 %v628, %v627
    %v642 = vpack.c.b16 %v630, %v629
    %v643 = vpack.c.b16 %v632, %v631
    %v644 = vpack.c.b16 %v634, %v633
    %v645 = vpack.c.b16 %v636, %v635
    %v646 = vpack.c.b16 %v638, %v637
    %655 = vmatpush.bf16.msra.mxu0 %v646
    %656 = vmatpush.bf16.msra.mxu0 %v645
    %657 = vmatpush.bf16.msra.mxu0 %v644
    %658 = vmatpush.bf16.msra.mxu0 %v643
    %659 = vmatpush.bf16.msra.mxu0 %v642
    %660 = vmatpush.bf16.msra.mxu0 %v641
    %661 = vmatpush.bf16.msra.mxu0 %v640
    %662 = vmatpush.bf16.msra.mxu0 %v639
    %663 = vmatmul.bf16.gmra.mxu0 %v293
    %v664 = vpop.f32.mrf.mxu0
    %v665 = vadd.f32 0.0, %v664
    %v666 = vpop.f32.mrf.mxu0
    %v667 = vadd.f32 0.0, %v666
    %668 = vdwg.mxu0
    %v685 = vunpack.c.l.b16 %v559
    %v686 = vunpack.c.l.b16 %v560
    %v687 = vunpack.c.l.b16 %v561
    %v688 = vunpack.c.l.b16 %v562
    %v689 = vunpack.c.l.b16 %v563
    %v690 = vunpack.c.l.b16 %v564
    %v691 = vunpack.c.l.b16 %v565
    %v692 = vunpack.c.l.b16 %v566
    %v693 = vunpack.c.l.b16 %v567
    %v694 = vunpack.c.l.b16 %v568
    %v695 = vunpack.c.l.b16 %v569
    %v696 = vunpack.c.l.b16 %v570
    %v697 = vunpack.c.l.b16 %v571
    %v698 = vunpack.c.l.b16 %v572
    %v699 = vunpack.c.l.b16 %v573
    %v700 = vunpack.c.l.b16 %v574
    %v701 = vpack.c.b16 %v686, %v685
    %v702 = vpack.c.b16 %v688, %v687
    %v703 = vpack.c.b16 %v690, %v689
    %v704 = vpack.c.b16 %v692, %v691
    %v705 = vpack.c.b16 %v694, %v693
    %v706 = vpack.c.b16 %v696, %v695
    %v707 = vpack.c.b16 %v698, %v697
    %v708 = vpack.c.b16 %v700, %v699
    %717 = vmatpush.bf16.msra.mxu0 %v708
    %718 = vmatpush.bf16.msra.mxu0 %v707
    %719 = vmatpush.bf16.msra.mxu0 %v706
    %720 = vmatpush.bf16.msra.mxu0 %v705
    %721 = vmatpush.bf16.msra.mxu0 %v704
    %722 = vmatpush.bf16.msra.mxu0 %v703
    %723 = vmatpush.bf16.msra.mxu0 %v702
    %724 = vmatpush.bf16.msra.mxu0 %v701
    %725 = vmatmul.bf16.gmra.mxu0 %v293
    %v726 = vpop.f32.mrf.mxu0
    %v727 = vadd.f32 0.0, %v726
    %v728 = vpop.f32.mrf.mxu0
    %v729 = vadd.f32 0.0, %v728
    %730 = vdwg.mxu0
    %v747 = vunpack.c.l.b16 %v575
    %v748 = vunpack.c.l.b16 %v576
    %v749 = vunpack.c.l.b16 %v577
    %v750 = vunpack.c.l.b16 %v578
    %v751 = vunpack.c.l.b16 %v579
    %v752 = vunpack.c.l.b16 %v580
    %v753 = vunpack.c.l.b16 %v581
    %v754 = vunpack.c.l.b16 %v582
    %v755 = vunpack.c.l.b16 %v583
    %v756 = vunpack.c.l.b16 %v584
    %v757 = vunpack.c.l.b16 %v585
    %v758 = vunpack.c.l.b16 %v586
    %v759 = vunpack.c.l.b16 %v587
    %v760 = vunpack.c.l.b16 %v588
    %v761 = vunpack.c.l.b16 %v589
    %v762 = vunpack.c.l.b16 %v590
    %v763 = vpack.c.b16 %v748, %v747
    %v764 = vpack.c.b16 %v750, %v749
    %v765 = vpack.c.b16 %v752, %v751
    %v766 = vpack.c.b16 %v754, %v753
    %v767 = vpack.c.b16 %v756, %v755
    %v768 = vpack.c.b16 %v758, %v757
    %v769 = vpack.c.b16 %v760, %v759
    %v770 = vpack.c.b16 %v762, %v761
    %779 = vmatpush.bf16.msra.mxu0 %v770
    %780 = vmatpush.bf16.msra.mxu0 %v769
    %781 = vmatpush.bf16.msra.mxu0 %v768
    %782 = vmatpush.bf16.msra.mxu0 %v767
    %783 = vmatpush.bf16.msra.mxu0 %v766
    %784 = vmatpush.bf16.msra.mxu0 %v765
    %785 = vmatpush.bf16.msra.mxu0 %v764
    %786 = vmatpush.bf16.msra.mxu0 %v763
    %787 = vmatmul.bf16.gmra.mxu0 %v293
    %v788 = vpop.f32.mrf.mxu0
    %v789 = vadd.f32 0.0, %v788
    %v790 = vpop.f32.mrf.mxu0
    %v791 = vadd.f32 0.0, %v790
    %792 = vdwg.mxu0
    %v809 = vunpack.c.l.b16 %v591
    %v810 = vunpack.c.l.b16 %v592
    %v811 = vunpack.c.l.b16 %v593
    %v812 = vunpack.c.l.b16 %v594
    %v813 = vunpack.c.l.b16 %v595
    %v814 = vunpack.c.l.b16 %v596
    %v815 = vunpack.c.l.b16 %v597
    %v816 = vunpack.c.l.b16 %v598
    %v817 = vunpack.c.l.b16 %v599
    %v818 = vunpack.c.l.b16 %v600
    %v819 = vunpack.c.l.b16 %v601
    %v820 = vunpack.c.l.b16 %v602
    %v821 = vunpack.c.l.b16 %v603
    %v822 = vunpack.c.l.b16 %v604
    %v823 = vunpack.c.l.b16 %v605
    %v824 = vunpack.c.l.b16 %v606
    %v825 = vpack.c.b16 %v810, %v809
    %v826 = vpack.c.b16 %v812, %v811
    %v827 = vpack.c.b16 %v814, %v813
    %v828 = vpack.c.b16 %v816, %v815
    %v829 = vpack.c.b16 %v818, %v817
    %v830 = vpack.c.b16 %v820, %v819
    %v831 = vpack.c.b16 %v822, %v821
    %v832 = vpack.c.b16 %v824, %v823
    %841 = vmatpush.bf16.msra.mxu0 %v832
    %842 = vmatpush.bf16.msra.mxu0 %v831
    %843 = vmatpush.bf16.msra.mxu0 %v830
    %844 = vmatpush.bf16.msra.mxu0 %v829
    %845 = vmatpush.bf16.msra.mxu0 %v828
    %846 = vmatpush.bf16.msra.mxu0 %v827
    %847 = vmatpush.bf16.msra.mxu0 %v826
    %848 = vmatpush.bf16.msra.mxu0 %v825
    %849 = vmatmul.bf16.gmra.mxu0 %v293
    %v850 = vpop.f32.mrf.mxu0
    %v851 = vadd.f32 0.0, %v850
    %v852 = vpop.f32.mrf.mxu0
    %v853 = vadd.f32 0.0, %v852
    %854 = vdwg.mxu0
    %v855 = vld [vmem:[%s6] sm:$0xf]
    %v856 = vld [vmem:[%s6 + $0x4] sm:$0xf]
    %v857 = vld [vmem:[%s6 + $0x8] sm:$0xf]
    %v858 = vld [vmem:[%s6 + $0xc] sm:$0xf]
    %v859 = vld [vmem:[%s6 + $0x10] sm:$0xf]
    %v860 = vld [vmem:[%s6 + $0x14] sm:$0xf]
    %v861 = vld [vmem:[%s6 + $0x18] sm:$0xf]
    %v862 = vld [vmem:[%s6 + $0x1c] sm:$0xf]
    %v863 = vld [vmem:[%s6 + $0x20] sm:$0xf]
    %v864 = vld [vmem:[%s6 + $0x24] sm:$0xf]
    %v865 = vld [vmem:[%s6 + $0x28] sm:$0xf]
    %v866 = vld [vmem:[%s6 + $0x2c] sm:$0xf]
    %v867 = vld [vmem:[%s6 + $0x30] sm:$0xf]
    %v868 = vld [vmem:[%s6 + $0x34] sm:$0xf]
    %v869 = vld [vmem:[%s6 + $0x38] sm:$0xf]
    %v870 = vld [vmem:[%s6 + $0x3c] sm:$0xf]
    %v871 = vld [vmem:[%s6 + $0x40] sm:$0xf]
    %v872 = vld [vmem:[%s6 + $0x44] sm:$0xf]
    %v873 = vld [vmem:[%s6 + $0x48] sm:$0xf]
    %v874 = vld [vmem:[%s6 + $0x4c] sm:$0xf]
    %v875 = vld [vmem:[%s6 + $0x50] sm:$0xf]
    %v876 = vld [vmem:[%s6 + $0x54] sm:$0xf]
    %v877 = vld [vmem:[%s6 + $0x58] sm:$0xf]
    %v878 = vld [vmem:[%s6 + $0x5c] sm:$0xf]
    %v879 = vld [vmem:[%s6 + $0x60] sm:$0xf]
    %v880 = vld [vmem:[%s6 + $0x64] sm:$0xf]
    %v881 = vld [vmem:[%s6 + $0x68] sm:$0xf]
    %v882 = vld [vmem:[%s6 + $0x6c] sm:$0xf]
    %v883 = vld [vmem:[%s6 + $0x70] sm:$0xf]
    %v884 = vld [vmem:[%s6 + $0x74] sm:$0xf]
    %v885 = vld [vmem:[%s6 + $0x78] sm:$0xf]
    %v886 = vld [vmem:[%s6 + $0x7c] sm:$0xf]
    %v887 = vld [vmem:[%s6 + $0x80] sm:$0xf]
    %v888 = vld [vmem:[%s6 + $0x84] sm:$0xf]
    %v889 = vld [vmem:[%s6 + $0x88] sm:$0xf]
    %v890 = vld [vmem:[%s6 + $0x8c] sm:$0xf]
    %v891 = vld [vmem:[%s6 + $0x90] sm:$0xf]
    %v892 = vld [vmem:[%s6 + $0x94] sm:$0xf]
    %v893 = vld [vmem:[%s6 + $0x98] sm:$0xf]
    %v894 = vld [vmem:[%s6 + $0x9c] sm:$0xf]
    %v895 = vld [vmem:[%s6 + $0xa0] sm:$0xf]
    %v896 = vld [vmem:[%s6 + $0xa4] sm:$0xf]
    %v897 = vld [vmem:[%s6 + $0xa8] sm:$0xf]
    %v898 = vld [vmem:[%s6 + $0xac] sm:$0xf]
    %v899 = vld [vmem:[%s6 + $0xb0] sm:$0xf]
    %v900 = vld [vmem:[%s6 + $0xb4] sm:$0xf]
    %v901 = vld [vmem:[%s6 + $0xb8] sm:$0xf]
    %v902 = vld [vmem:[%s6 + $0xbc] sm:$0xf]
    %v903 = vld [vmem:[%s6 + $0xc0] sm:$0xf]
    %v904 = vld [vmem:[%s6 + $0xc4] sm:$0xf]
    %v905 = vld [vmem:[%s6 + $0xc8] sm:$0xf]
    %v906 = vld [vmem:[%s6 + $0xcc] sm:$0xf]
    %v907 = vld [vmem:[%s6 + $0xd0] sm:$0xf]
    %v908 = vld [vmem:[%s6 + $0xd4] sm:$0xf]
    %v909 = vld [vmem:[%s6 + $0xd8] sm:$0xf]
    %v910 = vld [vmem:[%s6 + $0xdc] sm:$0xf]
    %v911 = vld [vmem:[%s6 + $0xe0] sm:$0xf]
    %v912 = vld [vmem:[%s6 + $0xe4] sm:$0xf]
    %v913 = vld [vmem:[%s6 + $0xe8] sm:$0xf]
    %v914 = vld [vmem:[%s6 + $0xec] sm:$0xf]
    %v915 = vld [vmem:[%s6 + $0xf0] sm:$0xf]
    %v916 = vld [vmem:[%s6 + $0xf4] sm:$0xf]
    %v917 = vld [vmem:[%s6 + $0xf8] sm:$0xf]
    %v918 = vld [vmem:[%s6 + $0xfc] sm:$0xf]
    %v935 = vunpack.c.l.b16 %v855
    %v936 = vunpack.c.l.b16 %v856
    %v937 = vunpack.c.l.b16 %v857
    %v938 = vunpack.c.l.b16 %v858
    %v939 = vunpack.c.l.b16 %v859
    %v940 = vunpack.c.l.b16 %v860
    %v941 = vunpack.c.l.b16 %v861
    %v942 = vunpack.c.l.b16 %v862
    %v943 = vunpack.c.l.b16 %v863
    %v944 = vunpack.c.l.b16 %v864
    %v945 = vunpack.c.l.b16 %v865
    %v946 = vunpack.c.l.b16 %v866
    %v947 = vunpack.c.l.b16 %v867
    %v948 = vunpack.c.l.b16 %v868
    %v949 = vunpack.c.l.b16 %v869
    %v950 = vunpack.c.l.b16 %v870
    %v951 = vpack.c.b16 %v936, %v935
    %v952 = vpack.c.b16 %v938, %v937
    %v953 = vpack.c.b16 %v940, %v939
    %v954 = vpack.c.b16 %v942, %v941
    %v955 = vpack.c.b16 %v944, %v943
    %v956 = vpack.c.b16 %v946, %v945
    %v957 = vpack.c.b16 %v948, %v947
    %v958 = vpack.c.b16 %v950, %v949
    %967 = vmatpush.bf16.msra.mxu0 %v958
    %968 = vmatpush.bf16.msra.mxu0 %v957
    %969 = vmatpush.bf16.msra.mxu0 %v956
    %970 = vmatpush.bf16.msra.mxu0 %v955
    %971 = vmatpush.bf16.msra.mxu0 %v954
    %972 = vmatpush.bf16.msra.mxu0 %v953
    %973 = vmatpush.bf16.msra.mxu0 %v952
    %974 = vmatpush.bf16.msra.mxu0 %v951
    %975 = vmatmul.bf16.gmra.mxu0 %v293
    %v976 = vpop.f32.mrf.mxu0
    %v977 = vadd.f32 0.0, %v976
    %v978 = vpop.f32.mrf.mxu0
    %v979 = vadd.f32 0.0, %v978
    %980 = vdwg.mxu0
    %v997 = vunpack.c.l.b16 %v871
    %v998 = vunpack.c.l.b16 %v872
    %v999 = vunpack.c.l.b16 %v873
    %v1000 = vunpack.c.l.b16 %v874
    %v1001 = vunpack.c.l.b16 %v875
    %v1002 = vunpack.c.l.b16 %v876
    %v1003 = vunpack.c.l.b16 %v877
    %v1004 = vunpack.c.l.b16 %v878
    %v1005 = vunpack.c.l.b16 %v879
    %v1006 = vunpack.c.l.b16 %v880
    %v1007 = vunpack.c.l.b16 %v881
    %v1008 = vunpack.c.l.b16 %v882
    %v1009 = vunpack.c.l.b16 %v883
    %v1010 = vunpack.c.l.b16 %v884
    %v1011 = vunpack.c.l.b16 %v885
    %v1012 = vunpack.c.l.b16 %v886
    %v1013 = vpack.c.b16 %v998, %v997
    %v1014 = vpack.c.b16 %v1000, %v999
    %v1015 = vpack.c.b16 %v1002, %v1001
    %v1016 = vpack.c.b16 %v1004, %v1003
    %v1017 = vpack.c.b16 %v1006, %v1005
    %v1018 = vpack.c.b16 %v1008, %v1007
    %v1019 = vpack.c.b16 %v1010, %v1009
    %v1020 = vpack.c.b16 %v1012, %v1011
    %1029 = vmatpush.bf16.msra.mxu0 %v1020
    %1030 = vmatpush.bf16.msra.mxu0 %v1019
    %1031 = vmatpush.bf16.msra.mxu0 %v1018
    %1032 = vmatpush.bf16.msra.mxu0 %v1017
    %1033 = vmatpush.bf16.msra.mxu0 %v1016
    %1034 = vmatpush.bf16.msra.mxu0 %v1015
    %1035 = vmatpush.bf16.msra.mxu0 %v1014
    %1036 = vmatpush.bf16.msra.mxu0 %v1013
    %1037 = vmatmul.bf16.gmra.mxu0 %v293
    %v1038 = vpop.f32.mrf.mxu0
    %v1039 = vadd.f32 0.0, %v1038
    %v1040 = vpop.f32.mrf.mxu0
    %v1041 = vadd.f32 0.0, %v1040
    %1042 = vdwg.mxu0
    %v1059 = vunpack.c.l.b16 %v887
    %v1060 = vunpack.c.l.b16 %v888
    %v1061 = vunpack.c.l.b16 %v889
    %v1062 = vunpack.c.l.b16 %v890
    %v1063 = vunpack.c.l.b16 %v891
    %v1064 = vunpack.c.l.b16 %v892
    %v1065 = vunpack.c.l.b16 %v893
    %v1066 = vunpack.c.l.b16 %v894
    %v1067 = vunpack.c.l.b16 %v895
    %v1068 = vunpack.c.l.b16 %v896
    %v1069 = vunpack.c.l.b16 %v897
    %v1070 = vunpack.c.l.b16 %v898
    %v1071 = vunpack.c.l.b16 %v899
    %v1072 = vunpack.c.l.b16 %v900
    %v1073 = vunpack.c.l.b16 %v901
    %v1074 = vunpack.c.l.b16 %v902
    %v1075 = vpack.c.b16 %v1060, %v1059
    %v1076 = vpack.c.b16 %v1062, %v1061
    %v1077 = vpack.c.b16 %v1064, %v1063
    %v1078 = vpack.c.b16 %v1066, %v1065
    %v1079 = vpack.c.b16 %v1068, %v1067
    %v1080 = vpack.c.b16 %v1070, %v1069
    %v1081 = vpack.c.b16 %v1072, %v1071
    %v1082 = vpack.c.b16 %v1074, %v1073
    %1091 = vmatpush.bf16.msra.mxu0 %v1082
    %1092 = vmatpush.bf16.msra.mxu0 %v1081
    %1093 = vmatpush.bf16.msra.mxu0 %v1080
    %1094 = vmatpush.bf16.msra.mxu0 %v1079
    %1095 = vmatpush.bf16.msra.mxu0 %v1078
    %1096 = vmatpush.bf16.msra.mxu0 %v1077
    %1097 = vmatpush.bf16.msra.mxu0 %v1076
    %1098 = vmatpush.bf16.msra.mxu0 %v1075
    %1099 = vmatmul.bf16.gmra.mxu0 %v293
    %v1100 = vpop.f32.mrf.mxu0
    %v1101 = vadd.f32 0.0, %v1100
    %v1102 = vpop.f32.mrf.mxu0
    %v1103 = vadd.f32 0.0, %v1102
    %1104 = vdwg.mxu0
    %v1121 = vunpack.c.l.b16 %v903
    %v1122 = vunpack.c.l.b16 %v904
    %v1123 = vunpack.c.l.b16 %v905
    %v1124 = vunpack.c.l.b16 %v906
    %v1125 = vunpack.c.l.b16 %v907
    %v1126 = vunpack.c.l.b16 %v908
    %v1127 = vunpack.c.l.b16 %v909
    %v1128 = vunpack.c.l.b16 %v910
    %v1129 = vunpack.c.l.b16 %v911
    %v1130 = vunpack.c.l.b16 %v912
    %v1131 = vunpack.c.l.b16 %v913
    %v1132 = vunpack.c.l.b16 %v914
    %v1133 = vunpack.c.l.b16 %v915
    %v1134 = vunpack.c.l.b16 %v916
    %v1135 = vunpack.c.l.b16 %v917
    %v1136 = vunpack.c.l.b16 %v918
    %v1137 = vpack.c.b16 %v1122, %v1121
    %v1138 = vpack.c.b16 %v1124, %v1123
    %v1139 = vpack.c.b16 %v1126, %v1125
    %v1140 = vpack.c.b16 %v1128, %v1127
    %v1141 = vpack.c.b16 %v1130, %v1129
    %v1142 = vpack.c.b16 %v1132, %v1131
    %v1143 = vpack.c.b16 %v1134, %v1133
    %v1144 = vpack.c.b16 %v1136, %v1135
    %1153 = vmatpush.bf16.msra.mxu0 %v1144
    %1154 = vmatpush.bf16.msra.mxu0 %v1143
    %1155 = vmatpush.bf16.msra.mxu0 %v1142
    %1156 = vmatpush.bf16.msra.mxu0 %v1141
    %1157 = vmatpush.bf16.msra.mxu0 %v1140
    %1158 = vmatpush.bf16.msra.mxu0 %v1139
    %1159 = vmatpush.bf16.msra.mxu0 %v1138
    %1160 = vmatpush.bf16.msra.mxu0 %v1137
    %1161 = vmatmul.bf16.gmra.mxu0 %v293
    %v1162 = vpop.f32.mrf.mxu0
    %v1163 = vadd.f32 0.0, %v1162
    %v1164 = vpop.f32.mrf.mxu0
    %v1165 = vadd.f32 0.0, %v1164
    %1166 = vdwg.mxu0
    %v1167 = vpack.c.bf16 %v353, %v353
    %v1168 = vpack.c.bf16 %v355, %v355
    %v1169 = vpack.c.bf16 %v415, %v415
    %v1170 = vpack.c.bf16 %v417, %v417
    %v1171 = vpack.c.bf16 %v477, %v477
    %v1172 = vpack.c.bf16 %v479, %v479
    %v1173 = vpack.c.bf16 %v539, %v539
    %v1174 = vpack.c.bf16 %v541, %v541
    %v1175 = vpack.c.bf16 %v665, %v665
    %v1176 = vpack.c.bf16 %v667, %v667
    %v1177 = vpack.c.bf16 %v727, %v727
    %v1178 = vpack.c.bf16 %v729, %v729
    %v1179 = vpack.c.bf16 %v789, %v789
    %v1180 = vpack.c.bf16 %v791, %v791
    %v1181 = vpack.c.bf16 %v851, %v851
    %v1182 = vpack.c.bf16 %v853, %v853
    %v1183 = vpack.c.bf16 %v977, %v977
    %v1184 = vpack.c.bf16 %v979, %v979
    %v1185 = vpack.c.bf16 %v1039, %v1039
    %v1186 = vpack.c.bf16 %v1041, %v1041
    %v1187 = vpack.c.bf16 %v1101, %v1101
    %v1188 = vpack.c.bf16 %v1103, %v1103
    %v1189 = vpack.c.bf16 %v1163, %v1163
    %v1190 = vpack.c.bf16 %v1165, %v1165
    %vm1191 = vcmask 64512
    %v1193 = vsel %vm1191, %v1167, 0
    %v1196 = vsel %vm1191, %v1175, 0
    %1198 = vmatpush.bf16.xpose.msra.mxu0 0
    %1199 = vmatpush.bf16.xpose.msra.mxu0 0
    %1200 = vmatpush.bf16.xpose.msra.mxu0 0
    %1201 = vmatpush.bf16.xpose.msra.mxu0 0
    %1202 = vmatpush.bf16.xpose.msra.mxu0 0
    %1203 = vmatpush.bf16.xpose.msra.mxu0 0
    %1204 = vmatpush.bf16.xpose.msra.mxu0 0
    %1205 = vmatpush.bf16.xpose.msra.mxu0 %v1196
    %1206 = vmatmul.bf16.gmra.mxu0 %v1193
    %v1207 = vpop.f32.mrf.mxu0
    %v1208 = vadd.f32 0.0, %v1207
    %v1209 = vpop.f32.mrf.mxu0
    %1210 = vdwg.mxu0
    %v1212 = vsel %vm1191, %v1168, 0
    %v1215 = vsel %vm1191, %v1176, 0
    %1217 = vmatpush.bf16.xpose.msra.mxu0 0
    %1218 = vmatpush.bf16.xpose.msra.mxu0 0
    %1219 = vmatpush.bf16.xpose.msra.mxu0 0
    %1220 = vmatpush.bf16.xpose.msra.mxu0 0
    %1221 = vmatpush.bf16.xpose.msra.mxu0 0
    %1222 = vmatpush.bf16.xpose.msra.mxu0 0
    %1223 = vmatpush.bf16.xpose.msra.mxu0 0
    %1224 = vmatpush.bf16.xpose.msra.mxu0 %v1215
    %1225 = vmatmul.bf16.gmra.mxu0 %v1212
    %v1226 = vpop.f32.mrf.mxu0
    %v1227 = vadd.f32 0.0, %v1226
    %v1228 = vpop.f32.mrf.mxu0
    %1229 = vdwg.mxu0
    %v1231 = vsel %vm1191, %v1169, 0
    %v1234 = vsel %vm1191, %v1177, 0
    %1236 = vmatpush.bf16.xpose.msra.mxu0 0
    %1237 = vmatpush.bf16.xpose.msra.mxu0 0
    %1238 = vmatpush.bf16.xpose.msra.mxu0 0
    %1239 = vmatpush.bf16.xpose.msra.mxu0 0
    %1240 = vmatpush.bf16.xpose.msra.mxu0 0
    %1241 = vmatpush.bf16.xpose.msra.mxu0 0
    %1242 = vmatpush.bf16.xpose.msra.mxu0 0
    %1243 = vmatpush.bf16.xpose.msra.mxu0 %v1234
    %1244 = vmatmul.bf16.gmra.mxu0 %v1231
    %v1245 = vpop.f32.mrf.mxu0
    %v1246 = vadd.f32 0.0, %v1245
    %v1247 = vpop.f32.mrf.mxu0
    %1248 = vdwg.mxu0
    %v1250 = vsel %vm1191, %v1170, 0
    %v1253 = vsel %vm1191, %v1178, 0
    %1255 = vmatpush.bf16.xpose.msra.mxu0 0
    %1256 = vmatpush.bf16.xpose.msra.mxu0 0
    %1257 = vmatpush.bf16.xpose.msra.mxu0 0
    %1258 = vmatpush.bf16.xpose.msra.mxu0 0
    %1259 = vmatpush.bf16.xpose.msra.mxu0 0
    %1260 = vmatpush.bf16.xpose.msra.mxu0 0
    %1261 = vmatpush.bf16.xpose.msra.mxu0 0
    %1262 = vmatpush.bf16.xpose.msra.mxu0 %v1253
    %1263 = vmatmul.bf16.gmra.mxu0 %v1250
    %v1264 = vpop.f32.mrf.mxu0
    %v1265 = vadd.f32 0.0, %v1264
    %v1266 = vpop.f32.mrf.mxu0
    %1267 = vdwg.mxu0
    %v1269 = vsel %vm1191, %v1171, 0
    %v1272 = vsel %vm1191, %v1179, 0
    %1274 = vmatpush.bf16.xpose.msra.mxu0 0
    %1275 = vmatpush.bf16.xpose.msra.mxu0 0
    %1276 = vmatpush.bf16.xpose.msra.mxu0 0
    %1277 = vmatpush.bf16.xpose.msra.mxu0 0
    %1278 = vmatpush.bf16.xpose.msra.mxu0 0
    %1279 = vmatpush.bf16.xpose.msra.mxu0 0
    %1280 = vmatpush.bf16.xpose.msra.mxu0 0
    %1281 = vmatpush.bf16.xpose.msra.mxu0 %v1272
    %1282 = vmatmul.bf16.gmra.mxu0 %v1269
    %v1283 = vpop.f32.mrf.mxu0
    %v1284 = vadd.f32 0.0, %v1283
    %v1285 = vpop.f32.mrf.mxu0
    %1286 = vdwg.mxu0
    %v1288 = vsel %vm1191, %v1172, 0
    %v1291 = vsel %vm1191, %v1180, 0
    %1293 = vmatpush.bf16.xpose.msra.mxu0 0
    %1294 = vmatpush.bf16.xpose.msra.mxu0 0
    %1295 = vmatpush.bf16.xpose.msra.mxu0 0
    %1296 = vmatpush.bf16.xpose.msra.mxu0 0
    %1297 = vmatpush.bf16.xpose.msra.mxu0 0
    %1298 = vmatpush.bf16.xpose.msra.mxu0 0
    %1299 = vmatpush.bf16.xpose.msra.mxu0 0
    %1300 = vmatpush.bf16.xpose.msra.mxu0 %v1291
    %1301 = vmatmul.bf16.gmra.mxu0 %v1288
    %v1302 = vpop.f32.mrf.mxu0
    %v1303 = vadd.f32 0.0, %v1302
    %v1304 = vpop.f32.mrf.mxu0
    %1305 = vdwg.mxu0
    %v1307 = vsel %vm1191, %v1173, 0
    %v1310 = vsel %vm1191, %v1181, 0
    %1312 = vmatpush.bf16.xpose.msra.mxu0 0
    %1313 = vmatpush.bf16.xpose.msra.mxu0 0
    %1314 = vmatpush.bf16.xpose.msra.mxu0 0
    %1315 = vmatpush.bf16.xpose.msra.mxu0 0
    %1316 = vmatpush.bf16.xpose.msra.mxu0 0
    %1317 = vmatpush.bf16.xpose.msra.mxu0 0
    %1318 = vmatpush.bf16.xpose.msra.mxu0 0
    %1319 = vmatpush.bf16.xpose.msra.mxu0 %v1310
    %1320 = vmatmul.bf16.gmra.mxu0 %v1307
    %v1321 = vpop.f32.mrf.mxu0
    %v1322 = vadd.f32 0.0, %v1321
    %v1323 = vpop.f32.mrf.mxu0
    %1324 = vdwg.mxu0
    %v1326 = vsel %vm1191, %v1174, 0
    %v1329 = vsel %vm1191, %v1182, 0
    %1331 = vmatpush.bf16.xpose.msra.mxu0 0
    %1332 = vmatpush.bf16.xpose.msra.mxu0 0
    %1333 = vmatpush.bf16.xpose.msra.mxu0 0
    %1334 = vmatpush.bf16.xpose.msra.mxu0 0
    %1335 = vmatpush.bf16.xpose.msra.mxu0 0
    %1336 = vmatpush.bf16.xpose.msra.mxu0 0
    %1337 = vmatpush.bf16.xpose.msra.mxu0 0
    %1338 = vmatpush.bf16.xpose.msra.mxu0 %v1329
    %1339 = vmatmul.bf16.gmra.mxu0 %v1326
    %v1340 = vpop.f32.mrf.mxu0
    %v1341 = vadd.f32 0.0, %v1340
    %v1342 = vpop.f32.mrf.mxu0
    %1343 = vdwg.mxu0
    %v1344 = vmul.f32 %v1208, 0.35355338
    %v1345 = vmul.f32 %v1227, 0.35355338
    %v1346 = vmul.f32 %v1246, 0.35355338
    %v1347 = vmul.f32 %v1265, 0.35355338
    %v1348 = vmul.f32 %v1284, 0.35355338
    %v1349 = vmul.f32 %v1303, 0.35355338
    %v1350 = vmul.f32 %v1322, 0.35355338
    %v1351 = vmul.f32 %v1341, 0.35355338
    %v1352 = vadd.f32 %v1344, %v168
    %v1353 = vadd.f32 %v1345, %v168
    %v1354 = vadd.f32 %v1346, %v168
    %v1355 = vadd.f32 %v1347, %v168
    %v1356 = vadd.f32 %v1348, %v168
    %v1357 = vadd.f32 %v1349, %v168
    %v1358 = vadd.f32 %v1350, %v168
    %v1359 = vadd.f32 %v1351, %v168
    %v1360 = vsel %vm1191, %v1352, -inf
    %1361 = vmax.xlane.f32.xlu0 %v1360
    %v1362 = vpop.xlane.xlu0 %1361
    %v1363 = vsel %vm1191, %v1353, -inf
    %1364 = vmax.xlane.f32.xlu0 %v1363
    %v1365 = vpop.xlane.xlu0 %1364
    %v1366 = vsel %vm1191, %v1354, -inf
    %1367 = vmax.xlane.f32.xlu0 %v1366
    %v1368 = vpop.xlane.xlu0 %1367
    %v1369 = vsel %vm1191, %v1355, -inf
    %1370 = vmax.xlane.f32.xlu0 %v1369
    %v1371 = vpop.xlane.xlu0 %1370
    %v1372 = vsel %vm1191, %v1356, -inf
    %1373 = vmax.xlane.f32.xlu0 %v1372
    %v1374 = vpop.xlane.xlu0 %1373
    %v1375 = vsel %vm1191, %v1357, -inf
    %1376 = vmax.xlane.f32.xlu0 %v1375
    %v1377 = vpop.xlane.xlu0 %1376
    %v1378 = vsel %vm1191, %v1358, -inf
    %1379 = vmax.xlane.f32.xlu0 %v1378
    %v1380 = vpop.xlane.xlu0 %1379
    %v1381 = vsel %vm1191, %v1359, -inf
    %1382 = vmax.xlane.f32.xlu0 %v1381
    %v1383 = vpop.xlane.xlu0 %1382
    %v1384 = vsub.f32 %v1352, %v1362
    %v1385 = vsub.f32 %v1353, %v1365
    %v1386 = vsub.f32 %v1354, %v1368
    %v1387 = vsub.f32 %v1355, %v1371
    %v1388 = vsub.f32 %v1356, %v1374
    %v1389 = vsub.f32 %v1357, %v1377
    %v1390 = vsub.f32 %v1358, %v1380
    %v1391 = vsub.f32 %v1359, %v1383
    %v1392 = vmul.f32 %v1384, 1.442695
    %v1393 = vpow.pop %v1392
    %v1394 = vmul.f32 %v1385, 1.442695
    %v1395 = vpow.pop %v1394
    %v1396 = vmul.f32 %v1386, 1.442695
    %v1397 = vpow.pop %v1396
    %v1398 = vmul.f32 %v1387, 1.442695
    %v1399 = vpow.pop %v1398
    %v1400 = vmul.f32 %v1388, 1.442695
    %v1401 = vpow.pop %v1400
    %v1402 = vmul.f32 %v1389, 1.442695
    %v1403 = vpow.pop %v1402
    %v1404 = vmul.f32 %v1390, 1.442695
    %v1405 = vpow.pop %v1404
    %v1406 = vmul.f32 %v1391, 1.442695
    %v1407 = vpow.pop %v1406
    %v1408 = vsel %vm1191, %v1393, 0.0
    %1409 = vadd.xlane.f32.xlu0 %v1408
    %v1410 = vpop.xlane.xlu0 %1409
    %v1411 = vsel %vm1191, %v1395, 0.0
    %1412 = vadd.xlane.f32.xlu0 %v1411
    %v1413 = vpop.xlane.xlu0 %1412
    %v1414 = vsel %vm1191, %v1397, 0.0
    %1415 = vadd.xlane.f32.xlu0 %v1414
    %v1416 = vpop.xlane.xlu0 %1415
    %v1417 = vsel %vm1191, %v1399, 0.0
    %1418 = vadd.xlane.f32.xlu0 %v1417
    %v1419 = vpop.xlane.xlu0 %1418
    %v1420 = vsel %vm1191, %v1401, 0.0
    %1421 = vadd.xlane.f32.xlu0 %v1420
    %v1422 = vpop.xlane.xlu0 %1421
    %v1423 = vsel %vm1191, %v1403, 0.0
    %1424 = vadd.xlane.f32.xlu0 %v1423
    %v1425 = vpop.xlane.xlu0 %1424
    %v1426 = vsel %vm1191, %v1405, 0.0
    %1427 = vadd.xlane.f32.xlu0 %v1426
    %v1428 = vpop.xlane.xlu0 %1427
    %v1429 = vsel %vm1191, %v1407, 0.0
    %1430 = vadd.xlane.f32.xlu0 %v1429
    %v1431 = vpop.xlane.xlu0 %1430
    %v1432 = vrcp.pop %v1410
    %v1433 = vrcp.pop %v1413
    %v1434 = vrcp.pop %v1416
    %v1435 = vrcp.pop %v1419
    %v1436 = vrcp.pop %v1422
    %v1437 = vrcp.pop %v1425
    %v1438 = vrcp.pop %v1428
    %v1439 = vrcp.pop %v1431
    %v1440 = vmul.f32 %v1393, %v1432
    %v1441 = vmul.f32 %v1395, %v1433
    %v1442 = vmul.f32 %v1397, %v1434
    %v1443 = vmul.f32 %v1399, %v1435
    %v1444 = vmul.f32 %v1401, %v1436
    %v1445 = vmul.f32 %v1403, %v1437
    %v1446 = vmul.f32 %v1405, %v1438
    %v1447 = vmul.f32 %v1407, %v1439
    %v1448 = vpack.c.bf16 %v1440, %v1440
    %v1449 = vpack.c.bf16 %v1441, %v1441
    %v1450 = vpack.c.bf16 %v1442, %v1442
    %v1451 = vpack.c.bf16 %v1443, %v1443
    %v1452 = vpack.c.bf16 %v1444, %v1444
    %v1453 = vpack.c.bf16 %v1445, %v1445
    %v1454 = vpack.c.bf16 %v1446, %v1446
    %v1455 = vpack.c.bf16 %v1447, %v1447
    %v1457 = vsel %vm1191, %v1448, 0
    %vm1459 = vcmask 1043456
    %v1461 = vsel %vm1459, %v1183, 0
    %1463 = vmatpush.bf16.msra.mxu0 0
    %1464 = vmatpush.bf16.msra.mxu0 0
    %1465 = vmatpush.bf16.msra.mxu0 0
    %1466 = vmatpush.bf16.msra.mxu0 0
    %1467 = vmatpush.bf16.msra.mxu0 0
    %1468 = vmatpush.bf16.msra.mxu0 0
    %1469 = vmatpush.bf16.msra.mxu0 0
    %1470 = vmatpush.bf16.msra.mxu0 %v1461
    %1471 = vmatmul.bf16.gmra.mxu0 %v1457
    %v1472 = vpop.f32.mrf.mxu0
    %v1473 = vadd.f32 0.0, %v1472
    %v1474 = vpop.f32.mrf.mxu0
    %1475 = vdwg.mxu0
    %v1477 = vsel %vm1191, %v1449, 0
    %v1480 = vsel %vm1459, %v1184, 0
    %1482 = vmatpush.bf16.msra.mxu0 0
    %1483 = vmatpush.bf16.msra.mxu0 0
    %1484 = vmatpush.bf16.msra.mxu0 0
    %1485 = vmatpush.bf16.msra.mxu0 0
    %1486 = vmatpush.bf16.msra.mxu0 0
    %1487 = vmatpush.bf16.msra.mxu0 0
    %1488 = vmatpush.bf16.msra.mxu0 0
    %1489 = vmatpush.bf16.msra.mxu0 %v1480
    %1490 = vmatmul.bf16.gmra.mxu0 %v1477
    %v1491 = vpop.f32.mrf.mxu0
    %v1492 = vadd.f32 0.0, %v1491
    %v1493 = vpop.f32.mrf.mxu0
    %1494 = vdwg.mxu0
    %v1496 = vsel %vm1191, %v1450, 0
    %v1499 = vsel %vm1459, %v1185, 0
    %1501 = vmatpush.bf16.msra.mxu0 0
    %1502 = vmatpush.bf16.msra.mxu0 0
    %1503 = vmatpush.bf16.msra.mxu0 0
    %1504 = vmatpush.bf16.msra.mxu0 0
    %1505 = vmatpush.bf16.msra.mxu0 0
    %1506 = vmatpush.bf16.msra.mxu0 0
    %1507 = vmatpush.bf16.msra.mxu0 0
    %1508 = vmatpush.bf16.msra.mxu0 %v1499
    %1509 = vmatmul.bf16.gmra.mxu0 %v1496
    %v1510 = vpop.f32.mrf.mxu0
    %v1511 = vadd.f32 0.0, %v1510
    %v1512 = vpop.f32.mrf.mxu0
    %1513 = vdwg.mxu0
    %v1515 = vsel %vm1191, %v1451, 0
    %v1518 = vsel %vm1459, %v1186, 0
    %1520 = vmatpush.bf16.msra.mxu0 0
    %1521 = vmatpush.bf16.msra.mxu0 0
    %1522 = vmatpush.bf16.msra.mxu0 0
    %1523 = vmatpush.bf16.msra.mxu0 0
    %1524 = vmatpush.bf16.msra.mxu0 0
    %1525 = vmatpush.bf16.msra.mxu0 0
    %1526 = vmatpush.bf16.msra.mxu0 0
    %1527 = vmatpush.bf16.msra.mxu0 %v1518
    %1528 = vmatmul.bf16.gmra.mxu0 %v1515
    %v1529 = vpop.f32.mrf.mxu0
    %v1530 = vadd.f32 0.0, %v1529
    %v1531 = vpop.f32.mrf.mxu0
    %1532 = vdwg.mxu0
    %v1534 = vsel %vm1191, %v1452, 0
    %v1537 = vsel %vm1459, %v1187, 0
    %1539 = vmatpush.bf16.msra.mxu0 0
    %1540 = vmatpush.bf16.msra.mxu0 0
    %1541 = vmatpush.bf16.msra.mxu0 0
    %1542 = vmatpush.bf16.msra.mxu0 0
    %1543 = vmatpush.bf16.msra.mxu0 0
    %1544 = vmatpush.bf16.msra.mxu0 0
    %1545 = vmatpush.bf16.msra.mxu0 0
    %1546 = vmatpush.bf16.msra.mxu0 %v1537
    %1547 = vmatmul.bf16.gmra.mxu0 %v1534
    %v1548 = vpop.f32.mrf.mxu0
    %v1549 = vadd.f32 0.0, %v1548
    %v1550 = vpop.f32.mrf.mxu0
    %1551 = vdwg.mxu0
    %v1553 = vsel %vm1191, %v1453, 0
    %v1556 = vsel %vm1459, %v1188, 0
    %1558 = vmatpush.bf16.msra.mxu0 0
    %1559 = vmatpush.bf16.msra.mxu0 0
    %1560 = vmatpush.bf16.msra.mxu0 0
    %1561 = vmatpush.bf16.msra.mxu0 0
    %1562 = vmatpush.bf16.msra.mxu0 0
    %1563 = vmatpush.bf16.msra.mxu0 0
    %1564 = vmatpush.bf16.msra.mxu0 0
    %1565 = vmatpush.bf16.msra.mxu0 %v1556
    %1566 = vmatmul.bf16.gmra.mxu0 %v1553
    %v1567 = vpop.f32.mrf.mxu0
    %v1568 = vadd.f32 0.0, %v1567
    %v1569 = vpop.f32.mrf.mxu0
    %1570 = vdwg.mxu0
    %v1572 = vsel %vm1191, %v1454, 0
    %v1575 = vsel %vm1459, %v1189, 0
    %1577 = vmatpush.bf16.msra.mxu0 0
    %1578 = vmatpush.bf16.msra.mxu0 0
    %1579 = vmatpush.bf16.msra.mxu0 0
    %1580 = vmatpush.bf16.msra.mxu0 0
    %1581 = vmatpush.bf16.msra.mxu0 0
    %1582 = vmatpush.bf16.msra.mxu0 0
    %1583 = vmatpush.bf16.msra.mxu0 0
    %1584 = vmatpush.bf16.msra.mxu0 %v1575
    %1585 = vmatmul.bf16.gmra.mxu0 %v1572
    %v1586 = vpop.f32.mrf.mxu0
    %v1587 = vadd.f32 0.0, %v1586
    %v1588 = vpop.f32.mrf.mxu0
    %1589 = vdwg.mxu0
    %v1591 = vsel %vm1191, %v1455, 0
    %v1594 = vsel %vm1459, %v1190, 0
    %1596 = vmatpush.bf16.msra.mxu0 0
    %1597 = vmatpush.bf16.msra.mxu0 0
    %1598 = vmatpush.bf16.msra.mxu0 0
    %1599 = vmatpush.bf16.msra.mxu0 0
    %1600 = vmatpush.bf16.msra.mxu0 0
    %1601 = vmatpush.bf16.msra.mxu0 0
    %1602 = vmatpush.bf16.msra.mxu0 0
    %1603 = vmatpush.bf16.msra.mxu0 %v1594
    %1604 = vmatmul.bf16.gmra.mxu0 %v1591
    %v1605 = vpop.f32.mrf.mxu0
    %v1606 = vadd.f32 0.0, %v1605
    %v1607 = vpop.f32.mrf.mxu0
    %1608 = vdwg.mxu0
    %v1609 = vpack.c.bf16 %v1473, %v1473
    %v1610 = vpack.c.bf16 %v1492, %v1492
    %v1611 = vpack.c.bf16 %v1511, %v1511
    %v1612 = vpack.c.bf16 %v1530, %v1530
    %v1613 = vpack.c.bf16 %v1549, %v1549
    %v1614 = vpack.c.bf16 %v1568, %v1568
    %v1615 = vpack.c.bf16 %v1587, %v1587
    %v1616 = vpack.c.bf16 %v1606, %v1606
    %v1617 = vld [vmem:[%s7] sm:$0xf]
    %v1618 = vld [vmem:[%s7 + $0x4] sm:$0xf]
    %v1619 = vld [vmem:[%s7 + $0x8] sm:$0xf]
    %v1620 = vld [vmem:[%s7 + $0xc] sm:$0xf]
    %v1623 = vunpack.c.l.b16 %v1609
    %v1624 = vunpack.c.l.b16 %v1610
    %v1625 = vpack.c.b16 %v1624, %v1623
    %v1627 = vsel %vm1191, %v1625, 0
    %v1630 = vsel %vm1459, %v1617, 0
    %1632 = vmatpush.bf16.msra.mxu0 0
    %1633 = vmatpush.bf16.msra.mxu0 0
    %1634 = vmatpush.bf16.msra.mxu0 0
    %1635 = vmatpush.bf16.msra.mxu0 0
    %1636 = vmatpush.bf16.msra.mxu0 0
    %1637 = vmatpush.bf16.msra.mxu0 0
    %1638 = vmatpush.bf16.msra.mxu0 0
    %1639 = vmatpush.bf16.msra.mxu0 %v1630
    %1640 = vmatmul.bf16.gmra.mxu0 %v1627
    %v1641 = vpop.f32.mrf.mxu0
    %v1642 = vadd.f32 0.0, %v1641
    %v1643 = vpop.f32.mrf.mxu0
    %v1644 = vadd.f32 0.0, %v1643
    %1645 = vdwg.mxu0
    %v1648 = vunpack.c.l.b16 %v1611
    %v1649 = vunpack.c.l.b16 %v1612
    %v1650 = vpack.c.b16 %v1649, %v1648
    %v1652 = vsel %vm1191, %v1650, 0
    %v1655 = vsel %vm1459, %v1618, 0
    %1657 = vmatpush.bf16.msra.mxu0 0
    %1658 = vmatpush.bf16.msra.mxu0 0
    %1659 = vmatpush.bf16.msra.mxu0 0
    %1660 = vmatpush.bf16.msra.mxu0 0
    %1661 = vmatpush.bf16.msra.mxu0 0
    %1662 = vmatpush.bf16.msra.mxu0 0
    %1663 = vmatpush.bf16.msra.mxu0 0
    %1664 = vmatpush.bf16.msra.mxu0 %v1655
    %1665 = vmatmul.bf16.gmra.mxu0 %v1652
    %v1666 = vpop.f32.mrf.mxu0
    %v1667 = vadd.f32 0.0, %v1666
    %v1668 = vpop.f32.mrf.mxu0
    %v1669 = vadd.f32 0.0, %v1668
    %1670 = vdwg.mxu0
    %v1673 = vunpack.c.l.b16 %v1613
    %v1674 = vunpack.c.l.b16 %v1614
    %v1675 = vpack.c.b16 %v1674, %v1673
    %v1677 = vsel %vm1191, %v1675, 0
    %v1680 = vsel %vm1459, %v1619, 0
    %1682 = vmatpush.bf16.msra.mxu0 0
    %1683 = vmatpush.bf16.msra.mxu0 0
    %1684 = vmatpush.bf16.msra.mxu0 0
    %1685 = vmatpush.bf16.msra.mxu0 0
    %1686 = vmatpush.bf16.msra.mxu0 0
    %1687 = vmatpush.bf16.msra.mxu0 0
    %1688 = vmatpush.bf16.msra.mxu0 0
    %1689 = vmatpush.bf16.msra.mxu0 %v1680
    %1690 = vmatmul.bf16.gmra.mxu0 %v1677
    %v1691 = vpop.f32.mrf.mxu0
    %v1692 = vadd.f32 0.0, %v1691
    %v1693 = vpop.f32.mrf.mxu0
    %v1694 = vadd.f32 0.0, %v1693
    %1695 = vdwg.mxu0
    %v1698 = vunpack.c.l.b16 %v1615
    %v1699 = vunpack.c.l.b16 %v1616
    %v1700 = vpack.c.b16 %v1699, %v1698
    %v1702 = vsel %vm1191, %v1700, 0
    %v1705 = vsel %vm1459, %v1620, 0
    %1707 = vmatpush.bf16.msra.mxu0 0
    %1708 = vmatpush.bf16.msra.mxu0 0
    %1709 = vmatpush.bf16.msra.mxu0 0
    %1710 = vmatpush.bf16.msra.mxu0 0
    %1711 = vmatpush.bf16.msra.mxu0 0
    %1712 = vmatpush.bf16.msra.mxu0 0
    %1713 = vmatpush.bf16.msra.mxu0 0
    %1714 = vmatpush.bf16.msra.mxu0 %v1705
    %1715 = vmatmul.bf16.gmra.mxu0 %v1702
    %v1716 = vpop.f32.mrf.mxu0
    %v1717 = vadd.f32 0.0, %v1716
    %v1718 = vpop.f32.mrf.mxu0
    %v1719 = vadd.f32 0.0, %v1718
    %1720 = vdwg.mxu0
    %v1721 = vadd.f32 %v1642, %v1667
    %v1722 = vadd.f32 %v1721, %v1692
    %v1723 = vadd.f32 %v1722, %v1717
    %v1724 = vadd.f32 %v1644, %v1669
    %v1725 = vadd.f32 %v1724, %v1694
    %v1726 = vadd.f32 %v1725, %v1719
    %v1727 = vld [vmem:[%s8] sm:$0x1]
    %v1729 = vperm.slane %v1727, 0
    %v1731 = vadd.f32 %v1723, %v1729
    %v1732 = vadd.f32 %v1726, %v1729
    %v1733 = vadd.f32 %v163, %v1731
    %v1734 = vadd.f32 %v165, %v1732
    %v1735 = vld [vmem:[%s9] sm:$0x1]
    %v1736 = vld [vmem:[%s10] sm:$0x1]
    %1737 = vadd.xlane.f32.xlu0 %v1733
    %v1738 = vpop.xlane.xlu0 %1737
    %1739 = vadd.xlane.f32.xlu0 %v1734
    %v1740 = vpop.xlane.xlu0 %1739
    %v1741 = vmul.f32 %v1738, 0.03125
    %v1742 = vmul.f32 %v1740, 0.03125
    %v1743 = vsub.f32 %v1733, %v1741
    %v1744 = vsub.f32 %v1734, %v1742
    %v1745 = vmul.f32 %v1743, %v65
    %v1746 = vmul.f32 %v1744, %v65
    %v1747 = vmul.f32 %v1745, %v1745
    %v1748 = vmul.f32 %v1746, %v1746
    %1749 = vadd.xlane.f32.xlu0 %v1747
    %v1750 = vpop.xlane.xlu0 %1749
    %1751 = vadd.xlane.f32.xlu0 %v1748
    %v1752 = vpop.xlane.xlu0 %1751
    %v1753 = vmul.f32 %v1750, 0.03125
    %v1754 = vmul.f32 %v1752, 0.03125
    %v1755 = vadd.f32 %v1753, 1e-05
    %v1756 = vadd.f32 %v1754, 1e-05
    %v1757 = vrsqrt.pop %v1755
    %v1758 = vmul.f32 %v1757, %v1755
    %v1759 = vmul.f32 %v1758, %v1757
    %v1760 = vmul.f32 0.5, %v1759
    %v1761 = vsub.f32 1.5, %v1760
    %v1762 = vmul.f32 %v1757, %v1761
    %vm1763 = vweird.f32 %v1755
    %vm1764 = vweird.f32 %v1757
    %vm1765 = vmor %vm1763, %vm1764
    %v1766 = vsel %vm1765, %v1757, %v1762
    %v1767 = vrsqrt.pop %v1756
    %v1768 = vmul.f32 %v1767, %v1756
    %v1769 = vmul.f32 %v1768, %v1767
    %v1770 = vmul.f32 0.5, %v1769
    %v1771 = vsub.f32 1.5, %v1770
    %v1772 = vmul.f32 %v1767, %v1771
    %vm1773 = vweird.f32 %v1756
    %vm1774 = vweird.f32 %v1767
    %vm1775 = vmor %vm1773, %vm1774
    %v1776 = vsel %vm1775, %v1767, %v1772
    %v1777 = vmul.f32 %v1745, %v1766
    %v1778 = vmul.f32 %v1746, %v1776
    %v1780 = vperm.slane %v1735, 0
    %v1782 = vmul.f32 %v1780, %v1777
    %v1783 = vmul.f32 %v1780, %v1778
    %v1785 = vperm.slane %v1736, 0
    %v1787 = vadd.f32 %v1782, %v1785
    %v1788 = vadd.f32 %v1783, %v1785
    %v1789 = vpack.c.bf16 %v1788, %v1787
    %v1790 = vld [vmem:[%s11] sm:$0xf]
    %v1791 = vld [vmem:[%s11 + $0x4] sm:$0xf]
    %v1792 = vld [vmem:[%s11 + $0x8] sm:$0xf]
    %v1793 = vld [vmem:[%s11 + $0xc] sm:$0xf]
    %v1794 = vld [vmem:[%s11 + $0x10] sm:$0xf]
    %v1795 = vld [vmem:[%s11 + $0x14] sm:$0xf]
    %v1796 = vld [vmem:[%s11 + $0x18] sm:$0xf]
    %v1797 = vld [vmem:[%s11 + $0x1c] sm:$0xf]
    %v1798 = vld [vmem:[%s11 + $0x20] sm:$0xf]
    %v1799 = vld [vmem:[%s11 + $0x24] sm:$0xf]
    %v1800 = vld [vmem:[%s11 + $0x28] sm:$0xf]
    %v1801 = vld [vmem:[%s11 + $0x2c] sm:$0xf]
    %v1802 = vld [vmem:[%s11 + $0x30] sm:$0xf]
    %v1803 = vld [vmem:[%s11 + $0x34] sm:$0xf]
    %v1804 = vld [vmem:[%s11 + $0x38] sm:$0xf]
    %v1805 = vld [vmem:[%s11 + $0x3c] sm:$0xf]
    %v1806 = vld [vmem:[%s12] sm:$0x1]
    %v1808 = vperm.slane %v1806, 0
    %v1826 = vunpack.c.l.b16 %v1790
    %v1827 = vunpack.c.l.b16 %v1791
    %v1828 = vunpack.c.l.b16 %v1792
    %v1829 = vunpack.c.l.b16 %v1793
    %v1830 = vunpack.c.l.b16 %v1794
    %v1831 = vunpack.c.l.b16 %v1795
    %v1832 = vunpack.c.l.b16 %v1796
    %v1833 = vunpack.c.l.b16 %v1797
    %v1834 = vunpack.c.l.b16 %v1798
    %v1835 = vunpack.c.l.b16 %v1799
    %v1836 = vunpack.c.l.b16 %v1800
    %v1837 = vunpack.c.l.b16 %v1801
    %v1838 = vunpack.c.l.b16 %v1802
    %v1839 = vunpack.c.l.b16 %v1803
    %v1840 = vunpack.c.l.b16 %v1804
    %v1841 = vunpack.c.l.b16 %v1805
    %v1842 = vpack.c.b16 %v1827, %v1826
    %v1843 = vpack.c.b16 %v1829, %v1828
    %v1844 = vpack.c.b16 %v1831, %v1830
    %v1845 = vpack.c.b16 %v1833, %v1832
    %v1846 = vpack.c.b16 %v1835, %v1834
    %v1847 = vpack.c.b16 %v1837, %v1836
    %v1848 = vpack.c.b16 %v1839, %v1838
    %v1849 = vpack.c.b16 %v1841, %v1840
    %1858 = vmatpush.bf16.msra.mxu0 %v1849
    %1859 = vmatpush.bf16.msra.mxu0 %v1848
    %1860 = vmatpush.bf16.msra.mxu0 %v1847
    %1861 = vmatpush.bf16.msra.mxu0 %v1846
    %1862 = vmatpush.bf16.msra.mxu0 %v1845
    %1863 = vmatpush.bf16.msra.mxu0 %v1844
    %1864 = vmatpush.bf16.msra.mxu0 %v1843
    %1865 = vmatpush.bf16.msra.mxu0 %v1842
    %1866 = vmatmul.bf16.gmra.mxu0 %v1789
    %v1867 = vpop.f32.mrf.mxu0
    %v1868 = vadd.f32 %v1808, %v1867
    %v1869 = vpop.f32.mrf.mxu0
    %v1870 = vadd.f32 %v1808, %v1869
    %1871 = vdwg.mxu0
    %v1872 = vmul.f32 %v1868, 0.5
    %v1873 = vmul.f32 %v1870, 0.5
    %v1874 = vmul.f32 %v1868, %v1868
    %v1875 = vmul.f32 %v1870, %v1870
    %v1876 = vmul.f32 %v1868, %v1874
    %v1877 = vmul.f32 %v1870, %v1875
    %v1878 = vmul.f32 %v1876, 0.044715
    %v1879 = vmul.f32 %v1877, 0.044715
    %v1880 = vadd.f32 %v1868, %v1878
    %v1881 = vadd.f32 %v1870, %v1879
    %v1882 = vmul.f32 %v1880, 0.7978846
    %v1883 = vmul.f32 %v1881, 0.7978846
    %v1884 = vtanh.pop %v1882
    %v1885 = vtanh.pop %v1883
    %v1886 = vadd.f32 %v1884, 1.0
    %v1887 = vadd.f32 %v1885, 1.0
    %v1888 = vmul.f32 %v1872, %v1886
    %v1889 = vmul.f32 %v1873, %v1887
    %v1890 = vpack.c.bf16 %v1889, %v1888
    %v1891 = vld [vmem:[%s13] sm:$0xf]
    %v1892 = vld [vmem:[%s13 + $0x4] sm:$0xf]
    %v1893 = vld [vmem:[%s13 + $0x8] sm:$0xf]
    %v1894 = vld [vmem:[%s13 + $0xc] sm:$0xf]
    %v1895 = vld [vmem:[%s13 + $0x10] sm:$0xf]
    %v1896 = vld [vmem:[%s13 + $0x14] sm:$0xf]
    %v1897 = vld [vmem:[%s13 + $0x18] sm:$0xf]
    %v1898 = vld [vmem:[%s13 + $0x1c] sm:$0xf]
    %v1899 = vld [vmem:[%s13 + $0x20] sm:$0xf]
    %v1900 = vld [vmem:[%s13 + $0x24] sm:$0xf]
    %v1901 = vld [vmem:[%s13 + $0x28] sm:$0xf]
    %v1902 = vld [vmem:[%s13 + $0x2c] sm:$0xf]
    %v1903 = vld [vmem:[%s13 + $0x30] sm:$0xf]
    %v1904 = vld [vmem:[%s13 + $0x34] sm:$0xf]
    %v1905 = vld [vmem:[%s13 + $0x38] sm:$0xf]
    %v1906 = vld [vmem:[%s13 + $0x3c] sm:$0xf]
    %v1907 = vld [vmem:[%s14] sm:$0x1]
    %v1909 = vperm.slane %v1907, 0
    %v1927 = vunpack.c.l.b16 %v1891
    %v1928 = vunpack.c.l.b16 %v1892
    %v1929 = vunpack.c.l.b16 %v1893
    %v1930 = vunpack.c.l.b16 %v1894
    %v1931 = vunpack.c.l.b16 %v1895
    %v1932 = vunpack.c.l.b16 %v1896
    %v1933 = vunpack.c.l.b16 %v1897
    %v1934 = vunpack.c.l.b16 %v1898
    %v1935 = vunpack.c.l.b16 %v1899
    %v1936 = vunpack.c.l.b16 %v1900
    %v1937 = vunpack.c.l.b16 %v1901
    %v1938 = vunpack.c.l.b16 %v1902
    %v1939 = vunpack.c.l.b16 %v1903
    %v1940 = vunpack.c.l.b16 %v1904
    %v1941 = vunpack.c.l.b16 %v1905
    %v1942 = vunpack.c.l.b16 %v1906
    %v1943 = vpack.c.b16 %v1928, %v1927
    %v1944 = vpack.c.b16 %v1930, %v1929
    %v1945 = vpack.c.b16 %v1932, %v1931
    %v1946 = vpack.c.b16 %v1934, %v1933
    %v1947 = vpack.c.b16 %v1936, %v1935
    %v1948 = vpack.c.b16 %v1938, %v1937
    %v1949 = vpack.c.b16 %v1940, %v1939
    %v1950 = vpack.c.b16 %v1942, %v1941
    %1959 = vmatpush.bf16.msra.mxu0 %v1950
    %1960 = vmatpush.bf16.msra.mxu0 %v1949
    %1961 = vmatpush.bf16.msra.mxu0 %v1948
    %1962 = vmatpush.bf16.msra.mxu0 %v1947
    %1963 = vmatpush.bf16.msra.mxu0 %v1946
    %1964 = vmatpush.bf16.msra.mxu0 %v1945
    %1965 = vmatpush.bf16.msra.mxu0 %v1944
    %1966 = vmatpush.bf16.msra.mxu0 %v1943
    %1967 = vmatmul.bf16.gmra.mxu0 %v1890
    %v1968 = vpop.f32.mrf.mxu0
    %v1969 = vadd.f32 %v1909, %v1968
    %v1970 = vpop.f32.mrf.mxu0
    %v1971 = vadd.f32 %v1909, %v1970
    %1972 = vdwg.mxu0
    %v1973 = vadd.f32 %v1733, %v1969
    %v1974 = vadd.f32 %v1734, %v1971
    %s1975 = scalar_lea.vmem %s2, 1
    %v1976 = vld [vmem:[%s1975] sm:$0x1]
    %s1977 = scalar_lea.vmem %s3, 1
    %v1978 = vld [vmem:[%s1977] sm:$0x1]
    %1979 = vadd.xlane.f32.xlu0 %v1973
    %v1980 = vpop.xlane.xlu0 %1979
    %1981 = vadd.xlane.f32.xlu0 %v1974
    %v1982 = vpop.xlane.xlu0 %1981
    %v1983 = vmul.f32 %v1980, 0.03125
    %v1984 = vmul.f32 %v1982, 0.03125
    %v1985 = vsub.f32 %v1973, %v1983
    %v1986 = vsub.f32 %v1974, %v1984
    %v1987 = vmul.f32 %v1985, %v65
    %v1988 = vmul.f32 %v1986, %v65
    %v1989 = vmul.f32 %v1987, %v1987
    %v1990 = vmul.f32 %v1988, %v1988
    %1991 = vadd.xlane.f32.xlu0 %v1989
    %v1992 = vpop.xlane.xlu0 %1991
    %1993 = vadd.xlane.f32.xlu0 %v1990
    %v1994 = vpop.xlane.xlu0 %1993
    %v1995 = vmul.f32 %v1992, 0.03125
    %v1996 = vmul.f32 %v1994, 0.03125
    %v1997 = vadd.f32 %v1995, 1e-05
    %v1998 = vadd.f32 %v1996, 1e-05
    %v1999 = vrsqrt.pop %v1997
    %v2000 = vmul.f32 %v1999, %v1997
    %v2001 = vmul.f32 %v2000, %v1999
    %v2002 = vmul.f32 0.5, %v2001
    %v2003 = vsub.f32 1.5, %v2002
    %v2004 = vmul.f32 %v1999, %v2003
    %vm2005 = vweird.f32 %v1997
    %vm2006 = vweird.f32 %v1999
    %vm2007 = vmor %vm2005, %vm2006
    %v2008 = vsel %vm2007, %v1999, %v2004
    %v2009 = vrsqrt.pop %v1998
    %v2010 = vmul.f32 %v2009, %v1998
    %v2011 = vmul.f32 %v2010, %v2009
    %v2012 = vmul.f32 0.5, %v2011
    %v2013 = vsub.f32 1.5, %v2012
    %v2014 = vmul.f32 %v2009, %v2013
    %vm2015 = vweird.f32 %v1998
    %vm2016 = vweird.f32 %v2009
    %vm2017 = vmor %vm2015, %vm2016
    %v2018 = vsel %vm2017, %v2009, %v2014
    %v2019 = vmul.f32 %v1987, %v2008
    %v2020 = vmul.f32 %v1988, %v2018
    %v2022 = vperm.slane %v1976, 0
    %v2024 = vmul.f32 %v2022, %v2019
    %v2025 = vmul.f32 %v2022, %v2020
    %v2027 = vperm.slane %v1978, 0
    %v2029 = vadd.f32 %v2024, %v2027
    %v2030 = vadd.f32 %v2025, %v2027
    %v2031 = vpack.c.bf16 %v2029, %v2029
    %v2032 = vpack.c.bf16 %v2030, %v2030
    %s2033 = scalar_lea.vmem %s4, 256
    %v2034 = vld [vmem:[%s2033] sm:$0xf]
    %v2035 = vld [vmem:[%s2033 + $0x4] sm:$0xf]
    %v2036 = vld [vmem:[%s2033 + $0x8] sm:$0xf]
    %v2037 = vld [vmem:[%s2033 + $0xc] sm:$0xf]
    %v2038 = vld [vmem:[%s2033 + $0x10] sm:$0xf]
    %v2039 = vld [vmem:[%s2033 + $0x14] sm:$0xf]
    %v2040 = vld [vmem:[%s2033 + $0x18] sm:$0xf]
    %v2041 = vld [vmem:[%s2033 + $0x1c] sm:$0xf]
    %v2042 = vld [vmem:[%s2033 + $0x20] sm:$0xf]
    %v2043 = vld [vmem:[%s2033 + $0x24] sm:$0xf]
    %v2044 = vld [vmem:[%s2033 + $0x28] sm:$0xf]
    %v2045 = vld [vmem:[%s2033 + $0x2c] sm:$0xf]
    %v2046 = vld [vmem:[%s2033 + $0x30] sm:$0xf]
    %v2047 = vld [vmem:[%s2033 + $0x34] sm:$0xf]
    %v2048 = vld [vmem:[%s2033 + $0x38] sm:$0xf]
    %v2049 = vld [vmem:[%s2033 + $0x3c] sm:$0xf]
    %v2050 = vld [vmem:[%s2033 + $0x40] sm:$0xf]
    %v2051 = vld [vmem:[%s2033 + $0x44] sm:$0xf]
    %v2052 = vld [vmem:[%s2033 + $0x48] sm:$0xf]
    %v2053 = vld [vmem:[%s2033 + $0x4c] sm:$0xf]
    %v2054 = vld [vmem:[%s2033 + $0x50] sm:$0xf]
    %v2055 = vld [vmem:[%s2033 + $0x54] sm:$0xf]
    %v2056 = vld [vmem:[%s2033 + $0x58] sm:$0xf]
    %v2057 = vld [vmem:[%s2033 + $0x5c] sm:$0xf]
    %v2058 = vld [vmem:[%s2033 + $0x60] sm:$0xf]
    %v2059 = vld [vmem:[%s2033 + $0x64] sm:$0xf]
    %v2060 = vld [vmem:[%s2033 + $0x68] sm:$0xf]
    %v2061 = vld [vmem:[%s2033 + $0x6c] sm:$0xf]
    %v2062 = vld [vmem:[%s2033 + $0x70] sm:$0xf]
    %v2063 = vld [vmem:[%s2033 + $0x74] sm:$0xf]
    %v2064 = vld [vmem:[%s2033 + $0x78] sm:$0xf]
    %v2065 = vld [vmem:[%s2033 + $0x7c] sm:$0xf]
    %v2066 = vld [vmem:[%s2033 + $0x80] sm:$0xf]
    %v2067 = vld [vmem:[%s2033 + $0x84] sm:$0xf]
    %v2068 = vld [vmem:[%s2033 + $0x88] sm:$0xf]
    %v2069 = vld [vmem:[%s2033 + $0x8c] sm:$0xf]
    %v2070 = vld [vmem:[%s2033 + $0x90] sm:$0xf]
    %v2071 = vld [vmem:[%s2033 + $0x94] sm:$0xf]
    %v2072 = vld [vmem:[%s2033 + $0x98] sm:$0xf]
    %v2073 = vld [vmem:[%s2033 + $0x9c] sm:$0xf]
    %v2074 = vld [vmem:[%s2033 + $0xa0] sm:$0xf]
    %v2075 = vld [vmem:[%s2033 + $0xa4] sm:$0xf]
    %v2076 = vld [vmem:[%s2033 + $0xa8] sm:$0xf]
    %v2077 = vld [vmem:[%s2033 + $0xac] sm:$0xf]
    %v2078 = vld [vmem:[%s2033 + $0xb0] sm:$0xf]
    %v2079 = vld [vmem:[%s2033 + $0xb4] sm:$0xf]
    %v2080 = vld [vmem:[%s2033 + $0xb8] sm:$0xf]
    %v2081 = vld [vmem:[%s2033 + $0xbc] sm:$0xf]
    %v2082 = vld [vmem:[%s2033 + $0xc0] sm:$0xf]
    %v2083 = vld [vmem:[%s2033 + $0xc4] sm:$0xf]
    %v2084 = vld [vmem:[%s2033 + $0xc8] sm:$0xf]
    %v2085 = vld [vmem:[%s2033 + $0xcc] sm:$0xf]
    %v2086 = vld [vmem:[%s2033 + $0xd0] sm:$0xf]
    %v2087 = vld [vmem:[%s2033 + $0xd4] sm:$0xf]
    %v2088 = vld [vmem:[%s2033 + $0xd8] sm:$0xf]
    %v2089 = vld [vmem:[%s2033 + $0xdc] sm:$0xf]
    %v2090 = vld [vmem:[%s2033 + $0xe0] sm:$0xf]
    %v2091 = vld [vmem:[%s2033 + $0xe4] sm:$0xf]
    %v2092 = vld [vmem:[%s2033 + $0xe8] sm:$0xf]
    %v2093 = vld [vmem:[%s2033 + $0xec] sm:$0xf]
    %v2094 = vld [vmem:[%s2033 + $0xf0] sm:$0xf]
    %v2095 = vld [vmem:[%s2033 + $0xf4] sm:$0xf]
    %v2096 = vld [vmem:[%s2033 + $0xf8] sm:$0xf]
    %v2097 = vld [vmem:[%s2033 + $0xfc] sm:$0xf]
    %v2100 = vunpack.c.l.b16 %v2031
    %v2101 = vunpack.c.l.b16 %v2032
    %v2102 = vpack.c.b16 %v2101, %v2100
    %v2120 = vunpack.c.l.b16 %v2034
    %v2121 = vunpack.c.l.b16 %v2035
    %v2122 = vunpack.c.l.b16 %v2036
    %v2123 = vunpack.c.l.b16 %v2037
    %v2124 = vunpack.c.l.b16 %v2038
    %v2125 = vunpack.c.l.b16 %v2039
    %v2126 = vunpack.c.l.b16 %v2040
    %v2127 = vunpack.c.l.b16 %v2041
    %v2128 = vunpack.c.l.b16 %v2042
    %v2129 = vunpack.c.l.b16 %v2043
    %v2130 = vunpack.c.l.b16 %v2044
    %v2131 = vunpack.c.l.b16 %v2045
    %v2132 = vunpack.c.l.b16 %v2046
    %v2133 = vunpack.c.l.b16 %v2047
    %v2134 = vunpack.c.l.b16 %v2048
    %v2135 = vunpack.c.l.b16 %v2049
    %v2136 = vpack.c.b16 %v2121, %v2120
    %v2137 = vpack.c.b16 %v2123, %v2122
    %v2138 = vpack.c.b16 %v2125, %v2124
    %v2139 = vpack.c.b16 %v2127, %v2126
    %v2140 = vpack.c.b16 %v2129, %v2128
    %v2141 = vpack.c.b16 %v2131, %v2130
    %v2142 = vpack.c.b16 %v2133, %v2132
    %v2143 = vpack.c.b16 %v2135, %v2134
    %2152 = vmatpush.bf16.msra.mxu0 %v2143
    %2153 = vmatpush.bf16.msra.mxu0 %v2142
    %2154 = vmatpush.bf16.msra.mxu0 %v2141
    %2155 = vmatpush.bf16.msra.mxu0 %v2140
    %2156 = vmatpush.bf16.msra.mxu0 %v2139
    %2157 = vmatpush.bf16.msra.mxu0 %v2138
    %2158 = vmatpush.bf16.msra.mxu0 %v2137
    %2159 = vmatpush.bf16.msra.mxu0 %v2136
    %2160 = vmatmul.bf16.gmra.mxu0 %v2102
    %v2161 = vpop.f32.mrf.mxu0
    %v2162 = vadd.f32 0.0, %v2161
    %v2163 = vpop.f32.mrf.mxu0
    %v2164 = vadd.f32 0.0, %v2163
    %2165 = vdwg.mxu0
    %v2182 = vunpack.c.l.b16 %v2050
    %v2183 = vunpack.c.l.b16 %v2051
    %v2184 = vunpack.c.l.b16 %v2052
    %v2185 = vunpack.c.l.b16 %v2053
    %v2186 = vunpack.c.l.b16 %v2054
    %v2187 = vunpack.c.l.b16 %v2055
    %v2188 = vunpack.c.l.b16 %v2056
    %v2189 = vunpack.c.l.b16 %v2057
    %v2190 = vunpack.c.l.b16 %v2058
    %v2191 = vunpack.c.l.b16 %v2059
    %v2192 = vunpack.c.l.b16 %v2060
    %v2193 = vunpack.c.l.b16 %v2061
    %v2194 = vunpack.c.l.b16 %v2062
    %v2195 = vunpack.c.l.b16 %v2063
    %v2196 = vunpack.c.l.b16 %v2064
    %v2197 = vunpack.c.l.b16 %v2065
    %v2198 = vpack.c.b16 %v2183, %v2182
    %v2199 = vpack.c.b16 %v2185, %v2184
    %v2200 = vpack.c.b16 %v2187, %v2186
    %v2201 = vpack.c.b16 %v2189, %v2188
    %v2202 = vpack.c.b16 %v2191, %v2190
    %v2203 = vpack.c.b16 %v2193, %v2192
    %v2204 = vpack.c.b16 %v2195, %v2194
    %v2205 = vpack.c.b16 %v2197, %v2196
    %2214 = vmatpush.bf16.msra.mxu0 %v2205
    %2215 = vmatpush.bf16.msra.mxu0 %v2204
    %2216 = vmatpush.bf16.msra.mxu0 %v2203
    %2217 = vmatpush.bf16.msra.mxu0 %v2202
    %2218 = vmatpush.bf16.msra.mxu0 %v2201
    %2219 = vmatpush.bf16.msra.mxu0 %v2200
    %2220 = vmatpush.bf16.msra.mxu0 %v2199
    %2221 = vmatpush.bf16.msra.mxu0 %v2198
    %2222 = vmatmul.bf16.gmra.mxu0 %v2102
    %v2223 = vpop.f32.mrf.mxu0
    %v2224 = vadd.f32 0.0, %v2223
    %v2225 = vpop.f32.mrf.mxu0
    %v2226 = vadd.f32 0.0, %v2225
    %2227 = vdwg.mxu0
    %v2244 = vunpack.c.l.b16 %v2066
    %v2245 = vunpack.c.l.b16 %v2067
    %v2246 = vunpack.c.l.b16 %v2068
    %v2247 = vunpack.c.l.b16 %v2069
    %v2248 = vunpack.c.l.b16 %v2070
    %v2249 = vunpack.c.l.b16 %v2071
    %v2250 = vunpack.c.l.b16 %v2072
    %v2251 = vunpack.c.l.b16 %v2073
    %v2252 = vunpack.c.l.b16 %v2074
    %v2253 = vunpack.c.l.b16 %v2075
    %v2254 = vunpack.c.l.b16 %v2076
    %v2255 = vunpack.c.l.b16 %v2077
    %v2256 = vunpack.c.l.b16 %v2078
    %v2257 = vunpack.c.l.b16 %v2079
    %v2258 = vunpack.c.l.b16 %v2080
    %v2259 = vunpack.c.l.b16 %v2081
    %v2260 = vpack.c.b16 %v2245, %v2244
    %v2261 = vpack.c.b16 %v2247, %v2246
    %v2262 = vpack.c.b16 %v2249, %v2248
    %v2263 = vpack.c.b16 %v2251, %v2250
    %v2264 = vpack.c.b16 %v2253, %v2252
    %v2265 = vpack.c.b16 %v2255, %v2254
    %v2266 = vpack.c.b16 %v2257, %v2256
    %v2267 = vpack.c.b16 %v2259, %v2258
    %2276 = vmatpush.bf16.msra.mxu0 %v2267
    %2277 = vmatpush.bf16.msra.mxu0 %v2266
    %2278 = vmatpush.bf16.msra.mxu0 %v2265
    %2279 = vmatpush.bf16.msra.mxu0 %v2264
    %2280 = vmatpush.bf16.msra.mxu0 %v2263
    %2281 = vmatpush.bf16.msra.mxu0 %v2262
    %2282 = vmatpush.bf16.msra.mxu0 %v2261
    %2283 = vmatpush.bf16.msra.mxu0 %v2260
    %2284 = vmatmul.bf16.gmra.mxu0 %v2102
    %v2285 = vpop.f32.mrf.mxu0
    %v2286 = vadd.f32 0.0, %v2285
    %v2287 = vpop.f32.mrf.mxu0
    %v2288 = vadd.f32 0.0, %v2287
    %2289 = vdwg.mxu0
    %v2306 = vunpack.c.l.b16 %v2082
    %v2307 = vunpack.c.l.b16 %v2083
    %v2308 = vunpack.c.l.b16 %v2084
    %v2309 = vunpack.c.l.b16 %v2085
    %v2310 = vunpack.c.l.b16 %v2086
    %v2311 = vunpack.c.l.b16 %v2087
    %v2312 = vunpack.c.l.b16 %v2088
    %v2313 = vunpack.c.l.b16 %v2089
    %v2314 = vunpack.c.l.b16 %v2090
    %v2315 = vunpack.c.l.b16 %v2091
    %v2316 = vunpack.c.l.b16 %v2092
    %v2317 = vunpack.c.l.b16 %v2093
    %v2318 = vunpack.c.l.b16 %v2094
    %v2319 = vunpack.c.l.b16 %v2095
    %v2320 = vunpack.c.l.b16 %v2096
    %v2321 = vunpack.c.l.b16 %v2097
    %v2322 = vpack.c.b16 %v2307, %v2306
    %v2323 = vpack.c.b16 %v2309, %v2308
    %v2324 = vpack.c.b16 %v2311, %v2310
    %v2325 = vpack.c.b16 %v2313, %v2312
    %v2326 = vpack.c.b16 %v2315, %v2314
    %v2327 = vpack.c.b16 %v2317, %v2316
    %v2328 = vpack.c.b16 %v2319, %v2318
    %v2329 = vpack.c.b16 %v2321, %v2320
    %2338 = vmatpush.bf16.msra.mxu0 %v2329
    %2339 = vmatpush.bf16.msra.mxu0 %v2328
    %2340 = vmatpush.bf16.msra.mxu0 %v2327
    %2341 = vmatpush.bf16.msra.mxu0 %v2326
    %2342 = vmatpush.bf16.msra.mxu0 %v2325
    %2343 = vmatpush.bf16.msra.mxu0 %v2324
    %2344 = vmatpush.bf16.msra.mxu0 %v2323
    %2345 = vmatpush.bf16.msra.mxu0 %v2322
    %2346 = vmatmul.bf16.gmra.mxu0 %v2102
    %v2347 = vpop.f32.mrf.mxu0
    %v2348 = vadd.f32 0.0, %v2347
    %v2349 = vpop.f32.mrf.mxu0
    %v2350 = vadd.f32 0.0, %v2349
    %2351 = vdwg.mxu0
    %s2352 = scalar_lea.vmem %s5, 256
    %v2353 = vld [vmem:[%s2352] sm:$0xf]
    %v2354 = vld [vmem:[%s2352 + $0x4] sm:$0xf]
    %v2355 = vld [vmem:[%s2352 + $0x8] sm:$0xf]
    %v2356 = vld [vmem:[%s2352 + $0xc] sm:$0xf]
    %v2357 = vld [vmem:[%s2352 + $0x10] sm:$0xf]
    %v2358 = vld [vmem:[%s2352 + $0x14] sm:$0xf]
    %v2359 = vld [vmem:[%s2352 + $0x18] sm:$0xf]
    %v2360 = vld [vmem:[%s2352 + $0x1c] sm:$0xf]
    %v2361 = vld [vmem:[%s2352 + $0x20] sm:$0xf]
    %v2362 = vld [vmem:[%s2352 + $0x24] sm:$0xf]
    %v2363 = vld [vmem:[%s2352 + $0x28] sm:$0xf]
    %v2364 = vld [vmem:[%s2352 + $0x2c] sm:$0xf]
    %v2365 = vld [vmem:[%s2352 + $0x30] sm:$0xf]
    %v2366 = vld [vmem:[%s2352 + $0x34] sm:$0xf]
    %v2367 = vld [vmem:[%s2352 + $0x38] sm:$0xf]
    %v2368 = vld [vmem:[%s2352 + $0x3c] sm:$0xf]
    %v2369 = vld [vmem:[%s2352 + $0x40] sm:$0xf]
    %v2370 = vld [vmem:[%s2352 + $0x44] sm:$0xf]
    %v2371 = vld [vmem:[%s2352 + $0x48] sm:$0xf]
    %v2372 = vld [vmem:[%s2352 + $0x4c] sm:$0xf]
    %v2373 = vld [vmem:[%s2352 + $0x50] sm:$0xf]
    %v2374 = vld [vmem:[%s2352 + $0x54] sm:$0xf]
    %v2375 = vld [vmem:[%s2352 + $0x58] sm:$0xf]
    %v2376 = vld [vmem:[%s2352 + $0x5c] sm:$0xf]
    %v2377 = vld [vmem:[%s2352 + $0x60] sm:$0xf]
    %v2378 = vld [vmem:[%s2352 + $0x64] sm:$0xf]
    %v2379 = vld [vmem:[%s2352 + $0x68] sm:$0xf]
    %v2380 = vld [vmem:[%s2352 + $0x6c] sm:$0xf]
    %v2381 = vld [vmem:[%s2352 + $0x70] sm:$0xf]
    %v2382 = vld [vmem:[%s2352 + $0x74] sm:$0xf]
    %v2383 = vld [vmem:[%s2352 + $0x78] sm:$0xf]
    %v2384 = vld [vmem:[%s2352 + $0x7c] sm:$0xf]
    %v2385 = vld [vmem:[%s2352 + $0x80] sm:$0xf]
    %v2386 = vld [vmem:[%s2352 + $0x84] sm:$0xf]
    %v2387 = vld [vmem:[%s2352 + $0x88] sm:$0xf]
    %v2388 = vld [vmem:[%s2352 + $0x8c] sm:$0xf]
    %v2389 = vld [vmem:[%s2352 + $0x90] sm:$0xf]
    %v2390 = vld [vmem:[%s2352 + $0x94] sm:$0xf]
    %v2391 = vld [vmem:[%s2352 + $0x98] sm:$0xf]
    %v2392 = vld [vmem:[%s2352 + $0x9c] sm:$0xf]
    %v2393 = vld [vmem:[%s2352 + $0xa0] sm:$0xf]
    %v2394 = vld [vmem:[%s2352 + $0xa4] sm:$0xf]
    %v2395 = vld [vmem:[%s2352 + $0xa8] sm:$0xf]
    %v2396 = vld [vmem:[%s2352 + $0xac] sm:$0xf]
    %v2397 = vld [vmem:[%s2352 + $0xb0] sm:$0xf]
    %v2398 = vld [vmem:[%s2352 + $0xb4] sm:$0xf]
    %v2399 = vld [vmem:[%s2352 + $0xb8] sm:$0xf]
    %v2400 = vld [vmem:[%s2352 + $0xbc] sm:$0xf]
    %v2401 = vld [vmem:[%s2352 + $0xc0] sm:$0xf]
    %v2402 = vld [vmem:[%s2352 + $0xc4] sm:$0xf]
    %v2403 = vld [vmem:[%s2352 + $0xc8] sm:$0xf]
    %v2404 = vld [vmem:[%s2352 + $0xcc] sm:$0xf]
    %v2405 = vld [vmem:[%s2352 + $0xd0] sm:$0xf]
    %v2406 = vld [vmem:[%s2352 + $0xd4] sm:$0xf]
    %v2407 = vld [vmem:[%s2352 + $0xd8] sm:$0xf]
    %v2408 = vld [vmem:[%s2352 + $0xdc] sm:$0xf]
    %v2409 = vld [vmem:[%s2352 + $0xe0] sm:$0xf]
    %v2410 = vld [vmem:[%s2352 + $0xe4] sm:$0xf]
    %v2411 = vld [vmem:[%s2352 + $0xe8] sm:$0xf]
    %v2412 = vld [vmem:[%s2352 + $0xec] sm:$0xf]
    %v2413 = vld [vmem:[%s2352 + $0xf0] sm:$0xf]
    %v2414 = vld [vmem:[%s2352 + $0xf4] sm:$0xf]
    %v2415 = vld [vmem:[%s2352 + $0xf8] sm:$0xf]
    %v2416 = vld [vmem:[%s2352 + $0xfc] sm:$0xf]
    %v2433 = vunpack.c.l.b16 %v2353
    %v2434 = vunpack.c.l.b16 %v2354
    %v2435 = vunpack.c.l.b16 %v2355
    %v2436 = vunpack.c.l.b16 %v2356
    %v2437 = vunpack.c.l.b16 %v2357
    %v2438 = vunpack.c.l.b16 %v2358
    %v2439 = vunpack.c.l.b16 %v2359
    %v2440 = vunpack.c.l.b16 %v2360
    %v2441 = vunpack.c.l.b16 %v2361
    %v2442 = vunpack.c.l.b16 %v2362
    %v2443 = vunpack.c.l.b16 %v2363
    %v2444 = vunpack.c.l.b16 %v2364
    %v2445 = vunpack.c.l.b16 %v2365
    %v2446 = vunpack.c.l.b16 %v2366
    %v2447 = vunpack.c.l.b16 %v2367
    %v2448 = vunpack.c.l.b16 %v2368
    %v2449 = vpack.c.b16 %v2434, %v2433
    %v2450 = vpack.c.b16 %v2436, %v2435
    %v2451 = vpack.c.b16 %v2438, %v2437
    %v2452 = vpack.c.b16 %v2440, %v2439
    %v2453 = vpack.c.b16 %v2442, %v2441
    %v2454 = vpack.c.b16 %v2444, %v2443
    %v2455 = vpack.c.b16 %v2446, %v2445
    %v2456 = vpack.c.b16 %v2448, %v2447
    %2465 = vmatpush.bf16.msra.mxu0 %v2456
    %2466 = vmatpush.bf16.msra.mxu0 %v2455
    %2467 = vmatpush.bf16.msra.mxu0 %v2454
    %2468 = vmatpush.bf16.msra.mxu0 %v2453
    %2469 = vmatpush.bf16.msra.mxu0 %v2452
    %2470 = vmatpush.bf16.msra.mxu0 %v2451
    %2471 = vmatpush.bf16.msra.mxu0 %v2450
    %2472 = vmatpush.bf16.msra.mxu0 %v2449
    %2473 = vmatmul.bf16.gmra.mxu0 %v2102
    %v2474 = vpop.f32.mrf.mxu0
    %v2475 = vadd.f32 0.0, %v2474
    %v2476 = vpop.f32.mrf.mxu0
    %v2477 = vadd.f32 0.0, %v2476
    %2478 = vdwg.mxu0
    %v2495 = vunpack.c.l.b16 %v2369
    %v2496 = vunpack.c.l.b16 %v2370
    %v2497 = vunpack.c.l.b16 %v2371
    %v2498 = vunpack.c.l.b16 %v2372
    %v2499 = vunpack.c.l.b16 %v2373
    %v2500 = vunpack.c.l.b16 %v2374
    %v2501 = vunpack.c.l.b16 %v2375
    %v2502 = vunpack.c.l.b16 %v2376
    %v2503 = vunpack.c.l.b16 %v2377
    %v2504 = vunpack.c.l.b16 %v2378
    %v2505 = vunpack.c.l.b16 %v2379
    %v2506 = vunpack.c.l.b16 %v2380
    %v2507 = vunpack.c.l.b16 %v2381
    %v2508 = vunpack.c.l.b16 %v2382
    %v2509 = vunpack.c.l.b16 %v2383
    %v2510 = vunpack.c.l.b16 %v2384
    %v2511 = vpack.c.b16 %v2496, %v2495
    %v2512 = vpack.c.b16 %v2498, %v2497
    %v2513 = vpack.c.b16 %v2500, %v2499
    %v2514 = vpack.c.b16 %v2502, %v2501
    %v2515 = vpack.c.b16 %v2504, %v2503
    %v2516 = vpack.c.b16 %v2506, %v2505
    %v2517 = vpack.c.b16 %v2508, %v2507
    %v2518 = vpack.c.b16 %v2510, %v2509
    %2527 = vmatpush.bf16.msra.mxu0 %v2518
    %2528 = vmatpush.bf16.msra.mxu0 %v2517
    %2529 = vmatpush.bf16.msra.mxu0 %v2516
    %2530 = vmatpush.bf16.msra.mxu0 %v2515
    %2531 = vmatpush.bf16.msra.mxu0 %v2514
    %2532 = vmatpush.bf16.msra.mxu0 %v2513
    %2533 = vmatpush.bf16.msra.mxu0 %v2512
    %2534 = vmatpush.bf16.msra.mxu0 %v2511
    %2535 = vmatmul.bf16.gmra.mxu0 %v2102
    %v2536 = vpop.f32.mrf.mxu0
    %v2537 = vadd.f32 0.0, %v2536
    %v2538 = vpop.f32.mrf.mxu0
    %v2539 = vadd.f32 0.0, %v2538
    %2540 = vdwg.mxu0
    %v2557 = vunpack.c.l.b16 %v2385
    %v2558 = vunpack.c.l.b16 %v2386
    %v2559 = vunpack.c.l.b16 %v2387
    %v2560 = vunpack.c.l.b16 %v2388
    %v2561 = vunpack.c.l.b16 %v2389
    %v2562 = vunpack.c.l.b16 %v2390
    %v2563 = vunpack.c.l.b16 %v2391
    %v2564 = vunpack.c.l.b16 %v2392
    %v2565 = vunpack.c.l.b16 %v2393
    %v2566 = vunpack.c.l.b16 %v2394
    %v2567 = vunpack.c.l.b16 %v2395
    %v2568 = vunpack.c.l.b16 %v2396
    %v2569 = vunpack.c.l.b16 %v2397
    %v2570 = vunpack.c.l.b16 %v2398
    %v2571 = vunpack.c.l.b16 %v2399
    %v2572 = vunpack.c.l.b16 %v2400
    %v2573 = vpack.c.b16 %v2558, %v2557
    %v2574 = vpack.c.b16 %v2560, %v2559
    %v2575 = vpack.c.b16 %v2562, %v2561
    %v2576 = vpack.c.b16 %v2564, %v2563
    %v2577 = vpack.c.b16 %v2566, %v2565
    %v2578 = vpack.c.b16 %v2568, %v2567
    %v2579 = vpack.c.b16 %v2570, %v2569
    %v2580 = vpack.c.b16 %v2572, %v2571
    %2589 = vmatpush.bf16.msra.mxu0 %v2580
    %2590 = vmatpush.bf16.msra.mxu0 %v2579
    %2591 = vmatpush.bf16.msra.mxu0 %v2578
    %2592 = vmatpush.bf16.msra.mxu0 %v2577
    %2593 = vmatpush.bf16.msra.mxu0 %v2576
    %2594 = vmatpush.bf16.msra.mxu0 %v2575
    %2595 = vmatpush.bf16.msra.mxu0 %v2574
    %2596 = vmatpush.bf16.msra.mxu0 %v2573
    %2597 = vmatmul.bf16.gmra.mxu0 %v2102
    %v2598 = vpop.f32.mrf.mxu0
    %v2599 = vadd.f32 0.0, %v2598
    %v2600 = vpop.f32.mrf.mxu0
    %v2601 = vadd.f32 0.0, %v2600
    %2602 = vdwg.mxu0
    %v2619 = vunpack.c.l.b16 %v2401
    %v2620 = vunpack.c.l.b16 %v2402
    %v2621 = vunpack.c.l.b16 %v2403
    %v2622 = vunpack.c.l.b16 %v2404
    %v2623 = vunpack.c.l.b16 %v2405
    %v2624 = vunpack.c.l.b16 %v2406
    %v2625 = vunpack.c.l.b16 %v2407
    %v2626 = vunpack.c.l.b16 %v2408
    %v2627 = vunpack.c.l.b16 %v2409
    %v2628 = vunpack.c.l.b16 %v2410
    %v2629 = vunpack.c.l.b16 %v2411
    %v2630 = vunpack.c.l.b16 %v2412
    %v2631 = vunpack.c.l.b16 %v2413
    %v2632 = vunpack.c.l.b16 %v2414
    %v2633 = vunpack.c.l.b16 %v2415
    %v2634 = vunpack.c.l.b16 %v2416
    %v2635 = vpack.c.b16 %v2620, %v2619
    %v2636 = vpack.c.b16 %v2622, %v2621
    %v2637 = vpack.c.b16 %v2624, %v2623
    %v2638 = vpack.c.b16 %v2626, %v2625
    %v2639 = vpack.c.b16 %v2628, %v2627
    %v2640 = vpack.c.b16 %v2630, %v2629
    %v2641 = vpack.c.b16 %v2632, %v2631
    %v2642 = vpack.c.b16 %v2634, %v2633
    %2651 = vmatpush.bf16.msra.mxu0 %v2642
    %2652 = vmatpush.bf16.msra.mxu0 %v2641
    %2653 = vmatpush.bf16.msra.mxu0 %v2640
    %2654 = vmatpush.bf16.msra.mxu0 %v2639
    %2655 = vmatpush.bf16.msra.mxu0 %v2638
    %2656 = vmatpush.bf16.msra.mxu0 %v2637
    %2657 = vmatpush.bf16.msra.mxu0 %v2636
    %2658 = vmatpush.bf16.msra.mxu0 %v2635
    %2659 = vmatmul.bf16.gmra.mxu0 %v2102
    %v2660 = vpop.f32.mrf.mxu0
    %v2661 = vadd.f32 0.0, %v2660
    %v2662 = vpop.f32.mrf.mxu0
    %v2663 = vadd.f32 0.0, %v2662
    %2664 = vdwg.mxu0
    %s2665 = scalar_lea.vmem %s6, 256
    %v2666 = vld [vmem:[%s2665] sm:$0xf]
    %v2667 = vld [vmem:[%s2665 + $0x4] sm:$0xf]
    %v2668 = vld [vmem:[%s2665 + $0x8] sm:$0xf]
    %v2669 = vld [vmem:[%s2665 + $0xc] sm:$0xf]
    %v2670 = vld [vmem:[%s2665 + $0x10] sm:$0xf]
    %v2671 = vld [vmem:[%s2665 + $0x14] sm:$0xf]
    %v2672 = vld [vmem:[%s2665 + $0x18] sm:$0xf]
    %v2673 = vld [vmem:[%s2665 + $0x1c] sm:$0xf]
    %v2674 = vld [vmem:[%s2665 + $0x20] sm:$0xf]
    %v2675 = vld [vmem:[%s2665 + $0x24] sm:$0xf]
    %v2676 = vld [vmem:[%s2665 + $0x28] sm:$0xf]
    %v2677 = vld [vmem:[%s2665 + $0x2c] sm:$0xf]
    %v2678 = vld [vmem:[%s2665 + $0x30] sm:$0xf]
    %v2679 = vld [vmem:[%s2665 + $0x34] sm:$0xf]
    %v2680 = vld [vmem:[%s2665 + $0x38] sm:$0xf]
    %v2681 = vld [vmem:[%s2665 + $0x3c] sm:$0xf]
    %v2682 = vld [vmem:[%s2665 + $0x40] sm:$0xf]
    %v2683 = vld [vmem:[%s2665 + $0x44] sm:$0xf]
    %v2684 = vld [vmem:[%s2665 + $0x48] sm:$0xf]
    %v2685 = vld [vmem:[%s2665 + $0x4c] sm:$0xf]
    %v2686 = vld [vmem:[%s2665 + $0x50] sm:$0xf]
    %v2687 = vld [vmem:[%s2665 + $0x54] sm:$0xf]
    %v2688 = vld [vmem:[%s2665 + $0x58] sm:$0xf]
    %v2689 = vld [vmem:[%s2665 + $0x5c] sm:$0xf]
    %v2690 = vld [vmem:[%s2665 + $0x60] sm:$0xf]
    %v2691 = vld [vmem:[%s2665 + $0x64] sm:$0xf]
    %v2692 = vld [vmem:[%s2665 + $0x68] sm:$0xf]
    %v2693 = vld [vmem:[%s2665 + $0x6c] sm:$0xf]
    %v2694 = vld [vmem:[%s2665 + $0x70] sm:$0xf]
    %v2695 = vld [vmem:[%s2665 + $0x74] sm:$0xf]
    %v2696 = vld [vmem:[%s2665 + $0x78] sm:$0xf]
    %v2697 = vld [vmem:[%s2665 + $0x7c] sm:$0xf]
    %v2698 = vld [vmem:[%s2665 + $0x80] sm:$0xf]
    %v2699 = vld [vmem:[%s2665 + $0x84] sm:$0xf]
    %v2700 = vld [vmem:[%s2665 + $0x88] sm:$0xf]
    %v2701 = vld [vmem:[%s2665 + $0x8c] sm:$0xf]
    %v2702 = vld [vmem:[%s2665 + $0x90] sm:$0xf]
    %v2703 = vld [vmem:[%s2665 + $0x94] sm:$0xf]
    %v2704 = vld [vmem:[%s2665 + $0x98] sm:$0xf]
    %v2705 = vld [vmem:[%s2665 + $0x9c] sm:$0xf]
    %v2706 = vld [vmem:[%s2665 + $0xa0] sm:$0xf]
    %v2707 = vld [vmem:[%s2665 + $0xa4] sm:$0xf]
    %v2708 = vld [vmem:[%s2665 + $0xa8] sm:$0xf]
    %v2709 = vld [vmem:[%s2665 + $0xac] sm:$0xf]
    %v2710 = vld [vmem:[%s2665 + $0xb0] sm:$0xf]
    %v2711 = vld [vmem:[%s2665 + $0xb4] sm:$0xf]
    %v2712 = vld [vmem:[%s2665 + $0xb8] sm:$0xf]
    %v2713 = vld [vmem:[%s2665 + $0xbc] sm:$0xf]
    %v2714 = vld [vmem:[%s2665 + $0xc0] sm:$0xf]
    %v2715 = vld [vmem:[%s2665 + $0xc4] sm:$0xf]
    %v2716 = vld [vmem:[%s2665 + $0xc8] sm:$0xf]
    %v2717 = vld [vmem:[%s2665 + $0xcc] sm:$0xf]
    %v2718 = vld [vmem:[%s2665 + $0xd0] sm:$0xf]
    %v2719 = vld [vmem:[%s2665 + $0xd4] sm:$0xf]
    %v2720 = vld [vmem:[%s2665 + $0xd8] sm:$0xf]
    %v2721 = vld [vmem:[%s2665 + $0xdc] sm:$0xf]
    %v2722 = vld [vmem:[%s2665 + $0xe0] sm:$0xf]
    %v2723 = vld [vmem:[%s2665 + $0xe4] sm:$0xf]
    %v2724 = vld [vmem:[%s2665 + $0xe8] sm:$0xf]
    %v2725 = vld [vmem:[%s2665 + $0xec] sm:$0xf]
    %v2726 = vld [vmem:[%s2665 + $0xf0] sm:$0xf]
    %v2727 = vld [vmem:[%s2665 + $0xf4] sm:$0xf]
    %v2728 = vld [vmem:[%s2665 + $0xf8] sm:$0xf]
    %v2729 = vld [vmem:[%s2665 + $0xfc] sm:$0xf]
    %v2746 = vunpack.c.l.b16 %v2666
    %v2747 = vunpack.c.l.b16 %v2667
    %v2748 = vunpack.c.l.b16 %v2668
    %v2749 = vunpack.c.l.b16 %v2669
    %v2750 = vunpack.c.l.b16 %v2670
    %v2751 = vunpack.c.l.b16 %v2671
    %v2752 = vunpack.c.l.b16 %v2672
    %v2753 = vunpack.c.l.b16 %v2673
    %v2754 = vunpack.c.l.b16 %v2674
    %v2755 = vunpack.c.l.b16 %v2675
    %v2756 = vunpack.c.l.b16 %v2676
    %v2757 = vunpack.c.l.b16 %v2677
    %v2758 = vunpack.c.l.b16 %v2678
    %v2759 = vunpack.c.l.b16 %v2679
    %v2760 = vunpack.c.l.b16 %v2680
    %v2761 = vunpack.c.l.b16 %v2681
    %v2762 = vpack.c.b16 %v2747, %v2746
    %v2763 = vpack.c.b16 %v2749, %v2748
    %v2764 = vpack.c.b16 %v2751, %v2750
    %v2765 = vpack.c.b16 %v2753, %v2752
    %v2766 = vpack.c.b16 %v2755, %v2754
    %v2767 = vpack.c.b16 %v2757, %v2756
    %v2768 = vpack.c.b16 %v2759, %v2758
    %v2769 = vpack.c.b16 %v2761, %v2760
    %2778 = vmatpush.bf16.msra.mxu0 %v2769
    %2779 = vmatpush.bf16.msra.mxu0 %v2768
    %2780 = vmatpush.bf16.msra.mxu0 %v2767
    %2781 = vmatpush.bf16.msra.mxu0 %v2766
    %2782 = vmatpush.bf16.msra.mxu0 %v2765
    %2783 = vmatpush.bf16.msra.mxu0 %v2764
    %2784 = vmatpush.bf16.msra.mxu0 %v2763
    %2785 = vmatpush.bf16.msra.mxu0 %v2762
    %2786 = vmatmul.bf16.gmra.mxu0 %v2102
    %v2787 = vpop.f32.mrf.mxu0
    %v2788 = vadd.f32 0.0, %v2787
    %v2789 = vpop.f32.mrf.mxu0
    %v2790 = vadd.f32 0.0, %v2789
    %2791 = vdwg.mxu0
    %v2808 = vunpack.c.l.b16 %v2682
    %v2809 = vunpack.c.l.b16 %v2683
    %v2810 = vunpack.c.l.b16 %v2684
    %v2811 = vunpack.c.l.b16 %v2685
    %v2812 = vunpack.c.l.b16 %v2686
    %v2813 = vunpack.c.l.b16 %v2687
    %v2814 = vunpack.c.l.b16 %v2688
    %v2815 = vunpack.c.l.b16 %v2689
    %v2816 = vunpack.c.l.b16 %v2690
    %v2817 = vunpack.c.l.b16 %v2691
    %v2818 = vunpack.c.l.b16 %v2692
    %v2819 = vunpack.c.l.b16 %v2693
    %v2820 = vunpack.c.l.b16 %v2694
    %v2821 = vunpack.c.l.b16 %v2695
    %v2822 = vunpack.c.l.b16 %v2696
    %v2823 = vunpack.c.l.b16 %v2697
    %v2824 = vpack.c.b16 %v2809, %v2808
    %v2825 = vpack.c.b16 %v2811, %v2810
    %v2826 = vpack.c.b16 %v2813, %v2812
    %v2827 = vpack.c.b16 %v2815, %v2814
    %v2828 = vpack.c.b16 %v2817, %v2816
    %v2829 = vpack.c.b16 %v2819, %v2818
    %v2830 = vpack.c.b16 %v2821, %v2820
    %v2831 = vpack.c.b16 %v2823, %v2822
    %2840 = vmatpush.bf16.msra.mxu0 %v2831
    %2841 = vmatpush.bf16.msra.mxu0 %v2830
    %2842 = vmatpush.bf16.msra.mxu0 %v2829
    %2843 = vmatpush.bf16.msra.mxu0 %v2828
    %2844 = vmatpush.bf16.msra.mxu0 %v2827
    %2845 = vmatpush.bf16.msra.mxu0 %v2826
    %2846 = vmatpush.bf16.msra.mxu0 %v2825
    %2847 = vmatpush.bf16.msra.mxu0 %v2824
    %2848 = vmatmul.bf16.gmra.mxu0 %v2102
    %v2849 = vpop.f32.mrf.mxu0
    %v2850 = vadd.f32 0.0, %v2849
    %v2851 = vpop.f32.mrf.mxu0
    %v2852 = vadd.f32 0.0, %v2851
    %2853 = vdwg.mxu0
    %v2870 = vunpack.c.l.b16 %v2698
    %v2871 = vunpack.c.l.b16 %v2699
    %v2872 = vunpack.c.l.b16 %v2700
    %v2873 = vunpack.c.l.b16 %v2701
    %v2874 = vunpack.c.l.b16 %v2702
    %v2875 = vunpack.c.l.b16 %v2703
    %v2876 = vunpack.c.l.b16 %v2704
    %v2877 = vunpack.c.l.b16 %v2705
    %v2878 = vunpack.c.l.b16 %v2706
    %v2879 = vunpack.c.l.b16 %v2707
    %v2880 = vunpack.c.l.b16 %v2708
    %v2881 = vunpack.c.l.b16 %v2709
    %v2882 = vunpack.c.l.b16 %v2710
    %v2883 = vunpack.c.l.b16 %v2711
    %v2884 = vunpack.c.l.b16 %v2712
    %v2885 = vunpack.c.l.b16 %v2713
    %v2886 = vpack.c.b16 %v2871, %v2870
    %v2887 = vpack.c.b16 %v2873, %v2872
    %v2888 = vpack.c.b16 %v2875, %v2874
    %v2889 = vpack.c.b16 %v2877, %v2876
    %v2890 = vpack.c.b16 %v2879, %v2878
    %v2891 = vpack.c.b16 %v2881, %v2880
    %v2892 = vpack.c.b16 %v2883, %v2882
    %v2893 = vpack.c.b16 %v2885, %v2884
    %2902 = vmatpush.bf16.msra.mxu0 %v2893
    %2903 = vmatpush.bf16.msra.mxu0 %v2892
    %2904 = vmatpush.bf16.msra.mxu0 %v2891
    %2905 = vmatpush.bf16.msra.mxu0 %v2890
    %2906 = vmatpush.bf16.msra.mxu0 %v2889
    %2907 = vmatpush.bf16.msra.mxu0 %v2888
    %2908 = vmatpush.bf16.msra.mxu0 %v2887
    %2909 = vmatpush.bf16.msra.mxu0 %v2886
    %2910 = vmatmul.bf16.gmra.mxu0 %v2102
    %v2911 = vpop.f32.mrf.mxu0
    %v2912 = vadd.f32 0.0, %v2911
    %v2913 = vpop.f32.mrf.mxu0
    %v2914 = vadd.f32 0.0, %v2913
    %2915 = vdwg.mxu0
    %v2932 = vunpack.c.l.b16 %v2714
    %v2933 = vunpack.c.l.b16 %v2715
    %v2934 = vunpack.c.l.b16 %v2716
    %v2935 = vunpack.c.l.b16 %v2717
    %v2936 = vunpack.c.l.b16 %v2718
    %v2937 = vunpack.c.l.b16 %v2719
    %v2938 = vunpack.c.l.b16 %v2720
    %v2939 = vunpack.c.l.b16 %v2721
    %v2940 = vunpack.c.l.b16 %v2722
    %v2941 = vunpack.c.l.b16 %v2723
    %v2942 = vunpack.c.l.b16 %v2724
    %v2943 = vunpack.c.l.b16 %v2725
    %v2944 = vunpack.c.l.b16 %v2726
    %v2945 = vunpack.c.l.b16 %v2727
    %v2946 = vunpack.c.l.b16 %v2728
    %v2947 = vunpack.c.l.b16 %v2729
    %v2948 = vpack.c.b16 %v2933, %v2932
    %v2949 = vpack.c.b16 %v2935, %v2934
    %v2950 = vpack.c.b16 %v2937, %v2936
    %v2951 = vpack.c.b16 %v2939, %v2938
    %v2952 = vpack.c.b16 %v2941, %v2940
    %v2953 = vpack.c.b16 %v2943, %v2942
    %v2954 = vpack.c.b16 %v2945, %v2944
    %v2955 = vpack.c.b16 %v2947, %v2946
    %2964 = vmatpush.bf16.msra.mxu0 %v2955
    %2965 = vmatpush.bf16.msra.mxu0 %v2954
    %2966 = vmatpush.bf16.msra.mxu0 %v2953
    %2967 = vmatpush.bf16.msra.mxu0 %v2952
    %2968 = vmatpush.bf16.msra.mxu0 %v2951
    %2969 = vmatpush.bf16.msra.mxu0 %v2950
    %2970 = vmatpush.bf16.msra.mxu0 %v2949
    %2971 = vmatpush.bf16.msra.mxu0 %v2948
    %2972 = vmatmul.bf16.gmra.mxu0 %v2102
    %v2973 = vpop.f32.mrf.mxu0
    %v2974 = vadd.f32 0.0, %v2973
    %v2975 = vpop.f32.mrf.mxu0
    %v2976 = vadd.f32 0.0, %v2975
    %2977 = vdwg.mxu0
    %v2978 = vpack.c.bf16 %v2162, %v2162
    %v2979 = vpack.c.bf16 %v2164, %v2164
    %v2980 = vpack.c.bf16 %v2224, %v2224
    %v2981 = vpack.c.bf16 %v2226, %v2226
    %v2982 = vpack.c.bf16 %v2286, %v2286
    %v2983 = vpack.c.bf16 %v2288, %v2288
    %v2984 = vpack.c.bf16 %v2348, %v2348
    %v2985 = vpack.c.bf16 %v2350, %v2350
    %v2986 = vpack.c.bf16 %v2475, %v2475
    %v2987 = vpack.c.bf16 %v2477, %v2477
    %v2988 = vpack.c.bf16 %v2537, %v2537
    %v2989 = vpack.c.bf16 %v2539, %v2539
    %v2990 = vpack.c.bf16 %v2599, %v2599
    %v2991 = vpack.c.bf16 %v2601, %v2601
    %v2992 = vpack.c.bf16 %v2661, %v2661
    %v2993 = vpack.c.bf16 %v2663, %v2663
    %v2994 = vpack.c.bf16 %v2788, %v2788
    %v2995 = vpack.c.bf16 %v2790, %v2790
    %v2996 = vpack.c.bf16 %v2850, %v2850
    %v2997 = vpack.c.bf16 %v2852, %v2852
    %v2998 = vpack.c.bf16 %v2912, %v2912
    %v2999 = vpack.c.bf16 %v2914, %v2914
    %v3000 = vpack.c.bf16 %v2974, %v2974
    %v3001 = vpack.c.bf16 %v2976, %v2976
    %v3003 = vsel %vm1191, %v2978, 0
    %v3006 = vsel %vm1191, %v2986, 0
    %3008 = vmatpush.bf16.xpose.msra.mxu0 0
    %3009 = vmatpush.bf16.xpose.msra.mxu0 0
    %3010 = vmatpush.bf16.xpose.msra.mxu0 0
    %3011 = vmatpush.bf16.xpose.msra.mxu0 0
    %3012 = vmatpush.bf16.xpose.msra.mxu0 0
    %3013 = vmatpush.bf16.xpose.msra.mxu0 0
    %3014 = vmatpush.bf16.xpose.msra.mxu0 0
    %3015 = vmatpush.bf16.xpose.msra.mxu0 %v3006
    %3016 = vmatmul.bf16.gmra.mxu0 %v3003
    %v3017 = vpop.f32.mrf.mxu0
    %v3018 = vadd.f32 0.0, %v3017
    %v3019 = vpop.f32.mrf.mxu0
    %3020 = vdwg.mxu0
    %v3022 = vsel %vm1191, %v2979, 0
    %v3025 = vsel %vm1191, %v2987, 0
    %3027 = vmatpush.bf16.xpose.msra.mxu0 0
    %3028 = vmatpush.bf16.xpose.msra.mxu0 0
    %3029 = vmatpush.bf16.xpose.msra.mxu0 0
    %3030 = vmatpush.bf16.xpose.msra.mxu0 0
    %3031 = vmatpush.bf16.xpose.msra.mxu0 0
    %3032 = vmatpush.bf16.xpose.msra.mxu0 0
    %3033 = vmatpush.bf16.xpose.msra.mxu0 0
    %3034 = vmatpush.bf16.xpose.msra.mxu0 %v3025
    %3035 = vmatmul.bf16.gmra.mxu0 %v3022
    %v3036 = vpop.f32.mrf.mxu0
    %v3037 = vadd.f32 0.0, %v3036
    %v3038 = vpop.f32.mrf.mxu0
    %3039 = vdwg.mxu0
    %v3041 = vsel %vm1191, %v2980, 0
    %v3044 = vsel %vm1191, %v2988, 0
    %3046 = vmatpush.bf16.xpose.msra.mxu0 0
    %3047 = vmatpush.bf16.xpose.msra.mxu0 0
    %3048 = vmatpush.bf16.xpose.msra.mxu0 0
    %3049 = vmatpush.bf16.xpose.msra.mxu0 0
    %3050 = vmatpush.bf16.xpose.msra.mxu0 0
    %3051 = vmatpush.bf16.xpose.msra.mxu0 0
    %3052 = vmatpush.bf16.xpose.msra.mxu0 0
    %3053 = vmatpush.bf16.xpose.msra.mxu0 %v3044
    %3054 = vmatmul.bf16.gmra.mxu0 %v3041
    %v3055 = vpop.f32.mrf.mxu0
    %v3056 = vadd.f32 0.0, %v3055
    %v3057 = vpop.f32.mrf.mxu0
    %3058 = vdwg.mxu0
    %v3060 = vsel %vm1191, %v2981, 0
    %v3063 = vsel %vm1191, %v2989, 0
    %3065 = vmatpush.bf16.xpose.msra.mxu0 0
    %3066 = vmatpush.bf16.xpose.msra.mxu0 0
    %3067 = vmatpush.bf16.xpose.msra.mxu0 0
    %3068 = vmatpush.bf16.xpose.msra.mxu0 0
    %3069 = vmatpush.bf16.xpose.msra.mxu0 0
    %3070 = vmatpush.bf16.xpose.msra.mxu0 0
    %3071 = vmatpush.bf16.xpose.msra.mxu0 0
    %3072 = vmatpush.bf16.xpose.msra.mxu0 %v3063
    %3073 = vmatmul.bf16.gmra.mxu0 %v3060
    %v3074 = vpop.f32.mrf.mxu0
    %v3075 = vadd.f32 0.0, %v3074
    %v3076 = vpop.f32.mrf.mxu0
    %3077 = vdwg.mxu0
    %v3079 = vsel %vm1191, %v2982, 0
    %v3082 = vsel %vm1191, %v2990, 0
    %3084 = vmatpush.bf16.xpose.msra.mxu0 0
    %3085 = vmatpush.bf16.xpose.msra.mxu0 0
    %3086 = vmatpush.bf16.xpose.msra.mxu0 0
    %3087 = vmatpush.bf16.xpose.msra.mxu0 0
    %3088 = vmatpush.bf16.xpose.msra.mxu0 0
    %3089 = vmatpush.bf16.xpose.msra.mxu0 0
    %3090 = vmatpush.bf16.xpose.msra.mxu0 0
    %3091 = vmatpush.bf16.xpose.msra.mxu0 %v3082
    %3092 = vmatmul.bf16.gmra.mxu0 %v3079
    %v3093 = vpop.f32.mrf.mxu0
    %v3094 = vadd.f32 0.0, %v3093
    %v3095 = vpop.f32.mrf.mxu0
    %3096 = vdwg.mxu0
    %v3098 = vsel %vm1191, %v2983, 0
    %v3101 = vsel %vm1191, %v2991, 0
    %3103 = vmatpush.bf16.xpose.msra.mxu0 0
    %3104 = vmatpush.bf16.xpose.msra.mxu0 0
    %3105 = vmatpush.bf16.xpose.msra.mxu0 0
    %3106 = vmatpush.bf16.xpose.msra.mxu0 0
    %3107 = vmatpush.bf16.xpose.msra.mxu0 0
    %3108 = vmatpush.bf16.xpose.msra.mxu0 0
    %3109 = vmatpush.bf16.xpose.msra.mxu0 0
    %3110 = vmatpush.bf16.xpose.msra.mxu0 %v3101
    %3111 = vmatmul.bf16.gmra.mxu0 %v3098
    %v3112 = vpop.f32.mrf.mxu0
    %v3113 = vadd.f32 0.0, %v3112
    %v3114 = vpop.f32.mrf.mxu0
    %3115 = vdwg.mxu0
    %v3117 = vsel %vm1191, %v2984, 0
    %v3120 = vsel %vm1191, %v2992, 0
    %3122 = vmatpush.bf16.xpose.msra.mxu0 0
    %3123 = vmatpush.bf16.xpose.msra.mxu0 0
    %3124 = vmatpush.bf16.xpose.msra.mxu0 0
    %3125 = vmatpush.bf16.xpose.msra.mxu0 0
    %3126 = vmatpush.bf16.xpose.msra.mxu0 0
    %3127 = vmatpush.bf16.xpose.msra.mxu0 0
    %3128 = vmatpush.bf16.xpose.msra.mxu0 0
    %3129 = vmatpush.bf16.xpose.msra.mxu0 %v3120
    %3130 = vmatmul.bf16.gmra.mxu0 %v3117
    %v3131 = vpop.f32.mrf.mxu0
    %v3132 = vadd.f32 0.0, %v3131
    %v3133 = vpop.f32.mrf.mxu0
    %3134 = vdwg.mxu0
    %v3136 = vsel %vm1191, %v2985, 0
    %v3139 = vsel %vm1191, %v2993, 0
    %3141 = vmatpush.bf16.xpose.msra.mxu0 0
    %3142 = vmatpush.bf16.xpose.msra.mxu0 0
    %3143 = vmatpush.bf16.xpose.msra.mxu0 0
    %3144 = vmatpush.bf16.xpose.msra.mxu0 0
    %3145 = vmatpush.bf16.xpose.msra.mxu0 0
    %3146 = vmatpush.bf16.xpose.msra.mxu0 0
    %3147 = vmatpush.bf16.xpose.msra.mxu0 0
    %3148 = vmatpush.bf16.xpose.msra.mxu0 %v3139
    %3149 = vmatmul.bf16.gmra.mxu0 %v3136
    %v3150 = vpop.f32.mrf.mxu0
    %v3151 = vadd.f32 0.0, %v3150
    %v3152 = vpop.f32.mrf.mxu0
    %3153 = vdwg.mxu0
    %v3154 = vmul.f32 %v3018, 0.35355338
    %v3155 = vmul.f32 %v3037, 0.35355338
    %v3156 = vmul.f32 %v3056, 0.35355338
    %v3157 = vmul.f32 %v3075, 0.35355338
    %v3158 = vmul.f32 %v3094, 0.35355338
    %v3159 = vmul.f32 %v3113, 0.35355338
    %v3160 = vmul.f32 %v3132, 0.35355338
    %v3161 = vmul.f32 %v3151, 0.35355338
    %v3162 = vadd.f32 %v3154, %v168
    %v3163 = vadd.f32 %v3155, %v168
    %v3164 = vadd.f32 %v3156, %v168
    %v3165 = vadd.f32 %v3157, %v168
    %v3166 = vadd.f32 %v3158, %v168
    %v3167 = vadd.f32 %v3159, %v168
    %v3168 = vadd.f32 %v3160, %v168
    %v3169 = vadd.f32 %v3161, %v168
    %v3170 = vsel %vm1191, %v3162, -inf
    %3171 = vmax.xlane.f32.xlu0 %v3170
    %v3172 = vpop.xlane.xlu0 %3171
    %v3173 = vsel %vm1191, %v3163, -inf
    %3174 = vmax.xlane.f32.xlu0 %v3173
    %v3175 = vpop.xlane.xlu0 %3174
    %v3176 = vsel %vm1191, %v3164, -inf
    %3177 = vmax.xlane.f32.xlu0 %v3176
    %v3178 = vpop.xlane.xlu0 %3177
    %v3179 = vsel %vm1191, %v3165, -inf
    %3180 = vmax.xlane.f32.xlu0 %v3179
    %v3181 = vpop.xlane.xlu0 %3180
    %v3182 = vsel %vm1191, %v3166, -inf
    %3183 = vmax.xlane.f32.xlu0 %v3182
    %v3184 = vpop.xlane.xlu0 %3183
    %v3185 = vsel %vm1191, %v3167, -inf
    %3186 = vmax.xlane.f32.xlu0 %v3185
    %v3187 = vpop.xlane.xlu0 %3186
    %v3188 = vsel %vm1191, %v3168, -inf
    %3189 = vmax.xlane.f32.xlu0 %v3188
    %v3190 = vpop.xlane.xlu0 %3189
    %v3191 = vsel %vm1191, %v3169, -inf
    %3192 = vmax.xlane.f32.xlu0 %v3191
    %v3193 = vpop.xlane.xlu0 %3192
    %v3194 = vsub.f32 %v3162, %v3172
    %v3195 = vsub.f32 %v3163, %v3175
    %v3196 = vsub.f32 %v3164, %v3178
    %v3197 = vsub.f32 %v3165, %v3181
    %v3198 = vsub.f32 %v3166, %v3184
    %v3199 = vsub.f32 %v3167, %v3187
    %v3200 = vsub.f32 %v3168, %v3190
    %v3201 = vsub.f32 %v3169, %v3193
    %v3202 = vmul.f32 %v3194, 1.442695
    %v3203 = vpow.pop %v3202
    %v3204 = vmul.f32 %v3195, 1.442695
    %v3205 = vpow.pop %v3204
    %v3206 = vmul.f32 %v3196, 1.442695
    %v3207 = vpow.pop %v3206
    %v3208 = vmul.f32 %v3197, 1.442695
    %v3209 = vpow.pop %v3208
    %v3210 = vmul.f32 %v3198, 1.442695
    %v3211 = vpow.pop %v3210
    %v3212 = vmul.f32 %v3199, 1.442695
    %v3213 = vpow.pop %v3212
    %v3214 = vmul.f32 %v3200, 1.442695
    %v3215 = vpow.pop %v3214
    %v3216 = vmul.f32 %v3201, 1.442695
    %v3217 = vpow.pop %v3216
    %v3218 = vsel %vm1191, %v3203, 0.0
    %3219 = vadd.xlane.f32.xlu0 %v3218
    %v3220 = vpop.xlane.xlu0 %3219
    %v3221 = vsel %vm1191, %v3205, 0.0
    %3222 = vadd.xlane.f32.xlu0 %v3221
    %v3223 = vpop.xlane.xlu0 %3222
    %v3224 = vsel %vm1191, %v3207, 0.0
    %3225 = vadd.xlane.f32.xlu0 %v3224
    %v3226 = vpop.xlane.xlu0 %3225
    %v3227 = vsel %vm1191, %v3209, 0.0
    %3228 = vadd.xlane.f32.xlu0 %v3227
    %v3229 = vpop.xlane.xlu0 %3228
    %v3230 = vsel %vm1191, %v3211, 0.0
    %3231 = vadd.xlane.f32.xlu0 %v3230
    %v3232 = vpop.xlane.xlu0 %3231
    %v3233 = vsel %vm1191, %v3213, 0.0
    %3234 = vadd.xlane.f32.xlu0 %v3233
    %v3235 = vpop.xlane.xlu0 %3234
    %v3236 = vsel %vm1191, %v3215, 0.0
    %3237 = vadd.xlane.f32.xlu0 %v3236
    %v3238 = vpop.xlane.xlu0 %3237
    %v3239 = vsel %vm1191, %v3217, 0.0
    %3240 = vadd.xlane.f32.xlu0 %v3239
    %v3241 = vpop.xlane.xlu0 %3240
    %v3242 = vrcp.pop %v3220
    %v3243 = vrcp.pop %v3223
    %v3244 = vrcp.pop %v3226
    %v3245 = vrcp.pop %v3229
    %v3246 = vrcp.pop %v3232
    %v3247 = vrcp.pop %v3235
    %v3248 = vrcp.pop %v3238
    %v3249 = vrcp.pop %v3241
    %v3250 = vmul.f32 %v3203, %v3242
    %v3251 = vmul.f32 %v3205, %v3243
    %v3252 = vmul.f32 %v3207, %v3244
    %v3253 = vmul.f32 %v3209, %v3245
    %v3254 = vmul.f32 %v3211, %v3246
    %v3255 = vmul.f32 %v3213, %v3247
    %v3256 = vmul.f32 %v3215, %v3248
    %v3257 = vmul.f32 %v3217, %v3249
    %v3258 = vpack.c.bf16 %v3250, %v3250
    %v3259 = vpack.c.bf16 %v3251, %v3251
    %v3260 = vpack.c.bf16 %v3252, %v3252
    %v3261 = vpack.c.bf16 %v3253, %v3253
    %v3262 = vpack.c.bf16 %v3254, %v3254
    %v3263 = vpack.c.bf16 %v3255, %v3255
    %v3264 = vpack.c.bf16 %v3256, %v3256
    %v3265 = vpack.c.bf16 %v3257, %v3257
    %v3267 = vsel %vm1191, %v3258, 0
    %v3270 = vsel %vm1459, %v2994, 0
    %3272 = vmatpush.bf16.msra.mxu0 0
    %3273 = vmatpush.bf16.msra.mxu0 0
    %3274 = vmatpush.bf16.msra.mxu0 0
    %3275 = vmatpush.bf16.msra.mxu0 0
    %3276 = vmatpush.bf16.msra.mxu0 0
    %3277 = vmatpush.bf16.msra.mxu0 0
    %3278 = vmatpush.bf16.msra.mxu0 0
    %3279 = vmatpush.bf16.msra.mxu0 %v3270
    %3280 = vmatmul.bf16.gmra.mxu0 %v3267
    %v3281 = vpop.f32.mrf.mxu0
    %v3282 = vadd.f32 0.0, %v3281
    %v3283 = vpop.f32.mrf.mxu0
    %3284 = vdwg.mxu0
    %v3286 = vsel %vm1191, %v3259, 0
    %v3289 = vsel %vm1459, %v2995, 0
    %3291 = vmatpush.bf16.msra.mxu0 0
    %3292 = vmatpush.bf16.msra.mxu0 0
    %3293 = vmatpush.bf16.msra.mxu0 0
    %3294 = vmatpush.bf16.msra.mxu0 0
    %3295 = vmatpush.bf16.msra.mxu0 0
    %3296 = vmatpush.bf16.msra.mxu0 0
    %3297 = vmatpush.bf16.msra.mxu0 0
    %3298 = vmatpush.bf16.msra.mxu0 %v3289
    %3299 = vmatmul.bf16.gmra.mxu0 %v3286
    %v3300 = vpop.f32.mrf.mxu0
    %v3301 = vadd.f32 0.0, %v3300
    %v3302 = vpop.f32.mrf.mxu0
    %3303 = vdwg.mxu0
    %v3305 = vsel %vm1191, %v3260, 0
    %v3308 = vsel %vm1459, %v2996, 0
    %3310 = vmatpush.bf16.msra.mxu0 0
    %3311 = vmatpush.bf16.msra.mxu0 0
    %3312 = vmatpush.bf16.msra.mxu0 0
    %3313 = vmatpush.bf16.msra.mxu0 0
    %3314 = vmatpush.bf16.msra.mxu0 0
    %3315 = vmatpush.bf16.msra.mxu0 0
    %3316 = vmatpush.bf16.msra.mxu0 0
    %3317 = vmatpush.bf16.msra.mxu0 %v3308
    %3318 = vmatmul.bf16.gmra.mxu0 %v3305
    %v3319 = vpop.f32.mrf.mxu0
    %v3320 = vadd.f32 0.0, %v3319
    %v3321 = vpop.f32.mrf.mxu0
    %3322 = vdwg.mxu0
    %v3324 = vsel %vm1191, %v3261, 0
    %v3327 = vsel %vm1459, %v2997, 0
    %3329 = vmatpush.bf16.msra.mxu0 0
    %3330 = vmatpush.bf16.msra.mxu0 0
    %3331 = vmatpush.bf16.msra.mxu0 0
    %3332 = vmatpush.bf16.msra.mxu0 0
    %3333 = vmatpush.bf16.msra.mxu0 0
    %3334 = vmatpush.bf16.msra.mxu0 0
    %3335 = vmatpush.bf16.msra.mxu0 0
    %3336 = vmatpush.bf16.msra.mxu0 %v3327
    %3337 = vmatmul.bf16.gmra.mxu0 %v3324
    %v3338 = vpop.f32.mrf.mxu0
    %v3339 = vadd.f32 0.0, %v3338
    %v3340 = vpop.f32.mrf.mxu0
    %3341 = vdwg.mxu0
    %v3343 = vsel %vm1191, %v3262, 0
    %v3346 = vsel %vm1459, %v2998, 0
    %3348 = vmatpush.bf16.msra.mxu0 0
    %3349 = vmatpush.bf16.msra.mxu0 0
    %3350 = vmatpush.bf16.msra.mxu0 0
    %3351 = vmatpush.bf16.msra.mxu0 0
    %3352 = vmatpush.bf16.msra.mxu0 0
    %3353 = vmatpush.bf16.msra.mxu0 0
    %3354 = vmatpush.bf16.msra.mxu0 0
    %3355 = vmatpush.bf16.msra.mxu0 %v3346
    %3356 = vmatmul.bf16.gmra.mxu0 %v3343
    %v3357 = vpop.f32.mrf.mxu0
    %v3358 = vadd.f32 0.0, %v3357
    %v3359 = vpop.f32.mrf.mxu0
    %3360 = vdwg.mxu0
    %v3362 = vsel %vm1191, %v3263, 0
    %v3365 = vsel %vm1459, %v2999, 0
    %3367 = vmatpush.bf16.msra.mxu0 0
    %3368 = vmatpush.bf16.msra.mxu0 0
    %3369 = vmatpush.bf16.msra.mxu0 0
    %3370 = vmatpush.bf16.msra.mxu0 0
    %3371 = vmatpush.bf16.msra.mxu0 0
    %3372 = vmatpush.bf16.msra.mxu0 0
    %3373 = vmatpush.bf16.msra.mxu0 0
    %3374 = vmatpush.bf16.msra.mxu0 %v3365
    %3375 = vmatmul.bf16.gmra.mxu0 %v3362
    %v3376 = vpop.f32.mrf.mxu0
    %v3377 = vadd.f32 0.0, %v3376
    %v3378 = vpop.f32.mrf.mxu0
    %3379 = vdwg.mxu0
    %v3381 = vsel %vm1191, %v3264, 0
    %v3384 = vsel %vm1459, %v3000, 0
    %3386 = vmatpush.bf16.msra.mxu0 0
    %3387 = vmatpush.bf16.msra.mxu0 0
    %3388 = vmatpush.bf16.msra.mxu0 0
    %3389 = vmatpush.bf16.msra.mxu0 0
    %3390 = vmatpush.bf16.msra.mxu0 0
    %3391 = vmatpush.bf16.msra.mxu0 0
    %3392 = vmatpush.bf16.msra.mxu0 0
    %3393 = vmatpush.bf16.msra.mxu0 %v3384
    %3394 = vmatmul.bf16.gmra.mxu0 %v3381
    %v3395 = vpop.f32.mrf.mxu0
    %v3396 = vadd.f32 0.0, %v3395
    %v3397 = vpop.f32.mrf.mxu0
    %3398 = vdwg.mxu0
    %v3400 = vsel %vm1191, %v3265, 0
    %v3403 = vsel %vm1459, %v3001, 0
    %3405 = vmatpush.bf16.msra.mxu0 0
    %3406 = vmatpush.bf16.msra.mxu0 0
    %3407 = vmatpush.bf16.msra.mxu0 0
    %3408 = vmatpush.bf16.msra.mxu0 0
    %3409 = vmatpush.bf16.msra.mxu0 0
    %3410 = vmatpush.bf16.msra.mxu0 0
    %3411 = vmatpush.bf16.msra.mxu0 0
    %3412 = vmatpush.bf16.msra.mxu0 %v3403
    %3413 = vmatmul.bf16.gmra.mxu0 %v3400
    %v3414 = vpop.f32.mrf.mxu0
    %v3415 = vadd.f32 0.0, %v3414
    %v3416 = vpop.f32.mrf.mxu0
    %3417 = vdwg.mxu0
    %v3418 = vpack.c.bf16 %v3282, %v3282
    %v3419 = vpack.c.bf16 %v3301, %v3301
    %v3420 = vpack.c.bf16 %v3320, %v3320
    %v3421 = vpack.c.bf16 %v3339, %v3339
    %v3422 = vpack.c.bf16 %v3358, %v3358
    %v3423 = vpack.c.bf16 %v3377, %v3377
    %v3424 = vpack.c.bf16 %v3396, %v3396
    %v3425 = vpack.c.bf16 %v3415, %v3415
    %s3426 = scalar_lea.vmem %s7, 16
    %v3427 = vld [vmem:[%s3426] sm:$0xf]
    %v3428 = vld [vmem:[%s3426 + $0x4] sm:$0xf]
    %v3429 = vld [vmem:[%s3426 + $0x8] sm:$0xf]
    %v3430 = vld [vmem:[%s3426 + $0xc] sm:$0xf]
    %v3433 = vunpack.c.l.b16 %v3418
    %v3434 = vunpack.c.l.b16 %v3419
    %v3435 = vpack.c.b16 %v3434, %v3433
    %v3437 = vsel %vm1191, %v3435, 0
    %v3440 = vsel %vm1459, %v3427, 0
    %3442 = vmatpush.bf16.msra.mxu0 0
    %3443 = vmatpush.bf16.msra.mxu0 0
    %3444 = vmatpush.bf16.msra.mxu0 0
    %3445 = vmatpush.bf16.msra.mxu0 0
    %3446 = vmatpush.bf16.msra.mxu0 0
    %3447 = vmatpush.bf16.msra.mxu0 0
    %3448 = vmatpush.bf16.msra.mxu0 0
    %3449 = vmatpush.bf16.msra.mxu0 %v3440
    %3450 = vmatmul.bf16.gmra.mxu0 %v3437
    %v3451 = vpop.f32.mrf.mxu0
    %v3452 = vadd.f32 0.0, %v3451
    %v3453 = vpop.f32.mrf.mxu0
    %v3454 = vadd.f32 0.0, %v3453
    %3455 = vdwg.mxu0
    %v3458 = vunpack.c.l.b16 %v3420
    %v3459 = vunpack.c.l.b16 %v3421
    %v3460 = vpack.c.b16 %v3459, %v3458
    %v3462 = vsel %vm1191, %v3460, 0
    %v3465 = vsel %vm1459, %v3428, 0
    %3467 = vmatpush.bf16.msra.mxu0 0
    %3468 = vmatpush.bf16.msra.mxu0 0
    %3469 = vmatpush.bf16.msra.mxu0 0
    %3470 = vmatpush.bf16.msra.mxu0 0
    %3471 = vmatpush.bf16.msra.mxu0 0
    %3472 = vmatpush.bf16.msra.mxu0 0
    %3473 = vmatpush.bf16.msra.mxu0 0
    %3474 = vmatpush.bf16.msra.mxu0 %v3465
    %3475 = vmatmul.bf16.gmra.mxu0 %v3462
    %v3476 = vpop.f32.mrf.mxu0
    %v3477 = vadd.f32 0.0, %v3476
    %v3478 = vpop.f32.mrf.mxu0
    %v3479 = vadd.f32 0.0, %v3478
    %3480 = vdwg.mxu0
    %v3483 = vunpack.c.l.b16 %v3422
    %v3484 = vunpack.c.l.b16 %v3423
    %v3485 = vpack.c.b16 %v3484, %v3483
    %v3487 = vsel %vm1191, %v3485, 0
    %v3490 = vsel %vm1459, %v3429, 0
    %3492 = vmatpush.bf16.msra.mxu0 0
    %3493 = vmatpush.bf16.msra.mxu0 0
    %3494 = vmatpush.bf16.msra.mxu0 0
    %3495 = vmatpush.bf16.msra.mxu0 0
    %3496 = vmatpush.bf16.msra.mxu0 0
    %3497 = vmatpush.bf16.msra.mxu0 0
    %3498 = vmatpush.bf16.msra.mxu0 0
    %3499 = vmatpush.bf16.msra.mxu0 %v3490
    %3500 = vmatmul.bf16.gmra.mxu0 %v3487
    %v3501 = vpop.f32.mrf.mxu0
    %v3502 = vadd.f32 0.0, %v3501
    %v3503 = vpop.f32.mrf.mxu0
    %v3504 = vadd.f32 0.0, %v3503
    %3505 = vdwg.mxu0
    %v3508 = vunpack.c.l.b16 %v3424
    %v3509 = vunpack.c.l.b16 %v3425
    %v3510 = vpack.c.b16 %v3509, %v3508
    %v3512 = vsel %vm1191, %v3510, 0
    %v3515 = vsel %vm1459, %v3430, 0
    %3517 = vmatpush.bf16.msra.mxu0 0
    %3518 = vmatpush.bf16.msra.mxu0 0
    %3519 = vmatpush.bf16.msra.mxu0 0
    %3520 = vmatpush.bf16.msra.mxu0 0
    %3521 = vmatpush.bf16.msra.mxu0 0
    %3522 = vmatpush.bf16.msra.mxu0 0
    %3523 = vmatpush.bf16.msra.mxu0 0
    %3524 = vmatpush.bf16.msra.mxu0 %v3515
    %3525 = vmatmul.bf16.gmra.mxu0 %v3512
    %v3526 = vpop.f32.mrf.mxu0
    %v3527 = vadd.f32 0.0, %v3526
    %v3528 = vpop.f32.mrf.mxu0
    %v3529 = vadd.f32 0.0, %v3528
    %3530 = vdwg.mxu0
    %v3531 = vadd.f32 %v3452, %v3477
    %v3532 = vadd.f32 %v3531, %v3502
    %v3533 = vadd.f32 %v3532, %v3527
    %v3534 = vadd.f32 %v3454, %v3479
    %v3535 = vadd.f32 %v3534, %v3504
    %v3536 = vadd.f32 %v3535, %v3529
    %s3537 = scalar_lea.vmem %s8, 1
    %v3538 = vld [vmem:[%s3537] sm:$0x1]
    %v3540 = vperm.slane %v3538, 0
    %v3542 = vadd.f32 %v3533, %v3540
    %v3543 = vadd.f32 %v3536, %v3540
    %v3544 = vadd.f32 %v1973, %v3542
    %v3545 = vadd.f32 %v1974, %v3543
    %s3546 = scalar_lea.vmem %s9, 1
    %v3547 = vld [vmem:[%s3546] sm:$0x1]
    %s3548 = scalar_lea.vmem %s10, 1
    %v3549 = vld [vmem:[%s3548] sm:$0x1]
    %3550 = vadd.xlane.f32.xlu0 %v3544
    %v3551 = vpop.xlane.xlu0 %3550
    %3552 = vadd.xlane.f32.xlu0 %v3545
    %v3553 = vpop.xlane.xlu0 %3552
    %v3554 = vmul.f32 %v3551, 0.03125
    %v3555 = vmul.f32 %v3553, 0.03125
    %v3556 = vsub.f32 %v3544, %v3554
    %v3557 = vsub.f32 %v3545, %v3555
    %v3558 = vmul.f32 %v3556, %v65
    %v3559 = vmul.f32 %v3557, %v65
    %v3560 = vmul.f32 %v3558, %v3558
    %v3561 = vmul.f32 %v3559, %v3559
    %3562 = vadd.xlane.f32.xlu0 %v3560
    %v3563 = vpop.xlane.xlu0 %3562
    %3564 = vadd.xlane.f32.xlu0 %v3561
    %v3565 = vpop.xlane.xlu0 %3564
    %v3566 = vmul.f32 %v3563, 0.03125
    %v3567 = vmul.f32 %v3565, 0.03125
    %v3568 = vadd.f32 %v3566, 1e-05
    %v3569 = vadd.f32 %v3567, 1e-05
    %v3570 = vrsqrt.pop %v3568
    %v3571 = vmul.f32 %v3570, %v3568
    %v3572 = vmul.f32 %v3571, %v3570
    %v3573 = vmul.f32 0.5, %v3572
    %v3574 = vsub.f32 1.5, %v3573
    %v3575 = vmul.f32 %v3570, %v3574
    %vm3576 = vweird.f32 %v3568
    %vm3577 = vweird.f32 %v3570
    %vm3578 = vmor %vm3576, %vm3577
    %v3579 = vsel %vm3578, %v3570, %v3575
    %v3580 = vrsqrt.pop %v3569
    %v3581 = vmul.f32 %v3580, %v3569
    %v3582 = vmul.f32 %v3581, %v3580
    %v3583 = vmul.f32 0.5, %v3582
    %v3584 = vsub.f32 1.5, %v3583
    %v3585 = vmul.f32 %v3580, %v3584
    %vm3586 = vweird.f32 %v3569
    %vm3587 = vweird.f32 %v3580
    %vm3588 = vmor %vm3586, %vm3587
    %v3589 = vsel %vm3588, %v3580, %v3585
    %v3590 = vmul.f32 %v3558, %v3579
    %v3591 = vmul.f32 %v3559, %v3589
    %v3593 = vperm.slane %v3547, 0
    %v3595 = vmul.f32 %v3593, %v3590
    %v3596 = vmul.f32 %v3593, %v3591
    %v3598 = vperm.slane %v3549, 0
    %v3600 = vadd.f32 %v3595, %v3598
    %v3601 = vadd.f32 %v3596, %v3598
    %v3602 = vpack.c.bf16 %v3601, %v3600
    %s3603 = scalar_lea.vmem %s11, 64
    %v3604 = vld [vmem:[%s3603] sm:$0xf]
    %v3605 = vld [vmem:[%s3603 + $0x4] sm:$0xf]
    %v3606 = vld [vmem:[%s3603 + $0x8] sm:$0xf]
    %v3607 = vld [vmem:[%s3603 + $0xc] sm:$0xf]
    %v3608 = vld [vmem:[%s3603 + $0x10] sm:$0xf]
    %v3609 = vld [vmem:[%s3603 + $0x14] sm:$0xf]
    %v3610 = vld [vmem:[%s3603 + $0x18] sm:$0xf]
    %v3611 = vld [vmem:[%s3603 + $0x1c] sm:$0xf]
    %v3612 = vld [vmem:[%s3603 + $0x20] sm:$0xf]
    %v3613 = vld [vmem:[%s3603 + $0x24] sm:$0xf]
    %v3614 = vld [vmem:[%s3603 + $0x28] sm:$0xf]
    %v3615 = vld [vmem:[%s3603 + $0x2c] sm:$0xf]
    %v3616 = vld [vmem:[%s3603 + $0x30] sm:$0xf]
    %v3617 = vld [vmem:[%s3603 + $0x34] sm:$0xf]
    %v3618 = vld [vmem:[%s3603 + $0x38] sm:$0xf]
    %v3619 = vld [vmem:[%s3603 + $0x3c] sm:$0xf]
    %s3620 = scalar_lea.vmem %s12, 1
    %v3621 = vld [vmem:[%s3620] sm:$0x1]
    %v3623 = vperm.slane %v3621, 0
    %v3641 = vunpack.c.l.b16 %v3604
    %v3642 = vunpack.c.l.b16 %v3605
    %v3643 = vunpack.c.l.b16 %v3606
    %v3644 = vunpack.c.l.b16 %v3607
    %v3645 = vunpack.c.l.b16 %v3608
    %v3646 = vunpack.c.l.b16 %v3609
    %v3647 = vunpack.c.l.b16 %v3610
    %v3648 = vunpack.c.l.b16 %v3611
    %v3649 = vunpack.c.l.b16 %v3612
    %v3650 = vunpack.c.l.b16 %v3613
    %v3651 = vunpack.c.l.b16 %v3614
    %v3652 = vunpack.c.l.b16 %v3615
    %v3653 = vunpack.c.l.b16 %v3616
    %v3654 = vunpack.c.l.b16 %v3617
    %v3655 = vunpack.c.l.b16 %v3618
    %v3656 = vunpack.c.l.b16 %v3619
    %v3657 = vpack.c.b16 %v3642, %v3641
    %v3658 = vpack.c.b16 %v3644, %v3643
    %v3659 = vpack.c.b16 %v3646, %v3645
    %v3660 = vpack.c.b16 %v3648, %v3647
    %v3661 = vpack.c.b16 %v3650, %v3649
    %v3662 = vpack.c.b16 %v3652, %v3651
    %v3663 = vpack.c.b16 %v3654, %v3653
    %v3664 = vpack.c.b16 %v3656, %v3655
    %3673 = vmatpush.bf16.msra.mxu0 %v3664
    %3674 = vmatpush.bf16.msra.mxu0 %v3663
    %3675 = vmatpush.bf16.msra.mxu0 %v3662
    %3676 = vmatpush.bf16.msra.mxu0 %v3661
    %3677 = vmatpush.bf16.msra.mxu0 %v3660
    %3678 = vmatpush.bf16.msra.mxu0 %v3659
    %3679 = vmatpush.bf16.msra.mxu0 %v3658
    %3680 = vmatpush.bf16.msra.mxu0 %v3657
    %3681 = vmatmul.bf16.gmra.mxu0 %v3602
    %v3682 = vpop.f32.mrf.mxu0
    %v3683 = vadd.f32 %v3623, %v3682
    %v3684 = vpop.f32.mrf.mxu0
    %v3685 = vadd.f32 %v3623, %v3684
    %3686 = vdwg.mxu0
    %v3687 = vmul.f32 %v3683, 0.5
    %v3688 = vmul.f32 %v3685, 0.5
    %v3689 = vmul.f32 %v3683, %v3683
    %v3690 = vmul.f32 %v3685, %v3685
    %v3691 = vmul.f32 %v3683, %v3689
    %v3692 = vmul.f32 %v3685, %v3690
    %v3693 = vmul.f32 %v3691, 0.044715
    %v3694 = vmul.f32 %v3692, 0.044715
    %v3695 = vadd.f32 %v3683, %v3693
    %v3696 = vadd.f32 %v3685, %v3694
    %v3697 = vmul.f32 %v3695, 0.7978846
    %v3698 = vmul.f32 %v3696, 0.7978846
    %v3699 = vtanh.pop %v3697
    %v3700 = vtanh.pop %v3698
    %v3701 = vadd.f32 %v3699, 1.0
    %v3702 = vadd.f32 %v3700, 1.0
    %v3703 = vmul.f32 %v3687, %v3701
    %v3704 = vmul.f32 %v3688, %v3702
    %v3705 = vpack.c.bf16 %v3704, %v3703
    %s3706 = scalar_lea.vmem %s13, 64
    %v3707 = vld [vmem:[%s3706] sm:$0xf]
    %v3708 = vld [vmem:[%s3706 + $0x4] sm:$0xf]
    %v3709 = vld [vmem:[%s3706 + $0x8] sm:$0xf]
    %v3710 = vld [vmem:[%s3706 + $0xc] sm:$0xf]
    %v3711 = vld [vmem:[%s3706 + $0x10] sm:$0xf]
    %v3712 = vld [vmem:[%s3706 + $0x14] sm:$0xf]
    %v3713 = vld [vmem:[%s3706 + $0x18] sm:$0xf]
    %v3714 = vld [vmem:[%s3706 + $0x1c] sm:$0xf]
    %v3715 = vld [vmem:[%s3706 + $0x20] sm:$0xf]
    %v3716 = vld [vmem:[%s3706 + $0x24] sm:$0xf]
    %v3717 = vld [vmem:[%s3706 + $0x28] sm:$0xf]
    %v3718 = vld [vmem:[%s3706 + $0x2c] sm:$0xf]
    %v3719 = vld [vmem:[%s3706 + $0x30] sm:$0xf]
    %v3720 = vld [vmem:[%s3706 + $0x34] sm:$0xf]
    %v3721 = vld [vmem:[%s3706 + $0x38] sm:$0xf]
    %v3722 = vld [vmem:[%s3706 + $0x3c] sm:$0xf]
    %s3723 = scalar_lea.vmem %s14, 1
    %v3724 = vld [vmem:[%s3723] sm:$0x1]
    %v3726 = vperm.slane %v3724, 0
    %v3744 = vunpack.c.l.b16 %v3707
    %v3745 = vunpack.c.l.b16 %v3708
    %v3746 = vunpack.c.l.b16 %v3709
    %v3747 = vunpack.c.l.b16 %v3710
    %v3748 = vunpack.c.l.b16 %v3711
    %v3749 = vunpack.c.l.b16 %v3712
    %v3750 = vunpack.c.l.b16 %v3713
    %v3751 = vunpack.c.l.b16 %v3714
    %v3752 = vunpack.c.l.b16 %v3715
    %v3753 = vunpack.c.l.b16 %v3716
    %v3754 = vunpack.c.l.b16 %v3717
    %v3755 = vunpack.c.l.b16 %v3718
    %v3756 = vunpack.c.l.b16 %v3719
    %v3757 = vunpack.c.l.b16 %v3720
    %v3758 = vunpack.c.l.b16 %v3721
    %v3759 = vunpack.c.l.b16 %v3722
    %v3760 = vpack.c.b16 %v3745, %v3744
    %v3761 = vpack.c.b16 %v3747, %v3746
    %v3762 = vpack.c.b16 %v3749, %v3748
    %v3763 = vpack.c.b16 %v3751, %v3750
    %v3764 = vpack.c.b16 %v3753, %v3752
    %v3765 = vpack.c.b16 %v3755, %v3754
    %v3766 = vpack.c.b16 %v3757, %v3756
    %v3767 = vpack.c.b16 %v3759, %v3758
    %3776 = vmatpush.bf16.msra.mxu0 %v3767
    %3777 = vmatpush.bf16.msra.mxu0 %v3766
    %3778 = vmatpush.bf16.msra.mxu0 %v3765
    %3779 = vmatpush.bf16.msra.mxu0 %v3764
    %3780 = vmatpush.bf16.msra.mxu0 %v3763
    %3781 = vmatpush.bf16.msra.mxu0 %v3762
    %3782 = vmatpush.bf16.msra.mxu0 %v3761
    %3783 = vmatpush.bf16.msra.mxu0 %v3760
    %3784 = vmatmul.bf16.gmra.mxu0 %v3705
    %v3785 = vpop.f32.mrf.mxu0
    %v3786 = vadd.f32 %v3726, %v3785
    %v3787 = vpop.f32.mrf.mxu0
    %v3788 = vadd.f32 %v3726, %v3787
    %3789 = vdwg.mxu0
    %v3790 = vadd.f32 %v3544, %v3786
    %v3791 = vadd.f32 %v3545, %v3788
    %v3792 = vld [vmem:[%s15] sm:$0x1]
    %v3793 = vld [vmem:[%s16] sm:$0x1]
    %3794 = vadd.xlane.f32.xlu0 %v3790
    %v3795 = vpop.xlane.xlu0 %3794
    %3796 = vadd.xlane.f32.xlu0 %v3791
    %v3797 = vpop.xlane.xlu0 %3796
    %v3798 = vmul.f32 %v3795, 0.03125
    %v3799 = vmul.f32 %v3797, 0.03125
    %v3800 = vsub.f32 %v3790, %v3798
    %v3801 = vsub.f32 %v3791, %v3799
    %v3802 = vmul.f32 %v3800, %v65
    %v3803 = vmul.f32 %v3801, %v65
    %v3804 = vmul.f32 %v3802, %v3802
    %v3805 = vmul.f32 %v3803, %v3803
    %3806 = vadd.xlane.f32.xlu0 %v3804
    %v3807 = vpop.xlane.xlu0 %3806
    %3808 = vadd.xlane.f32.xlu0 %v3805
    %v3809 = vpop.xlane.xlu0 %3808
    %v3810 = vmul.f32 %v3807, 0.03125
    %v3811 = vmul.f32 %v3809, 0.03125
    %v3812 = vadd.f32 %v3810, 1e-05
    %v3813 = vadd.f32 %v3811, 1e-05
    %v3814 = vrsqrt.pop %v3812
    %v3815 = vmul.f32 %v3814, %v3812
    %v3816 = vmul.f32 %v3815, %v3814
    %v3817 = vmul.f32 0.5, %v3816
    %v3818 = vsub.f32 1.5, %v3817
    %v3819 = vmul.f32 %v3814, %v3818
    %vm3820 = vweird.f32 %v3812
    %vm3821 = vweird.f32 %v3814
    %vm3822 = vmor %vm3820, %vm3821
    %v3823 = vsel %vm3822, %v3814, %v3819
    %v3824 = vrsqrt.pop %v3813
    %v3825 = vmul.f32 %v3824, %v3813
    %v3826 = vmul.f32 %v3825, %v3824
    %v3827 = vmul.f32 0.5, %v3826
    %v3828 = vsub.f32 1.5, %v3827
    %v3829 = vmul.f32 %v3824, %v3828
    %vm3830 = vweird.f32 %v3813
    %vm3831 = vweird.f32 %v3824
    %vm3832 = vmor %vm3830, %vm3831
    %v3833 = vsel %vm3832, %v3824, %v3829
    %v3834 = vmul.f32 %v3802, %v3823
    %v3835 = vmul.f32 %v3803, %v3833
    %v3837 = vperm.slane %v3792, 0
    %v3839 = vmul.f32 %v3837, %v3834
    %v3840 = vmul.f32 %v3837, %v3835
    %v3842 = vperm.slane %v3793, 0
    %v3844 = vadd.f32 %v3839, %v3842
    %v3845 = vadd.f32 %v3840, %v3842
    %v3846 = vpack.c.bf16 %v3845, %v3844
    %v3847 = vld [vmem:[%s17] sm:$0xf]
    %v3848 = vld [vmem:[%s17 + $0x4] sm:$0xf]
    %v3849 = vld [vmem:[%s17 + $0x8] sm:$0xf]
    %v3850 = vld [vmem:[%s17 + $0xc] sm:$0xf]
    %v3851 = vld [vmem:[%s17 + $0x10] sm:$0xf]
    %v3852 = vld [vmem:[%s17 + $0x14] sm:$0xf]
    %v3853 = vld [vmem:[%s17 + $0x18] sm:$0xf]
    %v3854 = vld [vmem:[%s17 + $0x1c] sm:$0xf]
    %v3855 = vld [vmem:[%s17 + $0x20] sm:$0xf]
    %v3856 = vld [vmem:[%s17 + $0x24] sm:$0xf]
    %v3857 = vld [vmem:[%s17 + $0x28] sm:$0xf]
    %v3858 = vld [vmem:[%s17 + $0x2c] sm:$0xf]
    %v3859 = vld [vmem:[%s17 + $0x30] sm:$0xf]
    %v3860 = vld [vmem:[%s17 + $0x34] sm:$0xf]
    %v3861 = vld [vmem:[%s17 + $0x38] sm:$0xf]
    %v3862 = vld [vmem:[%s17 + $0x3c] sm:$0xf]
    %v3879 = vunpack.c.l.b16 %v3847
    %v3880 = vunpack.c.l.b16 %v3848
    %v3881 = vunpack.c.l.b16 %v3849
    %v3882 = vunpack.c.l.b16 %v3850
    %v3883 = vunpack.c.l.b16 %v3851
    %v3884 = vunpack.c.l.b16 %v3852
    %v3885 = vunpack.c.l.b16 %v3853
    %v3886 = vunpack.c.l.b16 %v3854
    %v3887 = vunpack.c.l.b16 %v3855
    %v3888 = vunpack.c.l.b16 %v3856
    %v3889 = vunpack.c.l.b16 %v3857
    %v3890 = vunpack.c.l.b16 %v3858
    %v3891 = vunpack.c.l.b16 %v3859
    %v3892 = vunpack.c.l.b16 %v3860
    %v3893 = vunpack.c.l.b16 %v3861
    %v3894 = vunpack.c.l.b16 %v3862
    %v3895 = vpack.c.b16 %v3880, %v3879
    %v3896 = vpack.c.b16 %v3882, %v3881
    %v3897 = vpack.c.b16 %v3884, %v3883
    %v3898 = vpack.c.b16 %v3886, %v3885
    %v3899 = vpack.c.b16 %v3888, %v3887
    %v3900 = vpack.c.b16 %v3890, %v3889
    %v3901 = vpack.c.b16 %v3892, %v3891
    %v3902 = vpack.c.b16 %v3894, %v3893
    %3911 = vmatpush.bf16.msra.mxu0 %v3902
    %3912 = vmatpush.bf16.msra.mxu0 %v3901
    %3913 = vmatpush.bf16.msra.mxu0 %v3900
    %3914 = vmatpush.bf16.msra.mxu0 %v3899
    %3915 = vmatpush.bf16.msra.mxu0 %v3898
    %3916 = vmatpush.bf16.msra.mxu0 %v3897
    %3917 = vmatpush.bf16.msra.mxu0 %v3896
    %3918 = vmatpush.bf16.msra.mxu0 %v3895
    %3919 = vmatmul.bf16.gmra.mxu0 %v3846
    %v3920 = vpop.f32.mrf.mxu0
    %v3921 = vadd.f32 0.0, %v3920
    %v3922 = vpop.f32.mrf.mxu0
    %v3923 = vadd.f32 0.0, %v3922
    %3924 = vdwg.mxu0
    %3925 = vst [vmem:[#allocation2] sm:$0xff] %v3921
    %3926 = vst [vmem:[#allocation2 + $0x8] sm:$0xff] %v3923
    // Predicated region
    $region74: #{gpt_forward.1} parent=1 // pred_check
      _
    $region75: #{gpt_forward.1} parent=1 // pred_check_branch
      %3928 = sbr.rel (0) target = $region77
    $region76: #{gpt_forward.1} parent=1 // pred_region
      %3930 = vsyncadd [#allocation3], 0
      %s3931 = sshll.u32 [#allocation2], 4
      %s3932 = int_to_ptr.vmem [resolvable:$true] %s3931
      %s3933 = sshll.u32 %s18, 4
      %s3934 = int_to_ptr.hbm [resolvable:$true] %s3933
      %3939 = dma.vmem_to_hbm [thread:$0]  %s3932, 256, %s3934, [#allocation3], 128, 128, 8
    $region77: #{gpt_forward.1} parent=1 // pred_fallthru
      _
    // Predicated region
    $region78: #{gpt_forward.1} parent=1 // pred_check
      _
    $region79: #{gpt_forward.1} parent=1 // pred_check_branch
      %3941 = sbr.rel (0) target = $region81
    $region80: #{gpt_forward.1} parent=1 // pred_region
      %3943 = dma.done [#allocation3], 256
    $region81: #{gpt_forward.1} parent=1 // pred_fallthru
      _
    %3944 = vsyncpa [#allocation3], 1

</llo_original>
